<compile_context>
chip_gen: v5e
topology: v5e:2x2
jax: 0.10.0
libtpu: 0.0.40
codegen_flags: <defaults>
</compile_context>

<pallas_src>
import functools

import jax
import jax.numpy as jnp
from jax import lax
from jax.experimental import pallas as pl
from jax.experimental.pallas import tpu as pltpu

_LANE = 128
_SUBLANE = 8


def _round_up(n, m):
    return ((n + m - 1) // m) * m


def _pad2(a, rows, cols):
    a = jnp.asarray(a, jnp.float32)
    return jnp.zeros((rows, cols), jnp.float32).at[: a.shape[0], : a.shape[1]].set(a)


def _tpu_caps():
    """(preferred batch tile, vmem cap bytes, tensorcores per chip) by generation."""
    try:
        kind = jax.devices()[0].device_kind.lower()
    except Exception:  # pragma: no cover - no device info
        kind = ""
    if "v5" in kind:
        return 128, 100 * (1 << 20), 1
    if "v6" in kind:
        return 256, 100 * (1 << 20), 1
    if "v7" in kind:
        return 256, 56 * (1 << 20), 2
    return 128, 56 * (1 << 20), 1  # conservative default


def prepare_params(params):
    """One-time prep: transpose, fuse biases, pad feature dims to lanes, cast to bf16."""
    L = len(params["w_hh"])
    H = params["w_hh"][0].shape[0]
    F = params["w_ih"][0].shape[1]
    O = params["w_fc"].shape[0]
    Hp, Op = _round_up(H, _LANE), _round_up(O, _LANE)

    layers = []
    for l in range(1, L):  # layer 0's input projection is done by XLA outside the kernel
        w_ihT = _pad2(params["w_ih"][l].T, Hp, Hp).astype(jnp.bfloat16)
        w_hhT = _pad2(params["w_hh"][l].T, Hp, Hp).astype(jnp.bfloat16)
        b = _pad2((params["b_ih"][l] + params["b_hh"][l])[None, :], 1, Hp)  # f32
        layers.append((w_ihT, w_hhT, b))

    return {
        "L": L, "H": H, "F": F, "O": O, "Hp": Hp, "Op": Op,
        "w_ih0": jnp.asarray(params["w_ih"][0], jnp.float32),                 # (H, F)
        "b0": jnp.asarray(params["b_ih"][0] + params["b_hh"][0], jnp.float32),
        "w_hh0T": _pad2(params["w_hh"][0].T, Hp, Hp).astype(jnp.bfloat16),
        "layers": layers,
        "w_fcT": _pad2(params["w_fc"].T, Hp, Op).astype(jnp.bfloat16),        # (Hp, Op)
        "b_fc": _pad2(params["b_fc"][None, :], 1, Op),                        # f32 (1, Op)
    }


def _rnn_kernel(L, T, TB, Hp, chunk_t, unroll, *refs):
    # refs: pre0, w_hh0T, [w_ihT, w_hhT, b] * (L-1), w_fcT, b_fc, out, seq_scratch
    pre0_ref = refs[0]
    w_hh0_ref = refs[1]
    layer_refs = refs[2:2 + 3 * (L - 1)]
    w_fc_ref = refs[2 + 3 * (L - 1)]
    b_fc_ref = refs[3 + 3 * (L - 1)]
    out_ref = refs[4 + 3 * (L - 1)]
    seq_ref = refs[5 + 3 * (L - 1)]           # (T or 1, TB, Hp) bf16 VMEM scratch

    f32 = jnp.float32
    opd = jnp.bfloat16                        # MXU operand dtype

    def recurrence(pre_ref, w_hh_ref, write_out):
        # h carry, add and ReLU stay in f32; only the dot operands are bf16.
        def step(t, h):
            h_new = jnp.maximum(
                pre_ref[t].astype(f32)
                + jnp.dot(h.astype(opd), w_hh_ref[...],
                          preferred_element_type=f32),
                0.0,
            )
            if write_out:
                seq_ref[t] = h_new.astype(jnp.bfloat16)
            return h_new
        return lax.fori_loop(0, T, step, jnp.zeros((TB, Hp), f32), unroll=unroll)

    # Layer 0: pre-activations were computed by XLA outside the kernel.
    h_last = recurrence(pre0_ref, w_hh0_ref, write_out=(L > 1))

    n_chunks = T // chunk_t
    for li in range(L - 1):
        w_ih_ref = layer_refs[3 * li]
        w_hh_ref = layer_refs[3 * li + 1]
        b_ref = layer_refs[3 * li + 2]
        is_last = (li == L - 2)

        # Hoisted input projection, chunked and in place: each chunk of the previous
        # layer's output is read, projected, and overwritten with this layer's
        # pre-activation (read-before-write per chunk => RAW-safe, bounded temporary).
        def project(c, carry, w_ih_ref=w_ih_ref, b_ref=b_ref):
            start = pl.multiple_of(c * chunk_t, chunk_t)
            blk = seq_ref[pl.ds(start, chunk_t)]                    # (chunk_t, TB, Hp) bf16
            pre = (
                jnp.dot(blk.reshape(chunk_t * TB, Hp), w_ih_ref[...],
                        preferred_element_type=f32)
                + b_ref[...]
            )
            seq_ref[pl.ds(start, chunk_t)] = (
                pre.reshape(chunk_t, TB, Hp).astype(jnp.bfloat16))
            return carry
        lax.fori_loop(0, n_chunks, project, 0)

        h_last = recurrence(seq_ref, w_hh_ref, write_out=not is_last)

    out_ref[...] = (
        jnp.dot(h_last.astype(opd), w_fc_ref[...], preferred_element_type=f32)
        + b_fc_ref[...]
    )


def rnn_forward(x, prepped):
    """x: (B, T, in_size) float32 — batch_first like the PyTorch module."""
    B, T, F = x.shape
    assert F == prepped["F"]
    L, O = prepped["L"], prepped["O"]
    Hp, Op = prepped["Hp"], prepped["Op"]

    pref_tb, vmem_cap, cores = _tpu_caps()

    # Batch tiling: fill the MXU M dimension, and (on multi-TC chips) keep >= 2 tiles.
    n_tiles = max(1, -(-B // pref_tb))
    if cores >= 2 and n_tiles < cores and B >= cores * _SUBLANE:
        n_tiles = cores
    TB = _round_up(-(-B // n_tiles), _SUBLANE)
    Bp = n_tiles * TB

    # Layer-0 input projection as a plain XLA GEMM (off the Pallas serial path);
    # time-major, batch/hidden padded, stored as bf16 matmul operands.
    pre0 = jnp.einsum("btf,hf->bth", x.astype(jnp.float32), prepped["w_ih0"]) + prepped["b0"]
    pre0_tm = jnp.zeros((T, Bp, Hp), jnp.bfloat16)
    pre0_tm = pre0_tm.at[:, :B, :prepped["H"]].set(
        jnp.transpose(pre0, (1, 0, 2)).astype(jnp.bfloat16))

    inputs = [pre0_tm, prepped["w_hh0T"]]
    for (w_ihT, w_hhT, b) in prepped["layers"]:
        inputs += [w_ihT, w_hhT, b]
    inputs += [prepped["w_fcT"], prepped["b_fc"]]

    T_scr = T if L > 1 else 1                 # scratch only needed between layers

    # Projection chunk size (rows ~512 per MXU call), must divide T.
    chunk_t = max(1, min(T, 512 // max(TB, 1))) if TB <= 512 else 1
    while T % chunk_t:
        chunk_t -= 1

    # Smaller unroll once TB is large (keep full unroll only for tiny T).
    unroll = True if T <= 16 else (4 if TB <= 64 else 2)

    # VMEM budget: double-buffered pre0 block + out, single weights, scratch, + margin.
    weight_bytes = sum(int(a.size) * a.dtype.itemsize for a in inputs[1:])
    blk_bytes = T * TB * Hp * 2
    out_bytes = TB * Op * 4
    scr_bytes = T_scr * TB * Hp * 2
    need = 2 * blk_bytes + weight_bytes + 2 * out_bytes + scr_bytes
    vmem_limit = int(min(vmem_cap, max(32 << 20, int(1.5 * need))))

    kernel = functools.partial(_rnn_kernel, L, T, TB, Hp, chunk_t, unroll)

    def run(single_buffer_weights):
        def wspec(arr):
            nd = arr.ndim
            idx = lambda b, nd=nd: (0,) * nd
            if single_buffer_weights:
                # Constant block index across the grid -> one resident copy is enough.
                return pl.BlockSpec(arr.shape, idx, pipeline_mode=pl.Buffered(1))
            return pl.BlockSpec(arr.shape, idx)

        in_specs = [pl.BlockSpec((T, TB, Hp), lambda b: (0, b, 0))]
        in_specs += [wspec(a) for a in inputs[1:]]
        return pl.pallas_call(
            kernel,
            out_shape=jax.ShapeDtypeStruct((Bp, Op), jnp.float32),
            grid=(n_tiles,),
            in_specs=in_specs,
            out_specs=pl.BlockSpec((TB, Op), lambda b: (b, 0)),
            scratch_shapes=[pltpu.VMEM((T_scr, TB, Hp), jnp.bfloat16)],
            compiler_params=pltpu.CompilerParams(
                dimension_semantics=("parallel",),
                vmem_limit_bytes=vmem_limit,
            ),
        )(*inputs)

    try:
        out_padded = run(True)
    except Exception:
        out_padded = run(False)   # fallback if pipeline_mode=Buffered(1) is unsupported
    return out_padded[:B, :O]


def init_params(key, in_size, hid_size, layer_size, out_size):
    """Deterministic init mimicking PyTorch's U(-1/sqrt(hid), 1/sqrt(hid))."""
    bound = 1.0 / (hid_size ** 0.5)
    params = {"w_ih": [], "w_hh": [], "b_ih": [], "b_hh": []}
    keys = iter(jax.random.split(key, 4 * layer_size + 2))
    for l in range(layer_size):
        fin = in_size if l == 0 else hid_size
        params["w_ih"].append(
            jax.random.uniform(next(keys), (hid_size, fin), jnp.float32, -bound, bound))
        params["w_hh"].append(
            jax.random.uniform(next(keys), (hid_size, hid_size), jnp.float32, -bound, bound))
        params["b_ih"].append(
            jax.random.uniform(next(keys), (hid_size,), jnp.float32, -bound, bound))
        params["b_hh"].append(
            jax.random.uniform(next(keys), (hid_size,), jnp.float32, -bound, bound))
    params["w_fc"] = jax.random.uniform(
        next(keys), (out_size, hid_size), jnp.float32, -bound, bound)
    params["b_fc"] = jax.random.uniform(
        next(keys), (out_size,), jnp.float32, -bound, bound)
    return params


def rnn_ref(x, params, matmul_dtype=jnp.float32):
    """Pure-JAX reference matching torch.nn.RNN(relu, batch_first) + Linear.

    With matmul_dtype=jnp.bfloat16 it mirrors the kernel's dtype handling
    (bf16 matmul operands / stored activations, f32 carry & accumulation).
    """
    md = matmul_dtype
    f32 = jnp.float32
    B, T, _ = x.shape
    L = len(params["w_hh"])
    H = params["w_hh"][0].shape[0]

    def mdot(a, b):
        return jnp.dot(a.astype(md), b.astype(md), preferred_element_type=f32)

    pre = (jnp.einsum("btf,hf->bth", x.astype(f32), params["w_ih"][0].astype(f32))
           + params["b_ih"][0] + params["b_hh"][0]).astype(md)
    seq = None
    for l in range(L):
        if l > 0:
            pre = (mdot(seq, params["w_ih"][l].T)
                   + params["b_ih"][l] + params["b_hh"][l]).astype(md)
        h = jnp.zeros((B, H), f32)
        outs = []
        w_hhT = params["w_hh"][l].T
        for t in range(T):
            h = jax.nn.relu(pre[:, t].astype(f32) + mdot(h, w_hhT))
            outs.append(h)
        seq = jnp.stack(outs, axis=1).astype(md)
    return mdot(seq[:, -1], params["w_fc"].T) + params["b_fc"]


if __name__ == "__main__":
    def run_case(key, B, T, in_size, hid, layers, out_size):
        kx, kp = jax.random.split(key)
        x = jax.random.normal(kx, (B, T, in_size), jnp.float32)
        params = init_params(kp, in_size, hid, layers, out_size)
        prepped = prepare_params(params)          # one-time transpose/pad/cast
        out = jax.block_until_ready(rnn_forward(x, prepped))
        assert out.shape == (B, out_size)
        # Tight check vs. a reference that mirrors the kernel's bf16 operand handling.
        ref_bf16 = rnn_ref(x, params, matmul_dtype=jnp.bfloat16)
        assert jnp.allclose(out, ref_bf16, atol=2e-4, rtol=2e-3), \
            f"mismatch vs bf16-emulating reference: {jnp.max(jnp.abs(out - ref_bf16))}"
        # Loose sanity check vs. the pure-f32 reference (bounds bf16 rounding drift).
        ref_f32 = rnn_ref(x, params)
        assert jnp.allclose(out, ref_f32, atol=0.1, rtol=0.1), \
            f"mismatch vs f32 reference: {jnp.max(jnp.abs(out - ref_f32))}"

    key = jax.random.PRNGKey(0)
    k1, k2 = jax.random.split(key)
    # Small shapes consistent with the module's forward (batch_first x of (B, T, in)).
    run_case(k1, B=2, T=8, in_size=16, hid=32, layers=2, out_size=10)
    # Second config: padded batch, single RNN layer (no inter-layer scratch use).
    run_case(k2, B=20, T=12, in_size=24, hid=48, layers=1, out_size=6)

    print("KERNEL_OK")
</pallas_src>

<mosaic_0001>
module attributes {stable_mosaic.version = 11 : i64} {
  func.func @_rnn_kernel(%arg0: i32, %arg1: memref<8x8x128xbf16, #tpu.memory_space<vmem>>, %arg2: memref<128x128xbf16, #tpu.memory_space<vmem>>, %arg3: memref<128x128xbf16, #tpu.memory_space<vmem>>, %arg4: memref<128x128xbf16, #tpu.memory_space<vmem>>, %arg5: memref<1x128xf32, #tpu.memory_space<vmem>>, %arg6: memref<128x128xbf16, #tpu.memory_space<vmem>>, %arg7: memref<1x128xf32, #tpu.memory_space<vmem>>, %arg8: memref<8x128xf32, #tpu.memory_space<vmem>>, %arg9: memref<8x8x128xbf16, #tpu.memory_space<vmem>>) attributes {dimension_semantics = [#tpu.dimension_semantics<parallel>], iteration_bounds = array<i64: 1>, scalar_prefetch = 0 : i64, scratch_operands = 1 : i64, tpu.core_type = #tpu.core_type<tc>, window_params = [{transform_indices = @transform_0, window_bounds = array<i64: 8, 8, 128>}, {pipeline_mode = #tpu.pipeline_mode<synchronous>, transform_indices = @transform_1, window_bounds = array<i64: 128, 128>}, {pipeline_mode = #tpu.pipeline_mode<synchronous>, transform_indices = @transform_2, window_bounds = array<i64: 128, 128>}, {pipeline_mode = #tpu.pipeline_mode<synchronous>, transform_indices = @transform_3, window_bounds = array<i64: 128, 128>}, {pipeline_mode = #tpu.pipeline_mode<synchronous>, transform_indices = @transform_4, window_bounds = array<i64: 1, 128>}, {pipeline_mode = #tpu.pipeline_mode<synchronous>, transform_indices = @transform_5, window_bounds = array<i64: 128, 128>}, {pipeline_mode = #tpu.pipeline_mode<synchronous>, transform_indices = @transform_6, window_bounds = array<i64: 1, 128>}, {transform_indices = @transform_7, window_bounds = array<i64: 8, 128>}]} {
    %cst = arith.constant 0.000000e+00 : f32
    %0 = vector.broadcast %cst : f32 to vector<8x128xf32>
    %c0_i32 = arith.constant 0 : i32
    %1 = arith.index_cast %c0_i32 : i32 to index
    %c0 = arith.constant 0 : index
    %c0_0 = arith.constant 0 : index
    %2 = vector.load %arg1[%1, %c0, %c0_0] : memref<8x8x128xbf16, #tpu.memory_space<vmem>>, vector<1x8x128xbf16>
    %3 = vector.shape_cast %2 : vector<1x8x128xbf16> to vector<8x128xbf16>
    %4 = arith.extf %3 : vector<8x128xbf16> to vector<8x128xf32>
    %5 = arith.truncf %0 : vector<8x128xf32> to vector<8x128xbf16>
    %c0_1 = arith.constant 0 : index
    %c0_2 = arith.constant 0 : index
    %6 = vector.load %arg2[%c0_1, %c0_2] : memref<128x128xbf16, #tpu.memory_space<vmem>>, vector<128x128xbf16>
    %cst_3 = arith.constant dense<0.000000e+00> : vector<8x128xf32>
    %7 = tpu.matmul %5, %6, %cst_3 {dimension_numbers = #tpu.dot_dimension_numbers<[1], [0], [0], [1], [0, 0, 1, 1], [], []>} : vector<8x128xbf16>, vector<128x128xbf16>, vector<8x128xf32> -> vector<8x128xf32>
    %8 = arith.addf %4, %7 : vector<8x128xf32>
    %cst_4 = arith.constant 0.000000e+00 : f32
    %9 = vector.broadcast %cst_4 : f32 to vector<8x128xf32>
    %10 = arith.maximumf %8, %9 : vector<8x128xf32>
    %11 = arith.truncf %10 : vector<8x128xf32> to vector<8x128xbf16>
    %12 = arith.index_cast %c0_i32 : i32 to index
    %c0_5 = arith.constant 0 : index
    %c0_6 = arith.constant 0 : index
    %13 = vector.load %arg9[%12, %c0_5, %c0_6] : memref<8x8x128xbf16, #tpu.memory_space<vmem>>, vector<1x8x128xbf16>
    %14 = vector.shape_cast %13 : vector<1x8x128xbf16> to vector<8x128xbf16>
    %15 = vector.shape_cast %11 : vector<8x128xbf16> to vector<1x8x128xbf16>
    tpu.vector_store %arg9[%12, %c0_5, %c0_6], %15 {strides = array<i32>} : memref<8x8x128xbf16, #tpu.memory_space<vmem>>, vector<1x8x128xbf16>,
    %c1_i32 = arith.constant 1 : i32
    %16 = arith.index_cast %c1_i32 : i32 to index
    %c0_7 = arith.constant 0 : index
    %c0_8 = arith.constant 0 : index
    %17 = vector.load %arg1[%16, %c0_7, %c0_8] : memref<8x8x128xbf16, #tpu.memory_space<vmem>>, vector<1x8x128xbf16>
    %18 = vector.shape_cast %17 : vector<1x8x128xbf16> to vector<8x128xbf16>
    %19 = arith.extf %18 : vector<8x128xbf16> to vector<8x128xf32>
    %20 = arith.truncf %10 : vector<8x128xf32> to vector<8x128xbf16>
    %c0_9 = arith.constant 0 : index
    %c0_10 = arith.constant 0 : index
    %21 = vector.load %arg2[%c0_9, %c0_10] : memref<128x128xbf16, #tpu.memory_space<vmem>>, vector<128x128xbf16>
    %cst_11 = arith.constant dense<0.000000e+00> : vector<8x128xf32>
    %22 = tpu.matmul %20, %21, %cst_11 {dimension_numbers = #tpu.dot_dimension_numbers<[1], [0], [0], [1], [0, 0, 1, 1], [], []>} : vector<8x128xbf16>, vector<128x128xbf16>, vector<8x128xf32> -> vector<8x128xf32>
    %23 = arith.addf %19, %22 : vector<8x128xf32>
    %cst_12 = arith.constant 0.000000e+00 : f32
    %24 = vector.broadcast %cst_12 : f32 to vector<8x128xf32>
    %25 = arith.maximumf %23, %24 : vector<8x128xf32>
    %26 = arith.truncf %25 : vector<8x128xf32> to vector<8x128xbf16>
    %27 = arith.index_cast %c1_i32 : i32 to index
    %c0_13 = arith.constant 0 : index
    %c0_14 = arith.constant 0 : index
    %28 = vector.load %arg9[%27, %c0_13, %c0_14] : memref<8x8x128xbf16, #tpu.memory_space<vmem>>, vector<1x8x128xbf16>
    %29 = vector.shape_cast %28 : vector<1x8x128xbf16> to vector<8x128xbf16>
    %30 = vector.shape_cast %26 : vector<8x128xbf16> to vector<1x8x128xbf16>
    tpu.vector_store %arg9[%27, %c0_13, %c0_14], %30 {strides = array<i32>} : memref<8x8x128xbf16, #tpu.memory_space<vmem>>, vector<1x8x128xbf16>,
    %c2_i32 = arith.constant 2 : i32
    %31 = arith.index_cast %c2_i32 : i32 to index
    %c0_15 = arith.constant 0 : index
    %c0_16 = arith.constant 0 : index
    %32 = vector.load %arg1[%31, %c0_15, %c0_16] : memref<8x8x128xbf16, #tpu.memory_space<vmem>>, vector<1x8x128xbf16>
    %33 = vector.shape_cast %32 : vector<1x8x128xbf16> to vector<8x128xbf16>
    %34 = arith.extf %33 : vector<8x128xbf16> to vector<8x128xf32>
    %35 = arith.truncf %25 : vector<8x128xf32> to vector<8x128xbf16>
    %c0_17 = arith.constant 0 : index
    %c0_18 = arith.constant 0 : index
    %36 = vector.load %arg2[%c0_17, %c0_18] : memref<128x128xbf16, #tpu.memory_space<vmem>>, vector<128x128xbf16>
    %cst_19 = arith.constant dense<0.000000e+00> : vector<8x128xf32>
    %37 = tpu.matmul %35, %36, %cst_19 {dimension_numbers = #tpu.dot_dimension_numbers<[1], [0], [0], [1], [0, 0, 1, 1], [], []>} : vector<8x128xbf16>, vector<128x128xbf16>, vector<8x128xf32> -> vector<8x128xf32>
    %38 = arith.addf %34, %37 : vector<8x128xf32>
    %cst_20 = arith.constant 0.000000e+00 : f32
    %39 = vector.broadcast %cst_20 : f32 to vector<8x128xf32>
    %40 = arith.maximumf %38, %39 : vector<8x128xf32>
    %41 = arith.truncf %40 : vector<8x128xf32> to vector<8x128xbf16>
    %42 = arith.index_cast %c2_i32 : i32 to index
    %c0_21 = arith.constant 0 : index
    %c0_22 = arith.constant 0 : index
    %43 = vector.load %arg9[%42, %c0_21, %c0_22] : memref<8x8x128xbf16, #tpu.memory_space<vmem>>, vector<1x8x128xbf16>
    %44 = vector.shape_cast %43 : vector<1x8x128xbf16> to vector<8x128xbf16>
    %45 = vector.shape_cast %41 : vector<8x128xbf16> to vector<1x8x128xbf16>
    tpu.vector_store %arg9[%42, %c0_21, %c0_22], %45 {strides = array<i32>} : memref<8x8x128xbf16, #tpu.memory_space<vmem>>, vector<1x8x128xbf16>,
    %c3_i32 = arith.constant 3 : i32
    %46 = arith.index_cast %c3_i32 : i32 to index
    %c0_23 = arith.constant 0 : index
    %c0_24 = arith.constant 0 : index
    %47 = vector.load %arg1[%46, %c0_23, %c0_24] : memref<8x8x128xbf16, #tpu.memory_space<vmem>>, vector<1x8x128xbf16>
    %48 = vector.shape_cast %47 : vector<1x8x128xbf16> to vector<8x128xbf16>
    %49 = arith.extf %48 : vector<8x128xbf16> to vector<8x128xf32>
    %50 = arith.truncf %40 : vector<8x128xf32> to vector<8x128xbf16>
    %c0_25 = arith.constant 0 : index
    %c0_26 = arith.constant 0 : index
    %51 = vector.load %arg2[%c0_25, %c0_26] : memref<128x128xbf16, #tpu.memory_space<vmem>>, vector<128x128xbf16>
    %cst_27 = arith.constant dense<0.000000e+00> : vector<8x128xf32>
    %52 = tpu.matmul %50, %51, %cst_27 {dimension_numbers = #tpu.dot_dimension_numbers<[1], [0], [0], [1], [0, 0, 1, 1], [], []>} : vector<8x128xbf16>, vector<128x128xbf16>, vector<8x128xf32> -> vector<8x128xf32>
    %53 = arith.addf %49, %52 : vector<8x128xf32>
    %cst_28 = arith.constant 0.000000e+00 : f32
    %54 = vector.broadcast %cst_28 : f32 to vector<8x128xf32>
    %55 = arith.maximumf %53, %54 : vector<8x128xf32>
    %56 = arith.truncf %55 : vector<8x128xf32> to vector<8x128xbf16>
    %57 = arith.index_cast %c3_i32 : i32 to index
    %c0_29 = arith.constant 0 : index
    %c0_30 = arith.constant 0 : index
    %58 = vector.load %arg9[%57, %c0_29, %c0_30] : memref<8x8x128xbf16, #tpu.memory_space<vmem>>, vector<1x8x128xbf16>
    %59 = vector.shape_cast %58 : vector<1x8x128xbf16> to vector<8x128xbf16>
    %60 = vector.shape_cast %56 : vector<8x128xbf16> to vector<1x8x128xbf16>
    tpu.vector_store %arg9[%57, %c0_29, %c0_30], %60 {strides = array<i32>} : memref<8x8x128xbf16, #tpu.memory_space<vmem>>, vector<1x8x128xbf16>,
    %c4_i32 = arith.constant 4 : i32
    %61 = arith.index_cast %c4_i32 : i32 to index
    %c0_31 = arith.constant 0 : index
    %c0_32 = arith.constant 0 : index
    %62 = vector.load %arg1[%61, %c0_31, %c0_32] : memref<8x8x128xbf16, #tpu.memory_space<vmem>>, vector<1x8x128xbf16>
    %63 = vector.shape_cast %62 : vector<1x8x128xbf16> to vector<8x128xbf16>
    %64 = arith.extf %63 : vector<8x128xbf16> to vector<8x128xf32>
    %65 = arith.truncf %55 : vector<8x128xf32> to vector<8x128xbf16>
    %c0_33 = arith.constant 0 : index
    %c0_34 = arith.constant 0 : index
    %66 = vector.load %arg2[%c0_33, %c0_34] : memref<128x128xbf16, #tpu.memory_space<vmem>>, vector<128x128xbf16>
    %cst_35 = arith.constant dense<0.000000e+00> : vector<8x128xf32>
    %67 = tpu.matmul %65, %66, %cst_35 {dimension_numbers = #tpu.dot_dimension_numbers<[1], [0], [0], [1], [0, 0, 1, 1], [], []>} : vector<8x128xbf16>, vector<128x128xbf16>, vector<8x128xf32> -> vector<8x128xf32>
    %68 = arith.addf %64, %67 : vector<8x128xf32>
    %cst_36 = arith.constant 0.000000e+00 : f32
    %69 = vector.broadcast %cst_36 : f32 to vector<8x128xf32>
    %70 = arith.maximumf %68, %69 : vector<8x128xf32>
    %71 = arith.truncf %70 : vector<8x128xf32> to vector<8x128xbf16>
    %72 = arith.index_cast %c4_i32 : i32 to index
    %c0_37 = arith.constant 0 : index
    %c0_38 = arith.constant 0 : index
    %73 = vector.load %arg9[%72, %c0_37, %c0_38] : memref<8x8x128xbf16, #tpu.memory_space<vmem>>, vector<1x8x128xbf16>
    %74 = vector.shape_cast %73 : vector<1x8x128xbf16> to vector<8x128xbf16>
    %75 = vector.shape_cast %71 : vector<8x128xbf16> to vector<1x8x128xbf16>
    tpu.vector_store %arg9[%72, %c0_37, %c0_38], %75 {strides = array<i32>} : memref<8x8x128xbf16, #tpu.memory_space<vmem>>, vector<1x8x128xbf16>,
    %c5_i32 = arith.constant 5 : i32
    %76 = arith.index_cast %c5_i32 : i32 to index
    %c0_39 = arith.constant 0 : index
    %c0_40 = arith.constant 0 : index
    %77 = vector.load %arg1[%76, %c0_39, %c0_40] : memref<8x8x128xbf16, #tpu.memory_space<vmem>>, vector<1x8x128xbf16>
    %78 = vector.shape_cast %77 : vector<1x8x128xbf16> to vector<8x128xbf16>
    %79 = arith.extf %78 : vector<8x128xbf16> to vector<8x128xf32>
    %80 = arith.truncf %70 : vector<8x128xf32> to vector<8x128xbf16>
    %c0_41 = arith.constant 0 : index
    %c0_42 = arith.constant 0 : index
    %81 = vector.load %arg2[%c0_41, %c0_42] : memref<128x128xbf16, #tpu.memory_space<vmem>>, vector<128x128xbf16>
    %cst_43 = arith.constant dense<0.000000e+00> : vector<8x128xf32>
    %82 = tpu.matmul %80, %81, %cst_43 {dimension_numbers = #tpu.dot_dimension_numbers<[1], [0], [0], [1], [0, 0, 1, 1], [], []>} : vector<8x128xbf16>, vector<128x128xbf16>, vector<8x128xf32> -> vector<8x128xf32>
    %83 = arith.addf %79, %82 : vector<8x128xf32>
    %cst_44 = arith.constant 0.000000e+00 : f32
    %84 = vector.broadcast %cst_44 : f32 to vector<8x128xf32>
    %85 = arith.maximumf %83, %84 : vector<8x128xf32>
    %86 = arith.truncf %85 : vector<8x128xf32> to vector<8x128xbf16>
    %87 = arith.index_cast %c5_i32 : i32 to index
    %c0_45 = arith.constant 0 : index
    %c0_46 = arith.constant 0 : index
    %88 = vector.load %arg9[%87, %c0_45, %c0_46] : memref<8x8x128xbf16, #tpu.memory_space<vmem>>, vector<1x8x128xbf16>
    %89 = vector.shape_cast %88 : vector<1x8x128xbf16> to vector<8x128xbf16>
    %90 = vector.shape_cast %86 : vector<8x128xbf16> to vector<1x8x128xbf16>
    tpu.vector_store %arg9[%87, %c0_45, %c0_46], %90 {strides = array<i32>} : memref<8x8x128xbf16, #tpu.memory_space<vmem>>, vector<1x8x128xbf16>,
    %c6_i32 = arith.constant 6 : i32
    %91 = arith.index_cast %c6_i32 : i32 to index
    %c0_47 = arith.constant 0 : index
    %c0_48 = arith.constant 0 : index
    %92 = vector.load %arg1[%91, %c0_47, %c0_48] : memref<8x8x128xbf16, #tpu.memory_space<vmem>>, vector<1x8x128xbf16>
    %93 = vector.shape_cast %92 : vector<1x8x128xbf16> to vector<8x128xbf16>
    %94 = arith.extf %93 : vector<8x128xbf16> to vector<8x128xf32>
    %95 = arith.truncf %85 : vector<8x128xf32> to vector<8x128xbf16>
    %c0_49 = arith.constant 0 : index
    %c0_50 = arith.constant 0 : index
    %96 = vector.load %arg2[%c0_49, %c0_50] : memref<128x128xbf16, #tpu.memory_space<vmem>>, vector<128x128xbf16>
    %cst_51 = arith.constant dense<0.000000e+00> : vector<8x128xf32>
    %97 = tpu.matmul %95, %96, %cst_51 {dimension_numbers = #tpu.dot_dimension_numbers<[1], [0], [0], [1], [0, 0, 1, 1], [], []>} : vector<8x128xbf16>, vector<128x128xbf16>, vector<8x128xf32> -> vector<8x128xf32>
    %98 = arith.addf %94, %97 : vector<8x128xf32>
    %cst_52 = arith.constant 0.000000e+00 : f32
    %99 = vector.broadcast %cst_52 : f32 to vector<8x128xf32>
    %100 = arith.maximumf %98, %99 : vector<8x128xf32>
    %101 = arith.truncf %100 : vector<8x128xf32> to vector<8x128xbf16>
    %102 = arith.index_cast %c6_i32 : i32 to index
    %c0_53 = arith.constant 0 : index
    %c0_54 = arith.constant 0 : index
    %103 = vector.load %arg9[%102, %c0_53, %c0_54] : memref<8x8x128xbf16, #tpu.memory_space<vmem>>, vector<1x8x128xbf16>
    %104 = vector.shape_cast %103 : vector<1x8x128xbf16> to vector<8x128xbf16>
    %105 = vector.shape_cast %101 : vector<8x128xbf16> to vector<1x8x128xbf16>
    tpu.vector_store %arg9[%102, %c0_53, %c0_54], %105 {strides = array<i32>} : memref<8x8x128xbf16, #tpu.memory_space<vmem>>, vector<1x8x128xbf16>,
    %c7_i32 = arith.constant 7 : i32
    %106 = arith.index_cast %c7_i32 : i32 to index
    %c0_55 = arith.constant 0 : index
    %c0_56 = arith.constant 0 : index
    %107 = vector.load %arg1[%106, %c0_55, %c0_56] : memref<8x8x128xbf16, #tpu.memory_space<vmem>>, vector<1x8x128xbf16>
    %108 = vector.shape_cast %107 : vector<1x8x128xbf16> to vector<8x128xbf16>
    %109 = arith.extf %108 : vector<8x128xbf16> to vector<8x128xf32>
    %110 = arith.truncf %100 : vector<8x128xf32> to vector<8x128xbf16>
    %c0_57 = arith.constant 0 : index
    %c0_58 = arith.constant 0 : index
    %111 = vector.load %arg2[%c0_57, %c0_58] : memref<128x128xbf16, #tpu.memory_space<vmem>>, vector<128x128xbf16>
    %cst_59 = arith.constant dense<0.000000e+00> : vector<8x128xf32>
    %112 = tpu.matmul %110, %111, %cst_59 {dimension_numbers = #tpu.dot_dimension_numbers<[1], [0], [0], [1], [0, 0, 1, 1], [], []>} : vector<8x128xbf16>, vector<128x128xbf16>, vector<8x128xf32> -> vector<8x128xf32>
    %113 = arith.addf %109, %112 : vector<8x128xf32>
    %cst_60 = arith.constant 0.000000e+00 : f32
    %114 = vector.broadcast %cst_60 : f32 to vector<8x128xf32>
    %115 = arith.maximumf %113, %114 : vector<8x128xf32>
    %116 = arith.truncf %115 : vector<8x128xf32> to vector<8x128xbf16>
    %117 = arith.index_cast %c7_i32 : i32 to index
    %c0_61 = arith.constant 0 : index
    %c0_62 = arith.constant 0 : index
    %118 = vector.load %arg9[%117, %c0_61, %c0_62] : memref<8x8x128xbf16, #tpu.memory_space<vmem>>, vector<1x8x128xbf16>
    %119 = vector.shape_cast %118 : vector<1x8x128xbf16> to vector<8x128xbf16>
    %120 = vector.shape_cast %116 : vector<8x128xbf16> to vector<1x8x128xbf16>
    tpu.vector_store %arg9[%117, %c0_61, %c0_62], %120 {strides = array<i32>} : memref<8x8x128xbf16, #tpu.memory_space<vmem>>, vector<1x8x128xbf16>,
    %c8_i32 = arith.constant 8 : i32
    %c0_i32_63 = arith.constant 0 : i32
    %c8_i32_64 = arith.constant 8 : i32
    %121 = arith.muli %c0_i32_63, %c8_i32_64 : i32
    %122 = tpu.assume_multiple %121, 8 : i32
    %123 = arith.index_cast %122 : i32 to index
    %c0_65 = arith.constant 0 : index
    %c0_66 = arith.constant 0 : index
    %124 = vector.load %arg9[%123, %c0_65, %c0_66] : memref<8x8x128xbf16, #tpu.memory_space<vmem>>, vector<8x8x128xbf16>
    %125 = vector.shape_cast %124 : vector<8x8x128xbf16> to vector<64x128xbf16>
    %c0_67 = arith.constant 0 : index
    %c0_68 = arith.constant 0 : index
    %126 = vector.load %arg3[%c0_67, %c0_68] : memref<128x128xbf16, #tpu.memory_space<vmem>>, vector<128x128xbf16>
    %cst_69 = arith.constant dense<0.000000e+00> : vector<64x128xf32>
    %127 = tpu.matmul %125, %126, %cst_69 {dimension_numbers = #tpu.dot_dimension_numbers<[1], [0], [0], [1], [0, 0, 1, 1], [], []>} : vector<64x128xbf16>, vector<128x128xbf16>, vector<64x128xf32> -> vector<64x128xf32>
    %c0_70 = arith.constant 0 : index
    %c0_71 = arith.constant 0 : index
    %128 = vector.load %arg5[%c0_70, %c0_71] : memref<1x128xf32, #tpu.memory_space<vmem>>, vector<1x128xf32>
    %129 = vector.broadcast %128 : vector<1x128xf32> to vector<64x128xf32>
    %130 = arith.addf %127, %129 : vector<64x128xf32>
    %131 = vector.shape_cast %130 : vector<64x128xf32> to vector<8x8x128xf32>
    %132 = arith.truncf %131 : vector<8x8x128xf32> to vector<8x8x128xbf16>
    %133 = arith.index_cast %122 : i32 to index
    %c0_72 = arith.constant 0 : index
    %c0_73 = arith.constant 0 : index
    %134 = vector.load %arg9[%133, %c0_72, %c0_73] : memref<8x8x128xbf16, #tpu.memory_space<vmem>>, vector<8x8x128xbf16>
    tpu.vector_store %arg9[%133, %c0_72, %c0_73], %132 {strides = array<i32>} : memref<8x8x128xbf16, #tpu.memory_space<vmem>>, vector<8x8x128xbf16>,
    %c1_i32_74 = arith.constant 1 : i32
    %cst_75 = arith.constant 0.000000e+00 : f32
    %135 = vector.broadcast %cst_75 : f32 to vector<8x128xf32>
    %c0_i32_76 = arith.constant 0 : i32
    %136 = arith.index_cast %c0_i32_76 : i32 to index
    %c0_77 = arith.constant 0 : index
    %c0_78 = arith.constant 0 : index
    %137 = vector.load %arg9[%136, %c0_77, %c0_78] : memref<8x8x128xbf16, #tpu.memory_space<vmem>>, vector<1x8x128xbf16>
    %138 = vector.shape_cast %137 : vector<1x8x128xbf16> to vector<8x128xbf16>
    %139 = arith.extf %138 : vector<8x128xbf16> to vector<8x128xf32>
    %140 = arith.truncf %135 : vector<8x128xf32> to vector<8x128xbf16>
    %c0_79 = arith.constant 0 : index
    %c0_80 = arith.constant 0 : index
    %141 = vector.load %arg4[%c0_79, %c0_80] : memref<128x128xbf16, #tpu.memory_space<vmem>>, vector<128x128xbf16>
    %cst_81 = arith.constant dense<0.000000e+00> : vector<8x128xf32>
    %142 = tpu.matmul %140, %141, %cst_81 {dimension_numbers = #tpu.dot_dimension_numbers<[1], [0], [0], [1], [0, 0, 1, 1], [], []>} : vector<8x128xbf16>, vector<128x128xbf16>, vector<8x128xf32> -> vector<8x128xf32>
    %143 = arith.addf %139, %142 : vector<8x128xf32>
    %cst_82 = arith.constant 0.000000e+00 : f32
    %144 = vector.broadcast %cst_82 : f32 to vector<8x128xf32>
    %145 = arith.maximumf %143, %144 : vector<8x128xf32>
    %c1_i32_83 = arith.constant 1 : i32
    %146 = arith.index_cast %c1_i32_83 : i32 to index
    %c0_84 = arith.constant 0 : index
    %c0_85 = arith.constant 0 : index
    %147 = vector.load %arg9[%146, %c0_84, %c0_85] : memref<8x8x128xbf16, #tpu.memory_space<vmem>>, vector<1x8x128xbf16>
    %148 = vector.shape_cast %147 : vector<1x8x128xbf16> to vector<8x128xbf16>
    %149 = arith.extf %148 : vector<8x128xbf16> to vector<8x128xf32>
    %150 = arith.truncf %145 : vector<8x128xf32> to vector<8x128xbf16>
    %c0_86 = arith.constant 0 : index
    %c0_87 = arith.constant 0 : index
    %151 = vector.load %arg4[%c0_86, %c0_87] : memref<128x128xbf16, #tpu.memory_space<vmem>>, vector<128x128xbf16>
    %cst_88 = arith.constant dense<0.000000e+00> : vector<8x128xf32>
    %152 = tpu.matmul %150, %151, %cst_88 {dimension_numbers = #tpu.dot_dimension_numbers<[1], [0], [0], [1], [0, 0, 1, 1], [], []>} : vector<8x128xbf16>, vector<128x128xbf16>, vector<8x128xf32> -> vector<8x128xf32>
    %153 = arith.addf %149, %152 : vector<8x128xf32>
    %cst_89 = arith.constant 0.000000e+00 : f32
    %154 = vector.broadcast %cst_89 : f32 to vector<8x128xf32>
    %155 = arith.maximumf %153, %154 : vector<8x128xf32>
    %c2_i32_90 = arith.constant 2 : i32
    %156 = arith.index_cast %c2_i32_90 : i32 to index
    %c0_91 = arith.constant 0 : index
    %c0_92 = arith.constant 0 : index
    %157 = vector.load %arg9[%156, %c0_91, %c0_92] : memref<8x8x128xbf16, #tpu.memory_space<vmem>>, vector<1x8x128xbf16>
    %158 = vector.shape_cast %157 : vector<1x8x128xbf16> to vector<8x128xbf16>
    %159 = arith.extf %158 : vector<8x128xbf16> to vector<8x128xf32>
    %160 = arith.truncf %155 : vector<8x128xf32> to vector<8x128xbf16>
    %c0_93 = arith.constant 0 : index
    %c0_94 = arith.constant 0 : index
    %161 = vector.load %arg4[%c0_93, %c0_94] : memref<128x128xbf16, #tpu.memory_space<vmem>>, vector<128x128xbf16>
    %cst_95 = arith.constant dense<0.000000e+00> : vector<8x128xf32>
    %162 = tpu.matmul %160, %161, %cst_95 {dimension_numbers = #tpu.dot_dimension_numbers<[1], [0], [0], [1], [0, 0, 1, 1], [], []>} : vector<8x128xbf16>, vector<128x128xbf16>, vector<8x128xf32> -> vector<8x128xf32>
    %163 = arith.addf %159, %162 : vector<8x128xf32>
    %cst_96 = arith.constant 0.000000e+00 : f32
    %164 = vector.broadcast %cst_96 : f32 to vector<8x128xf32>
    %165 = arith.maximumf %163, %164 : vector<8x128xf32>
    %c3_i32_97 = arith.constant 3 : i32
    %166 = arith.index_cast %c3_i32_97 : i32 to index
    %c0_98 = arith.constant 0 : index
    %c0_99 = arith.constant 0 : index
    %167 = vector.load %arg9[%166, %c0_98, %c0_99] : memref<8x8x128xbf16, #tpu.memory_space<vmem>>, vector<1x8x128xbf16>
    %168 = vector.shape_cast %167 : vector<1x8x128xbf16> to vector<8x128xbf16>
    %169 = arith.extf %168 : vector<8x128xbf16> to vector<8x128xf32>
    %170 = arith.truncf %165 : vector<8x128xf32> to vector<8x128xbf16>
    %c0_100 = arith.constant 0 : index
    %c0_101 = arith.constant 0 : index
    %171 = vector.load %arg4[%c0_100, %c0_101] : memref<128x128xbf16, #tpu.memory_space<vmem>>, vector<128x128xbf16>
    %cst_102 = arith.constant dense<0.000000e+00> : vector<8x128xf32>
    %172 = tpu.matmul %170, %171, %cst_102 {dimension_numbers = #tpu.dot_dimension_numbers<[1], [0], [0], [1], [0, 0, 1, 1], [], []>} : vector<8x128xbf16>, vector<128x128xbf16>, vector<8x128xf32> -> vector<8x128xf32>
    %173 = arith.addf %169, %172 : vector<8x128xf32>
    %cst_103 = arith.constant 0.000000e+00 : f32
    %174 = vector.broadcast %cst_103 : f32 to vector<8x128xf32>
    %175 = arith.maximumf %173, %174 : vector<8x128xf32>
    %c4_i32_104 = arith.constant 4 : i32
    %176 = arith.index_cast %c4_i32_104 : i32 to index
    %c0_105 = arith.constant 0 : index
    %c0_106 = arith.constant 0 : index
    %177 = vector.load %arg9[%176, %c0_105, %c0_106] : memref<8x8x128xbf16, #tpu.memory_space<vmem>>, vector<1x8x128xbf16>
    %178 = vector.shape_cast %177 : vector<1x8x128xbf16> to vector<8x128xbf16>
    %179 = arith.extf %178 : vector<8x128xbf16> to vector<8x128xf32>
    %180 = arith.truncf %175 : vector<8x128xf32> to vector<8x128xbf16>
    %c0_107 = arith.constant 0 : index
    %c0_108 = arith.constant 0 : index
    %181 = vector.load %arg4[%c0_107, %c0_108] : memref<128x128xbf16, #tpu.memory_space<vmem>>, vector<128x128xbf16>
    %cst_109 = arith.constant dense<0.000000e+00> : vector<8x128xf32>
    %182 = tpu.matmul %180, %181, %cst_109 {dimension_numbers = #tpu.dot_dimension_numbers<[1], [0], [0], [1], [0, 0, 1, 1], [], []>} : vector<8x128xbf16>, vector<128x128xbf16>, vector<8x128xf32> -> vector<8x128xf32>
    %183 = arith.addf %179, %182 : vector<8x128xf32>
    %cst_110 = arith.constant 0.000000e+00 : f32
    %184 = vector.broadcast %cst_110 : f32 to vector<8x128xf32>
    %185 = arith.maximumf %183, %184 : vector<8x128xf32>
    %c5_i32_111 = arith.constant 5 : i32
    %186 = arith.index_cast %c5_i32_111 : i32 to index
    %c0_112 = arith.constant 0 : index
    %c0_113 = arith.constant 0 : index
    %187 = vector.load %arg9[%186, %c0_112, %c0_113] : memref<8x8x128xbf16, #tpu.memory_space<vmem>>, vector<1x8x128xbf16>
    %188 = vector.shape_cast %187 : vector<1x8x128xbf16> to vector<8x128xbf16>
    %189 = arith.extf %188 : vector<8x128xbf16> to vector<8x128xf32>
    %190 = arith.truncf %185 : vector<8x128xf32> to vector<8x128xbf16>
    %c0_114 = arith.constant 0 : index
    %c0_115 = arith.constant 0 : index
    %191 = vector.load %arg4[%c0_114, %c0_115] : memref<128x128xbf16, #tpu.memory_space<vmem>>, vector<128x128xbf16>
    %cst_116 = arith.constant dense<0.000000e+00> : vector<8x128xf32>
    %192 = tpu.matmul %190, %191, %cst_116 {dimension_numbers = #tpu.dot_dimension_numbers<[1], [0], [0], [1], [0, 0, 1, 1], [], []>} : vector<8x128xbf16>, vector<128x128xbf16>, vector<8x128xf32> -> vector<8x128xf32>
    %193 = arith.addf %189, %192 : vector<8x128xf32>
    %cst_117 = arith.constant 0.000000e+00 : f32
    %194 = vector.broadcast %cst_117 : f32 to vector<8x128xf32>
    %195 = arith.maximumf %193, %194 : vector<8x128xf32>
    %c6_i32_118 = arith.constant 6 : i32
    %196 = arith.index_cast %c6_i32_118 : i32 to index
    %c0_119 = arith.constant 0 : index
    %c0_120 = arith.constant 0 : index
    %197 = vector.load %arg9[%196, %c0_119, %c0_120] : memref<8x8x128xbf16, #tpu.memory_space<vmem>>, vector<1x8x128xbf16>
    %198 = vector.shape_cast %197 : vector<1x8x128xbf16> to vector<8x128xbf16>
    %199 = arith.extf %198 : vector<8x128xbf16> to vector<8x128xf32>
    %200 = arith.truncf %195 : vector<8x128xf32> to vector<8x128xbf16>
    %c0_121 = arith.constant 0 : index
    %c0_122 = arith.constant 0 : index
    %201 = vector.load %arg4[%c0_121, %c0_122] : memref<128x128xbf16, #tpu.memory_space<vmem>>, vector<128x128xbf16>
    %cst_123 = arith.constant dense<0.000000e+00> : vector<8x128xf32>
    %202 = tpu.matmul %200, %201, %cst_123 {dimension_numbers = #tpu.dot_dimension_numbers<[1], [0], [0], [1], [0, 0, 1, 1], [], []>} : vector<8x128xbf16>, vector<128x128xbf16>, vector<8x128xf32> -> vector<8x128xf32>
    %203 = arith.addf %199, %202 : vector<8x128xf32>
    %cst_124 = arith.constant 0.000000e+00 : f32
    %204 = vector.broadcast %cst_124 : f32 to vector<8x128xf32>
    %205 = arith.maximumf %203, %204 : vector<8x128xf32>
    %c7_i32_125 = arith.constant 7 : i32
    %206 = arith.index_cast %c7_i32_125 : i32 to index
    %c0_126 = arith.constant 0 : index
    %c0_127 = arith.constant 0 : index
    %207 = vector.load %arg9[%206, %c0_126, %c0_127] : memref<8x8x128xbf16, #tpu.memory_space<vmem>>, vector<1x8x128xbf16>
    %208 = vector.shape_cast %207 : vector<1x8x128xbf16> to vector<8x128xbf16>
    %209 = arith.extf %208 : vector<8x128xbf16> to vector<8x128xf32>
    %210 = arith.truncf %205 : vector<8x128xf32> to vector<8x128xbf16>
    %c0_128 = arith.constant 0 : index
    %c0_129 = arith.constant 0 : index
    %211 = vector.load %arg4[%c0_128, %c0_129] : memref<128x128xbf16, #tpu.memory_space<vmem>>, vector<128x128xbf16>
    %cst_130 = arith.constant dense<0.000000e+00> : vector<8x128xf32>
    %212 = tpu.matmul %210, %211, %cst_130 {dimension_numbers = #tpu.dot_dimension_numbers<[1], [0], [0], [1], [0, 0, 1, 1], [], []>} : vector<8x128xbf16>, vector<128x128xbf16>, vector<8x128xf32> -> vector<8x128xf32>
    %213 = arith.addf %209, %212 : vector<8x128xf32>
    %cst_131 = arith.constant 0.000000e+00 : f32
    %214 = vector.broadcast %cst_131 : f32 to vector<8x128xf32>
    %215 = arith.maximumf %213, %214 : vector<8x128xf32>
    %c8_i32_132 = arith.constant 8 : i32
    %216 = arith.truncf %215 : vector<8x128xf32> to vector<8x128xbf16>
    %c0_133 = arith.constant 0 : index
    %c0_134 = arith.constant 0 : index
    %217 = vector.load %arg6[%c0_133, %c0_134] : memref<128x128xbf16, #tpu.memory_space<vmem>>, vector<128x128xbf16>
    %cst_135 = arith.constant dense<0.000000e+00> : vector<8x128xf32>
    %218 = tpu.matmul %216, %217, %cst_135 {dimension_numbers = #tpu.dot_dimension_numbers<[1], [0], [0], [1], [0, 0, 1, 1], [], []>} : vector<8x128xbf16>, vector<128x128xbf16>, vector<8x128xf32> -> vector<8x128xf32>
    %c0_136 = arith.constant 0 : index
    %c0_137 = arith.constant 0 : index
    %219 = vector.load %arg7[%c0_136, %c0_137] : memref<1x128xf32, #tpu.memory_space<vmem>>, vector<1x128xf32>
    %220 = vector.broadcast %219 : vector<1x128xf32> to vector<8x128xf32>
    %221 = arith.addf %218, %220 : vector<8x128xf32>
    %c0_138 = arith.constant 0 : index
    %c0_139 = arith.constant 0 : index
    %222 = vector.load %arg8[%c0_138, %c0_139] : memref<8x128xf32, #tpu.memory_space<vmem>>, vector<8x128xf32>
    tpu.vector_store %arg8[%c0_138, %c0_139], %221 {strides = array<i32>} : memref<8x128xf32, #tpu.memory_space<vmem>>, vector<8x128xf32>,
    return
  }
  func.func @transform_0(%arg0: i32) -> (i32, i32, i32) {
    %c0_i32 = arith.constant 0 : i32
    %c0_i32_0 = arith.constant 0 : i32
    %c0_i32_1 = arith.constant 0 : i32
    return %c0_i32, %arg0, %c0_i32_0 : i32, i32, i32
  }
  func.func @transform_1(%arg0: i32) -> (i32, i32) {
    %c0_i32 = arith.constant 0 : i32
    %c0_i32_0 = arith.constant 0 : i32
    %c0_i32_1 = arith.constant 0 : i32
    return %c0_i32, %c0_i32_0 : i32, i32
  }
  func.func @transform_2(%arg0: i32) -> (i32, i32) {
    %c0_i32 = arith.constant 0 : i32
    %c0_i32_0 = arith.constant 0 : i32
    %c0_i32_1 = arith.constant 0 : i32
    return %c0_i32, %c0_i32_0 : i32, i32
  }
  func.func @transform_3(%arg0: i32) -> (i32, i32) {
    %c0_i32 = arith.constant 0 : i32
    %c0_i32_0 = arith.constant 0 : i32
    %c0_i32_1 = arith.constant 0 : i32
    return %c0_i32, %c0_i32_0 : i32, i32
  }
  func.func @transform_4(%arg0: i32) -> (i32, i32) {
    %c0_i32 = arith.constant 0 : i32
    %c0_i32_0 = arith.constant 0 : i32
    %c0_i32_1 = arith.constant 0 : i32
    return %c0_i32, %c0_i32_0 : i32, i32
  }
  func.func @transform_5(%arg0: i32) -> (i32, i32) {
    %c0_i32 = arith.constant 0 : i32
    %c0_i32_0 = arith.constant 0 : i32
    %c0_i32_1 = arith.constant 0 : i32
    return %c0_i32, %c0_i32_0 : i32, i32
  }
  func.func @transform_6(%arg0: i32) -> (i32, i32) {
    %c0_i32 = arith.constant 0 : i32
    %c0_i32_0 = arith.constant 0 : i32
    %c0_i32_1 = arith.constant 0 : i32
    return %c0_i32, %c0_i32_0 : i32, i32
  }
  func.func @transform_7(%arg0: i32) -> (i32, i32) {
    %c0_i32 = arith.constant 0 : i32
    %c0_i32_0 = arith.constant 0 : i32
    return %arg0, %c0_i32 : i32, i32
  }
}

module attributes {stable_mosaic.version = 11 : i64} {
  func.func @_rnn_kernel(%arg0: i32, %arg1: memref<8x8x128xbf16, #tpu.memory_space<vmem>>, %arg2: memref<128x128xbf16, #tpu.memory_space<vmem>>, %arg3: memref<128x128xbf16, #tpu.memory_space<vmem>>, %arg4: memref<128x128xbf16, #tpu.memory_space<vmem>>, %arg5: memref<1x128xf32, #tpu.memory_space<vmem>>, %arg6: memref<128x128xbf16, #tpu.memory_space<vmem>>, %arg7: memref<1x128xf32, #tpu.memory_space<vmem>>, %arg8: memref<8x128xf32, #tpu.memory_space<vmem>>, %arg9: memref<8x8x128xbf16, #tpu.memory_space<vmem>>) attributes {dimension_semantics = [#tpu.dimension_semantics<parallel>], iteration_bounds = array<i64: 1>, scalar_prefetch = 0 : i64, scratch_operands = 1 : i64, tpu.core_type = #tpu.core_type<tc>, window_params = [{transform_indices = @transform_0, window_bounds = array<i64: 8, 8, 128>}, {pipeline_mode = #tpu.pipeline_mode<synchronous>, transform_indices = @transform_1, window_bounds = array<i64: 128, 128>}, {pipeline_mode = #tpu.pipeline_mode<synchronous>, transform_indices = @transform_2, window_bounds = array<i64: 128, 128>}, {pipeline_mode = #tpu.pipeline_mode<synchronous>, transform_indices = @transform_3, window_bounds = array<i64: 128, 128>}, {pipeline_mode = #tpu.pipeline_mode<synchronous>, transform_indices = @transform_4, window_bounds = array<i64: 1, 128>}, {pipeline_mode = #tpu.pipeline_mode<synchronous>, transform_indices = @transform_5, window_bounds = array<i64: 128, 128>}, {pipeline_mode = #tpu.pipeline_mode<synchronous>, transform_indices = @transform_6, window_bounds = array<i64: 1, 128>}, {transform_indices = @transform_7, window_bounds = array<i64: 8, 128>}]} {
    %cst = arith.constant 0.000000e+00 : f32
    %0 = vector.broadcast %cst : f32 to vector<8x128xf32>
    %c0_i32 = arith.constant 0 : i32
    %1 = arith.index_cast %c0_i32 : i32 to index
    %c0 = arith.constant 0 : index
    %c0_0 = arith.constant 0 : index
    %2 = vector.load %arg1[%1, %c0, %c0_0] : memref<8x8x128xbf16, #tpu.memory_space<vmem>>, vector<1x8x128xbf16>
    %3 = vector.shape_cast %2 : vector<1x8x128xbf16> to vector<8x128xbf16>
    %4 = arith.extf %3 : vector<8x128xbf16> to vector<8x128xf32>
    %5 = arith.truncf %0 : vector<8x128xf32> to vector<8x128xbf16>
    %c0_1 = arith.constant 0 : index
    %c0_2 = arith.constant 0 : index
    %6 = vector.load %arg2[%c0_1, %c0_2] : memref<128x128xbf16, #tpu.memory_space<vmem>>, vector<128x128xbf16>
    %cst_3 = arith.constant dense<0.000000e+00> : vector<8x128xf32>
    %7 = tpu.matmul %5, %6, %cst_3 {dimension_numbers = #tpu.dot_dimension_numbers<[1], [0], [0], [1], [0, 0, 1, 1], [], []>} : vector<8x128xbf16>, vector<128x128xbf16>, vector<8x128xf32> -> vector<8x128xf32>
    %8 = arith.addf %4, %7 : vector<8x128xf32>
    %cst_4 = arith.constant 0.000000e+00 : f32
    %9 = vector.broadcast %cst_4 : f32 to vector<8x128xf32>
    %10 = arith.maximumf %8, %9 : vector<8x128xf32>
    %11 = arith.truncf %10 : vector<8x128xf32> to vector<8x128xbf16>
    %12 = arith.index_cast %c0_i32 : i32 to index
    %c0_5 = arith.constant 0 : index
    %c0_6 = arith.constant 0 : index
    %13 = vector.load %arg9[%12, %c0_5, %c0_6] : memref<8x8x128xbf16, #tpu.memory_space<vmem>>, vector<1x8x128xbf16>
    %14 = vector.shape_cast %13 : vector<1x8x128xbf16> to vector<8x128xbf16>
    %15 = vector.shape_cast %11 : vector<8x128xbf16> to vector<1x8x128xbf16>
    tpu.vector_store %arg9[%12, %c0_5, %c0_6], %15 {strides = array<i32>} : memref<8x8x128xbf16, #tpu.memory_space<vmem>>, vector<1x8x128xbf16>,
    %c1_i32 = arith.constant 1 : i32
    %16 = arith.index_cast %c1_i32 : i32 to index
    %c0_7 = arith.constant 0 : index
    %c0_8 = arith.constant 0 : index
    %17 = vector.load %arg1[%16, %c0_7, %c0_8] : memref<8x8x128xbf16, #tpu.memory_space<vmem>>, vector<1x8x128xbf16>
    %18 = vector.shape_cast %17 : vector<1x8x128xbf16> to vector<8x128xbf16>
    %19 = arith.extf %18 : vector<8x128xbf16> to vector<8x128xf32>
    %20 = arith.truncf %10 : vector<8x128xf32> to vector<8x128xbf16>
    %c0_9 = arith.constant 0 : index
    %c0_10 = arith.constant 0 : index
    %21 = vector.load %arg2[%c0_9, %c0_10] : memref<128x128xbf16, #tpu.memory_space<vmem>>, vector<128x128xbf16>
    %cst_11 = arith.constant dense<0.000000e+00> : vector<8x128xf32>
    %22 = tpu.matmul %20, %21, %cst_11 {dimension_numbers = #tpu.dot_dimension_numbers<[1], [0], [0], [1], [0, 0, 1, 1], [], []>} : vector<8x128xbf16>, vector<128x128xbf16>, vector<8x128xf32> -> vector<8x128xf32>
    %23 = arith.addf %19, %22 : vector<8x128xf32>
    %cst_12 = arith.constant 0.000000e+00 : f32
    %24 = vector.broadcast %cst_12 : f32 to vector<8x128xf32>
    %25 = arith.maximumf %23, %24 : vector<8x128xf32>
    %26 = arith.truncf %25 : vector<8x128xf32> to vector<8x128xbf16>
    %27 = arith.index_cast %c1_i32 : i32 to index
    %c0_13 = arith.constant 0 : index
    %c0_14 = arith.constant 0 : index
    %28 = vector.load %arg9[%27, %c0_13, %c0_14] : memref<8x8x128xbf16, #tpu.memory_space<vmem>>, vector<1x8x128xbf16>
    %29 = vector.shape_cast %28 : vector<1x8x128xbf16> to vector<8x128xbf16>
    %30 = vector.shape_cast %26 : vector<8x128xbf16> to vector<1x8x128xbf16>
    tpu.vector_store %arg9[%27, %c0_13, %c0_14], %30 {strides = array<i32>} : memref<8x8x128xbf16, #tpu.memory_space<vmem>>, vector<1x8x128xbf16>,
    %c2_i32 = arith.constant 2 : i32
    %31 = arith.index_cast %c2_i32 : i32 to index
    %c0_15 = arith.constant 0 : index
    %c0_16 = arith.constant 0 : index
    %32 = vector.load %arg1[%31, %c0_15, %c0_16] : memref<8x8x128xbf16, #tpu.memory_space<vmem>>, vector<1x8x128xbf16>
    %33 = vector.shape_cast %32 : vector<1x8x128xbf16> to vector<8x128xbf16>
    %34 = arith.extf %33 : vector<8x128xbf16> to vector<8x128xf32>
    %35 = arith.truncf %25 : vector<8x128xf32> to vector<8x128xbf16>
    %c0_17 = arith.constant 0 : index
    %c0_18 = arith.constant 0 : index
    %36 = vector.load %arg2[%c0_17, %c0_18] : memref<128x128xbf16, #tpu.memory_space<vmem>>, vector<128x128xbf16>
    %cst_19 = arith.constant dense<0.000000e+00> : vector<8x128xf32>
    %37 = tpu.matmul %35, %36, %cst_19 {dimension_numbers = #tpu.dot_dimension_numbers<[1], [0], [0], [1], [0, 0, 1, 1], [], []>} : vector<8x128xbf16>, vector<128x128xbf16>, vector<8x128xf32> -> vector<8x128xf32>
    %38 = arith.addf %34, %37 : vector<8x128xf32>
    %cst_20 = arith.constant 0.000000e+00 : f32
    %39 = vector.broadcast %cst_20 : f32 to vector<8x128xf32>
    %40 = arith.maximumf %38, %39 : vector<8x128xf32>
    %41 = arith.truncf %40 : vector<8x128xf32> to vector<8x128xbf16>
    %42 = arith.index_cast %c2_i32 : i32 to index
    %c0_21 = arith.constant 0 : index
    %c0_22 = arith.constant 0 : index
    %43 = vector.load %arg9[%42, %c0_21, %c0_22] : memref<8x8x128xbf16, #tpu.memory_space<vmem>>, vector<1x8x128xbf16>
    %44 = vector.shape_cast %43 : vector<1x8x128xbf16> to vector<8x128xbf16>
    %45 = vector.shape_cast %41 : vector<8x128xbf16> to vector<1x8x128xbf16>
    tpu.vector_store %arg9[%42, %c0_21, %c0_22], %45 {strides = array<i32>} : memref<8x8x128xbf16, #tpu.memory_space<vmem>>, vector<1x8x128xbf16>,
    %c3_i32 = arith.constant 3 : i32
    %46 = arith.index_cast %c3_i32 : i32 to index
    %c0_23 = arith.constant 0 : index
    %c0_24 = arith.constant 0 : index
    %47 = vector.load %arg1[%46, %c0_23, %c0_24] : memref<8x8x128xbf16, #tpu.memory_space<vmem>>, vector<1x8x128xbf16>
    %48 = vector.shape_cast %47 : vector<1x8x128xbf16> to vector<8x128xbf16>
    %49 = arith.extf %48 : vector<8x128xbf16> to vector<8x128xf32>
    %50 = arith.truncf %40 : vector<8x128xf32> to vector<8x128xbf16>
    %c0_25 = arith.constant 0 : index
    %c0_26 = arith.constant 0 : index
    %51 = vector.load %arg2[%c0_25, %c0_26] : memref<128x128xbf16, #tpu.memory_space<vmem>>, vector<128x128xbf16>
    %cst_27 = arith.constant dense<0.000000e+00> : vector<8x128xf32>
    %52 = tpu.matmul %50, %51, %cst_27 {dimension_numbers = #tpu.dot_dimension_numbers<[1], [0], [0], [1], [0, 0, 1, 1], [], []>} : vector<8x128xbf16>, vector<128x128xbf16>, vector<8x128xf32> -> vector<8x128xf32>
    %53 = arith.addf %49, %52 : vector<8x128xf32>
    %cst_28 = arith.constant 0.000000e+00 : f32
    %54 = vector.broadcast %cst_28 : f32 to vector<8x128xf32>
    %55 = arith.maximumf %53, %54 : vector<8x128xf32>
    %56 = arith.truncf %55 : vector<8x128xf32> to vector<8x128xbf16>
    %57 = arith.index_cast %c3_i32 : i32 to index
    %c0_29 = arith.constant 0 : index
    %c0_30 = arith.constant 0 : index
    %58 = vector.load %arg9[%57, %c0_29, %c0_30] : memref<8x8x128xbf16, #tpu.memory_space<vmem>>, vector<1x8x128xbf16>
    %59 = vector.shape_cast %58 : vector<1x8x128xbf16> to vector<8x128xbf16>
    %60 = vector.shape_cast %56 : vector<8x128xbf16> to vector<1x8x128xbf16>
    tpu.vector_store %arg9[%57, %c0_29, %c0_30], %60 {strides = array<i32>} : memref<8x8x128xbf16, #tpu.memory_space<vmem>>, vector<1x8x128xbf16>,
    %c4_i32 = arith.constant 4 : i32
    %61 = arith.index_cast %c4_i32 : i32 to index
    %c0_31 = arith.constant 0 : index
    %c0_32 = arith.constant 0 : index
    %62 = vector.load %arg1[%61, %c0_31, %c0_32] : memref<8x8x128xbf16, #tpu.memory_space<vmem>>, vector<1x8x128xbf16>
    %63 = vector.shape_cast %62 : vector<1x8x128xbf16> to vector<8x128xbf16>
    %64 = arith.extf %63 : vector<8x128xbf16> to vector<8x128xf32>
    %65 = arith.truncf %55 : vector<8x128xf32> to vector<8x128xbf16>
    %c0_33 = arith.constant 0 : index
    %c0_34 = arith.constant 0 : index
    %66 = vector.load %arg2[%c0_33, %c0_34] : memref<128x128xbf16, #tpu.memory_space<vmem>>, vector<128x128xbf16>
    %cst_35 = arith.constant dense<0.000000e+00> : vector<8x128xf32>
    %67 = tpu.matmul %65, %66, %cst_35 {dimension_numbers = #tpu.dot_dimension_numbers<[1], [0], [0], [1], [0, 0, 1, 1], [], []>} : vector<8x128xbf16>, vector<128x128xbf16>, vector<8x128xf32> -> vector<8x128xf32>
    %68 = arith.addf %64, %67 : vector<8x128xf32>
    %cst_36 = arith.constant 0.000000e+00 : f32
    %69 = vector.broadcast %cst_36 : f32 to vector<8x128xf32>
    %70 = arith.maximumf %68, %69 : vector<8x128xf32>
    %71 = arith.truncf %70 : vector<8x128xf32> to vector<8x128xbf16>
    %72 = arith.index_cast %c4_i32 : i32 to index
    %c0_37 = arith.constant 0 : index
    %c0_38 = arith.constant 0 : index
    %73 = vector.load %arg9[%72, %c0_37, %c0_38] : memref<8x8x128xbf16, #tpu.memory_space<vmem>>, vector<1x8x128xbf16>
    %74 = vector.shape_cast %73 : vector<1x8x128xbf16> to vector<8x128xbf16>
    %75 = vector.shape_cast %71 : vector<8x128xbf16> to vector<1x8x128xbf16>
    tpu.vector_store %arg9[%72, %c0_37, %c0_38], %75 {strides = array<i32>} : memref<8x8x128xbf16, #tpu.memory_space<vmem>>, vector<1x8x128xbf16>,
    %c5_i32 = arith.constant 5 : i32
    %76 = arith.index_cast %c5_i32 : i32 to index
    %c0_39 = arith.constant 0 : index
    %c0_40 = arith.constant 0 : index
    %77 = vector.load %arg1[%76, %c0_39, %c0_40] : memref<8x8x128xbf16, #tpu.memory_space<vmem>>, vector<1x8x128xbf16>
    %78 = vector.shape_cast %77 : vector<1x8x128xbf16> to vector<8x128xbf16>
    %79 = arith.extf %78 : vector<8x128xbf16> to vector<8x128xf32>
    %80 = arith.truncf %70 : vector<8x128xf32> to vector<8x128xbf16>
    %c0_41 = arith.constant 0 : index
    %c0_42 = arith.constant 0 : index
    %81 = vector.load %arg2[%c0_41, %c0_42] : memref<128x128xbf16, #tpu.memory_space<vmem>>, vector<128x128xbf16>
    %cst_43 = arith.constant dense<0.000000e+00> : vector<8x128xf32>
    %82 = tpu.matmul %80, %81, %cst_43 {dimension_numbers = #tpu.dot_dimension_numbers<[1], [0], [0], [1], [0, 0, 1, 1], [], []>} : vector<8x128xbf16>, vector<128x128xbf16>, vector<8x128xf32> -> vector<8x128xf32>
    %83 = arith.addf %79, %82 : vector<8x128xf32>
    %cst_44 = arith.constant 0.000000e+00 : f32
    %84 = vector.broadcast %cst_44 : f32 to vector<8x128xf32>
    %85 = arith.maximumf %83, %84 : vector<8x128xf32>
    %86 = arith.truncf %85 : vector<8x128xf32> to vector<8x128xbf16>
    %87 = arith.index_cast %c5_i32 : i32 to index
    %c0_45 = arith.constant 0 : index
    %c0_46 = arith.constant 0 : index
    %88 = vector.load %arg9[%87, %c0_45, %c0_46] : memref<8x8x128xbf16, #tpu.memory_space<vmem>>, vector<1x8x128xbf16>
    %89 = vector.shape_cast %88 : vector<1x8x128xbf16> to vector<8x128xbf16>
    %90 = vector.shape_cast %86 : vector<8x128xbf16> to vector<1x8x128xbf16>
    tpu.vector_store %arg9[%87, %c0_45, %c0_46], %90 {strides = array<i32>} : memref<8x8x128xbf16, #tpu.memory_space<vmem>>, vector<1x8x128xbf16>,
    %c6_i32 = arith.constant 6 : i32
    %91 = arith.index_cast %c6_i32 : i32 to index
    %c0_47 = arith.constant 0 : index
    %c0_48 = arith.constant 0 : index
    %92 = vector.load %arg1[%91, %c0_47, %c0_48] : memref<8x8x128xbf16, #tpu.memory_space<vmem>>, vector<1x8x128xbf16>
    %93 = vector.shape_cast %92 : vector<1x8x128xbf16> to vector<8x128xbf16>
    %94 = arith.extf %93 : vector<8x128xbf16> to vector<8x128xf32>
    %95 = arith.truncf %85 : vector<8x128xf32> to vector<8x128xbf16>
    %c0_49 = arith.constant 0 : index
    %c0_50 = arith.constant 0 : index
    %96 = vector.load %arg2[%c0_49, %c0_50] : memref<128x128xbf16, #tpu.memory_space<vmem>>, vector<128x128xbf16>
    %cst_51 = arith.constant dense<0.000000e+00> : vector<8x128xf32>
    %97 = tpu.matmul %95, %96, %cst_51 {dimension_numbers = #tpu.dot_dimension_numbers<[1], [0], [0], [1], [0, 0, 1, 1], [], []>} : vector<8x128xbf16>, vector<128x128xbf16>, vector<8x128xf32> -> vector<8x128xf32>
    %98 = arith.addf %94, %97 : vector<8x128xf32>
    %cst_52 = arith.constant 0.000000e+00 : f32
    %99 = vector.broadcast %cst_52 : f32 to vector<8x128xf32>
    %100 = arith.maximumf %98, %99 : vector<8x128xf32>
    %101 = arith.truncf %100 : vector<8x128xf32> to vector<8x128xbf16>
    %102 = arith.index_cast %c6_i32 : i32 to index
    %c0_53 = arith.constant 0 : index
    %c0_54 = arith.constant 0 : index
    %103 = vector.load %arg9[%102, %c0_53, %c0_54] : memref<8x8x128xbf16, #tpu.memory_space<vmem>>, vector<1x8x128xbf16>
    %104 = vector.shape_cast %103 : vector<1x8x128xbf16> to vector<8x128xbf16>
    %105 = vector.shape_cast %101 : vector<8x128xbf16> to vector<1x8x128xbf16>
    tpu.vector_store %arg9[%102, %c0_53, %c0_54], %105 {strides = array<i32>} : memref<8x8x128xbf16, #tpu.memory_space<vmem>>, vector<1x8x128xbf16>,
    %c7_i32 = arith.constant 7 : i32
    %106 = arith.index_cast %c7_i32 : i32 to index
    %c0_55 = arith.constant 0 : index
    %c0_56 = arith.constant 0 : index
    %107 = vector.load %arg1[%106, %c0_55, %c0_56] : memref<8x8x128xbf16, #tpu.memory_space<vmem>>, vector<1x8x128xbf16>
    %108 = vector.shape_cast %107 : vector<1x8x128xbf16> to vector<8x128xbf16>
    %109 = arith.extf %108 : vector<8x128xbf16> to vector<8x128xf32>
    %110 = arith.truncf %100 : vector<8x128xf32> to vector<8x128xbf16>
    %c0_57 = arith.constant 0 : index
    %c0_58 = arith.constant 0 : index
    %111 = vector.load %arg2[%c0_57, %c0_58] : memref<128x128xbf16, #tpu.memory_space<vmem>>, vector<128x128xbf16>
    %cst_59 = arith.constant dense<0.000000e+00> : vector<8x128xf32>
    %112 = tpu.matmul %110, %111, %cst_59 {dimension_numbers = #tpu.dot_dimension_numbers<[1], [0], [0], [1], [0, 0, 1, 1], [], []>} : vector<8x128xbf16>, vector<128x128xbf16>, vector<8x128xf32> -> vector<8x128xf32>
    %113 = arith.addf %109, %112 : vector<8x128xf32>
    %cst_60 = arith.constant 0.000000e+00 : f32
    %114 = vector.broadcast %cst_60 : f32 to vector<8x128xf32>
    %115 = arith.maximumf %113, %114 : vector<8x128xf32>
    %116 = arith.truncf %115 : vector<8x128xf32> to vector<8x128xbf16>
    %117 = arith.index_cast %c7_i32 : i32 to index
    %c0_61 = arith.constant 0 : index
    %c0_62 = arith.constant 0 : index
    %118 = vector.load %arg9[%117, %c0_61, %c0_62] : memref<8x8x128xbf16, #tpu.memory_space<vmem>>, vector<1x8x128xbf16>
    %119 = vector.shape_cast %118 : vector<1x8x128xbf16> to vector<8x128xbf16>
    %120 = vector.shape_cast %116 : vector<8x128xbf16> to vector<1x8x128xbf16>
    tpu.vector_store %arg9[%117, %c0_61, %c0_62], %120 {strides = array<i32>} : memref<8x8x128xbf16, #tpu.memory_space<vmem>>, vector<1x8x128xbf16>,
    %c8_i32 = arith.constant 8 : i32
    %c0_i32_63 = arith.constant 0 : i32
    %c8_i32_64 = arith.constant 8 : i32
    %121 = arith.muli %c0_i32_63, %c8_i32_64 : i32
    %122 = tpu.assume_multiple %121, 8 : i32
    %123 = arith.index_cast %122 : i32 to index
    %c0_65 = arith.constant 0 : index
    %c0_66 = arith.constant 0 : index
    %124 = vector.load %arg9[%123, %c0_65, %c0_66] : memref<8x8x128xbf16, #tpu.memory_space<vmem>>, vector<8x8x128xbf16>
    %125 = vector.shape_cast %124 : vector<8x8x128xbf16> to vector<64x128xbf16>
    %c0_67 = arith.constant 0 : index
    %c0_68 = arith.constant 0 : index
    %126 = vector.load %arg3[%c0_67, %c0_68] : memref<128x128xbf16, #tpu.memory_space<vmem>>, vector<128x128xbf16>
    %cst_69 = arith.constant dense<0.000000e+00> : vector<64x128xf32>
    %127 = tpu.matmul %125, %126, %cst_69 {dimension_numbers = #tpu.dot_dimension_numbers<[1], [0], [0], [1], [0, 0, 1, 1], [], []>} : vector<64x128xbf16>, vector<128x128xbf16>, vector<64x128xf32> -> vector<64x128xf32>
    %c0_70 = arith.constant 0 : index
    %c0_71 = arith.constant 0 : index
    %128 = vector.load %arg5[%c0_70, %c0_71] : memref<1x128xf32, #tpu.memory_space<vmem>>, vector<1x128xf32>
    %129 = vector.broadcast %128 : vector<1x128xf32> to vector<64x128xf32>
    %130 = arith.addf %127, %129 : vector<64x128xf32>
    %131 = vector.shape_cast %130 : vector<64x128xf32> to vector<8x8x128xf32>
    %132 = arith.truncf %131 : vector<8x8x128xf32> to vector<8x8x128xbf16>
    %133 = arith.index_cast %122 : i32 to index
    %c0_72 = arith.constant 0 : index
    %c0_73 = arith.constant 0 : index
    %134 = vector.load %arg9[%133, %c0_72, %c0_73] : memref<8x8x128xbf16, #tpu.memory_space<vmem>>, vector<8x8x128xbf16>
    tpu.vector_store %arg9[%133, %c0_72, %c0_73], %132 {strides = array<i32>} : memref<8x8x128xbf16, #tpu.memory_space<vmem>>, vector<8x8x128xbf16>,
    %c1_i32_74 = arith.constant 1 : i32
    %cst_75 = arith.constant 0.000000e+00 : f32
    %135 = vector.broadcast %cst_75 : f32 to vector<8x128xf32>
    %c0_i32_76 = arith.constant 0 : i32
    %136 = arith.index_cast %c0_i32_76 : i32 to index
    %c0_77 = arith.constant 0 : index
    %c0_78 = arith.constant 0 : index
    %137 = vector.load %arg9[%136, %c0_77, %c0_78] : memref<8x8x128xbf16, #tpu.memory_space<vmem>>, vector<1x8x128xbf16>
    %138 = vector.shape_cast %137 : vector<1x8x128xbf16> to vector<8x128xbf16>
    %139 = arith.extf %138 : vector<8x128xbf16> to vector<8x128xf32>
    %140 = arith.truncf %135 : vector<8x128xf32> to vector<8x128xbf16>
    %c0_79 = arith.constant 0 : index
    %c0_80 = arith.constant 0 : index
    %141 = vector.load %arg4[%c0_79, %c0_80] : memref<128x128xbf16, #tpu.memory_space<vmem>>, vector<128x128xbf16>
    %cst_81 = arith.constant dense<0.000000e+00> : vector<8x128xf32>
    %142 = tpu.matmul %140, %141, %cst_81 {dimension_numbers = #tpu.dot_dimension_numbers<[1], [0], [0], [1], [0, 0, 1, 1], [], []>} : vector<8x128xbf16>, vector<128x128xbf16>, vector<8x128xf32> -> vector<8x128xf32>
    %143 = arith.addf %139, %142 : vector<8x128xf32>
    %cst_82 = arith.constant 0.000000e+00 : f32
    %144 = vector.broadcast %cst_82 : f32 to vector<8x128xf32>
    %145 = arith.maximumf %143, %144 : vector<8x128xf32>
    %c1_i32_83 = arith.constant 1 : i32
    %146 = arith.index_cast %c1_i32_83 : i32 to index
    %c0_84 = arith.constant 0 : index
    %c0_85 = arith.constant 0 : index
    %147 = vector.load %arg9[%146, %c0_84, %c0_85] : memref<8x8x128xbf16, #tpu.memory_space<vmem>>, vector<1x8x128xbf16>
    %148 = vector.shape_cast %147 : vector<1x8x128xbf16> to vector<8x128xbf16>
    %149 = arith.extf %148 : vector<8x128xbf16> to vector<8x128xf32>
    %150 = arith.truncf %145 : vector<8x128xf32> to vector<8x128xbf16>
    %c0_86 = arith.constant 0 : index
    %c0_87 = arith.constant 0 : index
    %151 = vector.load %arg4[%c0_86, %c0_87] : memref<128x128xbf16, #tpu.memory_space<vmem>>, vector<128x128xbf16>
    %cst_88 = arith.constant dense<0.000000e+00> : vector<8x128xf32>
    %152 = tpu.matmul %150, %151, %cst_88 {dimension_numbers = #tpu.dot_dimension_numbers<[1], [0], [0], [1], [0, 0, 1, 1], [], []>} : vector<8x128xbf16>, vector<128x128xbf16>, vector<8x128xf32> -> vector<8x128xf32>
    %153 = arith.addf %149, %152 : vector<8x128xf32>
    %cst_89 = arith.constant 0.000000e+00 : f32
    %154 = vector.broadcast %cst_89 : f32 to vector<8x128xf32>
    %155 = arith.maximumf %153, %154 : vector<8x128xf32>
    %c2_i32_90 = arith.constant 2 : i32
    %156 = arith.index_cast %c2_i32_90 : i32 to index
    %c0_91 = arith.constant 0 : index
    %c0_92 = arith.constant 0 : index
    %157 = vector.load %arg9[%156, %c0_91, %c0_92] : memref<8x8x128xbf16, #tpu.memory_space<vmem>>, vector<1x8x128xbf16>
    %158 = vector.shape_cast %157 : vector<1x8x128xbf16> to vector<8x128xbf16>
    %159 = arith.extf %158 : vector<8x128xbf16> to vector<8x128xf32>
    %160 = arith.truncf %155 : vector<8x128xf32> to vector<8x128xbf16>
    %c0_93 = arith.constant 0 : index
    %c0_94 = arith.constant 0 : index
    %161 = vector.load %arg4[%c0_93, %c0_94] : memref<128x128xbf16, #tpu.memory_space<vmem>>, vector<128x128xbf16>
    %cst_95 = arith.constant dense<0.000000e+00> : vector<8x128xf32>
    %162 = tpu.matmul %160, %161, %cst_95 {dimension_numbers = #tpu.dot_dimension_numbers<[1], [0], [0], [1], [0, 0, 1, 1], [], []>} : vector<8x128xbf16>, vector<128x128xbf16>, vector<8x128xf32> -> vector<8x128xf32>
    %163 = arith.addf %159, %162 : vector<8x128xf32>
    %cst_96 = arith.constant 0.000000e+00 : f32
    %164 = vector.broadcast %cst_96 : f32 to vector<8x128xf32>
    %165 = arith.maximumf %163, %164 : vector<8x128xf32>
    %c3_i32_97 = arith.constant 3 : i32
    %166 = arith.index_cast %c3_i32_97 : i32 to index
    %c0_98 = arith.constant 0 : index
    %c0_99 = arith.constant 0 : index
    %167 = vector.load %arg9[%166, %c0_98, %c0_99] : memref<8x8x128xbf16, #tpu.memory_space<vmem>>, vector<1x8x128xbf16>
    %168 = vector.shape_cast %167 : vector<1x8x128xbf16> to vector<8x128xbf16>
    %169 = arith.extf %168 : vector<8x128xbf16> to vector<8x128xf32>
    %170 = arith.truncf %165 : vector<8x128xf32> to vector<8x128xbf16>
    %c0_100 = arith.constant 0 : index
    %c0_101 = arith.constant 0 : index
    %171 = vector.load %arg4[%c0_100, %c0_101] : memref<128x128xbf16, #tpu.memory_space<vmem>>, vector<128x128xbf16>
    %cst_102 = arith.constant dense<0.000000e+00> : vector<8x128xf32>
    %172 = tpu.matmul %170, %171, %cst_102 {dimension_numbers = #tpu.dot_dimension_numbers<[1], [0], [0], [1], [0, 0, 1, 1], [], []>} : vector<8x128xbf16>, vector<128x128xbf16>, vector<8x128xf32> -> vector<8x128xf32>
    %173 = arith.addf %169, %172 : vector<8x128xf32>
    %cst_103 = arith.constant 0.000000e+00 : f32
    %174 = vector.broadcast %cst_103 : f32 to vector<8x128xf32>
    %175 = arith.maximumf %173, %174 : vector<8x128xf32>
    %c4_i32_104 = arith.constant 4 : i32
    %176 = arith.index_cast %c4_i32_104 : i32 to index
    %c0_105 = arith.constant 0 : index
    %c0_106 = arith.constant 0 : index
    %177 = vector.load %arg9[%176, %c0_105, %c0_106] : memref<8x8x128xbf16, #tpu.memory_space<vmem>>, vector<1x8x128xbf16>
    %178 = vector.shape_cast %177 : vector<1x8x128xbf16> to vector<8x128xbf16>
    %179 = arith.extf %178 : vector<8x128xbf16> to vector<8x128xf32>
    %180 = arith.truncf %175 : vector<8x128xf32> to vector<8x128xbf16>
    %c0_107 = arith.constant 0 : index
    %c0_108 = arith.constant 0 : index
    %181 = vector.load %arg4[%c0_107, %c0_108] : memref<128x128xbf16, #tpu.memory_space<vmem>>, vector<128x128xbf16>
    %cst_109 = arith.constant dense<0.000000e+00> : vector<8x128xf32>
    %182 = tpu.matmul %180, %181, %cst_109 {dimension_numbers = #tpu.dot_dimension_numbers<[1], [0], [0], [1], [0, 0, 1, 1], [], []>} : vector<8x128xbf16>, vector<128x128xbf16>, vector<8x128xf32> -> vector<8x128xf32>
    %183 = arith.addf %179, %182 : vector<8x128xf32>
    %cst_110 = arith.constant 0.000000e+00 : f32
    %184 = vector.broadcast %cst_110 : f32 to vector<8x128xf32>
    %185 = arith.maximumf %183, %184 : vector<8x128xf32>
    %c5_i32_111 = arith.constant 5 : i32
    %186 = arith.index_cast %c5_i32_111 : i32 to index
    %c0_112 = arith.constant 0 : index
    %c0_113 = arith.constant 0 : index
    %187 = vector.load %arg9[%186, %c0_112, %c0_113] : memref<8x8x128xbf16, #tpu.memory_space<vmem>>, vector<1x8x128xbf16>
    %188 = vector.shape_cast %187 : vector<1x8x128xbf16> to vector<8x128xbf16>
    %189 = arith.extf %188 : vector<8x128xbf16> to vector<8x128xf32>
    %190 = arith.truncf %185 : vector<8x128xf32> to vector<8x128xbf16>
    %c0_114 = arith.constant 0 : index
    %c0_115 = arith.constant 0 : index
    %191 = vector.load %arg4[%c0_114, %c0_115] : memref<128x128xbf16, #tpu.memory_space<vmem>>, vector<128x128xbf16>
    %cst_116 = arith.constant dense<0.000000e+00> : vector<8x128xf32>
    %192 = tpu.matmul %190, %191, %cst_116 {dimension_numbers = #tpu.dot_dimension_numbers<[1], [0], [0], [1], [0, 0, 1, 1], [], []>} : vector<8x128xbf16>, vector<128x128xbf16>, vector<8x128xf32> -> vector<8x128xf32>
    %193 = arith.addf %189, %192 : vector<8x128xf32>
    %cst_117 = arith.constant 0.000000e+00 : f32
    %194 = vector.broadcast %cst_117 : f32 to vector<8x128xf32>
    %195 = arith.maximumf %193, %194 : vector<8x128xf32>
    %c6_i32_118 = arith.constant 6 : i32
    %196 = arith.index_cast %c6_i32_118 : i32 to index
    %c0_119 = arith.constant 0 : index
    %c0_120 = arith.constant 0 : index
    %197 = vector.load %arg9[%196, %c0_119, %c0_120] : memref<8x8x128xbf16, #tpu.memory_space<vmem>>, vector<1x8x128xbf16>
    %198 = vector.shape_cast %197 : vector<1x8x128xbf16> to vector<8x128xbf16>
    %199 = arith.extf %198 : vector<8x128xbf16> to vector<8x128xf32>
    %200 = arith.truncf %195 : vector<8x128xf32> to vector<8x128xbf16>
    %c0_121 = arith.constant 0 : index
    %c0_122 = arith.constant 0 : index
    %201 = vector.load %arg4[%c0_121, %c0_122] : memref<128x128xbf16, #tpu.memory_space<vmem>>, vector<128x128xbf16>
    %cst_123 = arith.constant dense<0.000000e+00> : vector<8x128xf32>
    %202 = tpu.matmul %200, %201, %cst_123 {dimension_numbers = #tpu.dot_dimension_numbers<[1], [0], [0], [1], [0, 0, 1, 1], [], []>} : vector<8x128xbf16>, vector<128x128xbf16>, vector<8x128xf32> -> vector<8x128xf32>
    %203 = arith.addf %199, %202 : vector<8x128xf32>
    %cst_124 = arith.constant 0.000000e+00 : f32
    %204 = vector.broadcast %cst_124 : f32 to vector<8x128xf32>
    %205 = arith.maximumf %203, %204 : vector<8x128xf32>
    %c7_i32_125 = arith.constant 7 : i32
    %206 = arith.index_cast %c7_i32_125 : i32 to index
    %c0_126 = arith.constant 0 : index
    %c0_127 = arith.constant 0 : index
    %207 = vector.load %arg9[%206, %c0_126, %c0_127] : memref<8x8x128xbf16, #tpu.memory_space<vmem>>, vector<1x8x128xbf16>
    %208 = vector.shape_cast %207 : vector<1x8x128xbf16> to vector<8x128xbf16>
    %209 = arith.extf %208 : vector<8x128xbf16> to vector<8x128xf32>
    %210 = arith.truncf %205 : vector<8x128xf32> to vector<8x128xbf16>
    %c0_128 = arith.constant 0 : index
    %c0_129 = arith.constant 0 : index
    %211 = vector.load %arg4[%c0_128, %c0_129] : memref<128x128xbf16, #tpu.memory_space<vmem>>, vector<128x128xbf16>
    %cst_130 = arith.constant dense<0.000000e+00> : vector<8x128xf32>
    %212 = tpu.matmul %210, %211, %cst_130 {dimension_numbers = #tpu.dot_dimension_numbers<[1], [0], [0], [1], [0, 0, 1, 1], [], []>} : vector<8x128xbf16>, vector<128x128xbf16>, vector<8x128xf32> -> vector<8x128xf32>
    %213 = arith.addf %209, %212 : vector<8x128xf32>
    %cst_131 = arith.constant 0.000000e+00 : f32
    %214 = vector.broadcast %cst_131 : f32 to vector<8x128xf32>
    %215 = arith.maximumf %213, %214 : vector<8x128xf32>
    %c8_i32_132 = arith.constant 8 : i32
    %216 = arith.truncf %215 : vector<8x128xf32> to vector<8x128xbf16>
    %c0_133 = arith.constant 0 : index
    %c0_134 = arith.constant 0 : index
    %217 = vector.load %arg6[%c0_133, %c0_134] : memref<128x128xbf16, #tpu.memory_space<vmem>>, vector<128x128xbf16>
    %cst_135 = arith.constant dense<0.000000e+00> : vector<8x128xf32>
    %218 = tpu.matmul %216, %217, %cst_135 {dimension_numbers = #tpu.dot_dimension_numbers<[1], [0], [0], [1], [0, 0, 1, 1], [], []>} : vector<8x128xbf16>, vector<128x128xbf16>, vector<8x128xf32> -> vector<8x128xf32>
    %c0_136 = arith.constant 0 : index
    %c0_137 = arith.constant 0 : index
    %219 = vector.load %arg7[%c0_136, %c0_137] : memref<1x128xf32, #tpu.memory_space<vmem>>, vector<1x128xf32>
    %220 = vector.broadcast %219 : vector<1x128xf32> to vector<8x128xf32>
    %221 = arith.addf %218, %220 : vector<8x128xf32>
    %c0_138 = arith.constant 0 : index
    %c0_139 = arith.constant 0 : index
    %222 = vector.load %arg8[%c0_138, %c0_139] : memref<8x128xf32, #tpu.memory_space<vmem>>, vector<8x128xf32>
    tpu.vector_store %arg8[%c0_138, %c0_139], %221 {strides = array<i32>} : memref<8x128xf32, #tpu.memory_space<vmem>>, vector<8x128xf32>,
    return
  }
  func.func @transform_0(%arg0: i32) -> (i32, i32, i32) {
    %c0_i32 = arith.constant 0 : i32
    %c0_i32_0 = arith.constant 0 : i32
    %c0_i32_1 = arith.constant 0 : i32
    return %c0_i32, %arg0, %c0_i32_0 : i32, i32, i32
  }
  func.func @transform_1(%arg0: i32) -> (i32, i32) {
    %c0_i32 = arith.constant 0 : i32
    %c0_i32_0 = arith.constant 0 : i32
    %c0_i32_1 = arith.constant 0 : i32
    return %c0_i32, %c0_i32_0 : i32, i32
  }
  func.func @transform_2(%arg0: i32) -> (i32, i32) {
    %c0_i32 = arith.constant 0 : i32
    %c0_i32_0 = arith.constant 0 : i32
    %c0_i32_1 = arith.constant 0 : i32
    return %c0_i32, %c0_i32_0 : i32, i32
  }
  func.func @transform_3(%arg0: i32) -> (i32, i32) {
    %c0_i32 = arith.constant 0 : i32
    %c0_i32_0 = arith.constant 0 : i32
    %c0_i32_1 = arith.constant 0 : i32
    return %c0_i32, %c0_i32_0 : i32, i32
  }
  func.func @transform_4(%arg0: i32) -> (i32, i32) {
    %c0_i32 = arith.constant 0 : i32
    %c0_i32_0 = arith.constant 0 : i32
    %c0_i32_1 = arith.constant 0 : i32
    return %c0_i32, %c0_i32_0 : i32, i32
  }
  func.func @transform_5(%arg0: i32) -> (i32, i32) {
    %c0_i32 = arith.constant 0 : i32
    %c0_i32_0 = arith.constant 0 : i32
    %c0_i32_1 = arith.constant 0 : i32
    return %c0_i32, %c0_i32_0 : i32, i32
  }
  func.func @transform_6(%arg0: i32) -> (i32, i32) {
    %c0_i32 = arith.constant 0 : i32
    %c0_i32_0 = arith.constant 0 : i32
    %c0_i32_1 = arith.constant 0 : i32
    return %c0_i32, %c0_i32_0 : i32, i32
  }
  func.func @transform_7(%arg0: i32) -> (i32, i32) {
    %c0_i32 = arith.constant 0 : i32
    %c0_i32_0 = arith.constant 0 : i32
    return %arg0, %c0_i32 : i32, i32
  }
}

</mosaic_0001>

<llo_original>
// kernel: tpu_custom_call.1
$region0: #{tpu_custom_call.1}
  #allocation0 [shape = 'u32[]', space=smem, size = 0x4, offset = 0x4, fixed_abs, tag = 'smem constant byte address 0x4 - core index']
  #allocation1 [shape = 'u32[72,128]{1,0:T(1,128)}', space=vmem, size = 0x9000, scoped, tag = 'internal scratch']
  #allocation2 [shape = 'bf16[8,8,128]{2,1,0:T(8,128)(2,1)}', space=vmem, size = 0x4000, scoped, tag = 'scratch operand']
  %s0 = inlined_call_operand.hbm [shape: bf16[8,8,128], index: 0, kind: input, shape index: {}]
  %s1 = inlined_call_operand.hbm [shape: bf16[128,128], index: 1, kind: input, shape index: {}]
  %s2 = inlined_call_operand.hbm [shape: bf16[128,128], index: 2, kind: input, shape index: {}]
  %s3 = inlined_call_operand.hbm [shape: bf16[128,128], index: 3, kind: input, shape index: {}]
  %s4 = inlined_call_operand.vmem [shape: f32[1,128], index: 4, kind: input, shape index: {}]
  %s5 = inlined_call_operand.hbm [shape: bf16[128,128], index: 5, kind: input, shape index: {}]
  %s6 = inlined_call_operand.vmem [shape: f32[1,128], index: 6, kind: input, shape index: {}]
  %s7 = inlined_call_operand.hbm [shape: f32[8,128], index: 7, kind: output, shape index: {}]
  %s8 = sld [smem:[#allocation0]]
  $region58: #{tpu_custom_call.1} parent=0
    _
  %s10 = ssub.s32 1, %s8
  %s11 = scalar_select 0, %s10, %s8
  $region1: #{tpu_custom_call.1} parent=0
    #allocation3 [shape = 'u8[16384]{0}', space=vmem, size = 0x4000, scoped, tag = 'input window, operand 0, single buffered']
    #allocation4 [shape = 's32[1]{0}', space=sflag, size = 0x4, scoped, tag = 'scoped memory for tpu_custom_call.1']
    #allocation5 [shape = 's32[1]{0}', space=sflag, size = 0x4, scoped, tag = 'scoped memory for tpu_custom_call.1']
    #allocation6 [shape = 'u8[32768]{0}', space=vmem, size = 0x8000, scoped, tag = 'input window, operand 1, single buffered']
    #allocation7 [shape = 's32[1]{0}', space=sflag, size = 0x4, scoped, tag = 'scoped memory for tpu_custom_call.1']
    #allocation8 [shape = 'u8[32768]{0}', space=vmem, size = 0x8000, scoped, tag = 'input window, operand 2, single buffered']
    #allocation9 [shape = 'u8[32768]{0}', space=vmem, size = 0x8000, scoped, tag = 'input window, operand 3, single buffered']
    #allocation10 [shape = 's32[1]{0}', space=sflag, size = 0x4, scoped, tag = 'scoped memory for tpu_custom_call.1']
    #allocation11 [shape = 'u8[32768]{0}', space=vmem, size = 0x8000, scoped, tag = 'input window, operand 5, single buffered']
    #allocation12 [shape = 'u8[4096]{0}', space=vmem, size = 0x1000, scoped, tag = 'output window, operand 0, single buffered']
    %12 = vsyncpa [#allocation4], 0
    %13 = vsyncpa [#allocation7], 0
    %14 = vsyncpa [#allocation10], 0
    %15 = vsyncpa [#allocation5], 0
    // Predicated region
    $region2: #{tpu_custom_call.1} parent=1 // pred_check
      _
    $region3: #{tpu_custom_call.1} parent=1 // pred_check_branch
      %17 = sbr.rel (0) target = $region5
    $region4: #{tpu_custom_call.1} parent=1 // pred_region
      %19 = vsyncadd [#allocation4], 0
      %s20 = sshll.u32 %s0, 4
      %s21 = int_to_ptr.hbm [resolvable:$true] %s20
      %s22 = sshll.u32 [#allocation3], 4
      %s23 = int_to_ptr.vmem [resolvable:$true] %s22
      %28 = dma.hbm_to_vmem [thread:$0]  %s21, 512, %s23, [#allocation4], 64, 64, 4
    $region5: #{tpu_custom_call.1} parent=1 // pred_fallthru
      _
    // Predicated region
    $region6: #{tpu_custom_call.1} parent=1 // pred_check
      _
    $region7: #{tpu_custom_call.1} parent=1 // pred_check_branch
      %30 = sbr.rel (0) target = $region9
    $region8: #{tpu_custom_call.1} parent=1 // pred_region
      %32 = vsyncadd [#allocation7], 0
      %s33 = sshll.u32 %s1, 4
      %s34 = int_to_ptr.hbm [resolvable:$true] %s33
      %s35 = sshll.u32 [#allocation6], 4
      %s36 = int_to_ptr.vmem [resolvable:$true] %s35
      %41 = dma.hbm_to_vmem [thread:$0]  %s34, 1024, %s36, [#allocation7], 64, 64, 4
    $region9: #{tpu_custom_call.1} parent=1 // pred_fallthru
      _
    // Predicated region
    $region10: #{tpu_custom_call.1} parent=1 // pred_check
      _
    $region11: #{tpu_custom_call.1} parent=1 // pred_check_branch
      %43 = sbr.rel (0) target = $region13
    $region12: #{tpu_custom_call.1} parent=1 // pred_region
      %45 = vsyncadd [#allocation7], 0
      %s46 = sshll.u32 %s2, 4
      %s47 = int_to_ptr.hbm [resolvable:$true] %s46
      %s48 = sshll.u32 [#allocation8], 4
      %s49 = int_to_ptr.vmem [resolvable:$true] %s48
      %54 = dma.hbm_to_vmem [thread:$0]  %s47, 1024, %s49, [#allocation7], 64, 64, 4
    $region13: #{tpu_custom_call.1} parent=1 // pred_fallthru
      _
    // Predicated region
    $region14: #{tpu_custom_call.1} parent=1 // pred_check
      _
    $region15: #{tpu_custom_call.1} parent=1 // pred_check_branch
      %56 = sbr.rel (0) target = $region17
    $region16: #{tpu_custom_call.1} parent=1 // pred_region
      %58 = vsyncadd [#allocation10], 0
      %s59 = sshll.u32 %s3, 4
      %s60 = int_to_ptr.hbm [resolvable:$true] %s59
      %s61 = sshll.u32 [#allocation9], 4
      %s62 = int_to_ptr.vmem [resolvable:$true] %s61
      %67 = dma.hbm_to_vmem [thread:$0]  %s60, 1024, %s62, [#allocation10], 64, 64, 4
    $region17: #{tpu_custom_call.1} parent=1 // pred_fallthru
      _
    // Predicated region
    $region18: #{tpu_custom_call.1} parent=1 // pred_check
      _
    $region19: #{tpu_custom_call.1} parent=1 // pred_check_branch
      %69 = sbr.rel (0) target = $region21
    $region20: #{tpu_custom_call.1} parent=1 // pred_region
      _
    $region21: #{tpu_custom_call.1} parent=1 // pred_fallthru
      _
    // Predicated region
    $region22: #{tpu_custom_call.1} parent=1 // pred_check
      _
    $region23: #{tpu_custom_call.1} parent=1 // pred_check_branch
      %71 = sbr.rel (0) target = $region25
    $region24: #{tpu_custom_call.1} parent=1 // pred_region
      %73 = vsyncadd [#allocation10], 0
      %s74 = sshll.u32 %s5, 4
      %s75 = int_to_ptr.hbm [resolvable:$true] %s74
      %s76 = sshll.u32 [#allocation11], 4
      %s77 = int_to_ptr.vmem [resolvable:$true] %s76
      %82 = dma.hbm_to_vmem [thread:$0]  %s75, 1024, %s77, [#allocation10], 64, 64, 4
    $region25: #{tpu_custom_call.1} parent=1 // pred_fallthru
      _
    // Predicated region
    $region26: #{tpu_custom_call.1} parent=1 // pred_check
      _
    $region27: #{tpu_custom_call.1} parent=1 // pred_check_branch
      %84 = sbr.rel (0) target = $region29
    $region28: #{tpu_custom_call.1} parent=1 // pred_region
      _
    $region29: #{tpu_custom_call.1} parent=1 // pred_fallthru
      _
    // Predicated region
    $region30: #{tpu_custom_call.1} parent=1 // pred_check
      _
    $region31: #{tpu_custom_call.1} parent=1 // pred_check_branch
      %86 = sbr.rel (0) target = $region33
    $region32: #{tpu_custom_call.1} parent=1 // pred_region
      %88 = dma.done [#allocation4], 512
    $region33: #{tpu_custom_call.1} parent=1 // pred_fallthru
      _
    // Predicated region
    $region34: #{tpu_custom_call.1} parent=1 // pred_check
      _
    $region35: #{tpu_custom_call.1} parent=1 // pred_check_branch
      %90 = sbr.rel (0) target = $region37
    $region36: #{tpu_custom_call.1} parent=1 // pred_region
      %92 = dma.done [#allocation7], 1024
    $region37: #{tpu_custom_call.1} parent=1 // pred_fallthru
      _
    // Predicated region
    $region38: #{tpu_custom_call.1} parent=1 // pred_check
      _
    $region39: #{tpu_custom_call.1} parent=1 // pred_check_branch
      %94 = sbr.rel (0) target = $region41
    $region40: #{tpu_custom_call.1} parent=1 // pred_region
      %96 = dma.done [#allocation7], 1024
    $region41: #{tpu_custom_call.1} parent=1 // pred_fallthru
      _
    // Predicated region
    $region42: #{tpu_custom_call.1} parent=1 // pred_check
      _
    $region43: #{tpu_custom_call.1} parent=1 // pred_check_branch
      %98 = sbr.rel (0) target = $region45
    $region44: #{tpu_custom_call.1} parent=1 // pred_region
      %100 = dma.done [#allocation10], 1024
    $region45: #{tpu_custom_call.1} parent=1 // pred_fallthru
      _
    // Predicated region
    $region46: #{tpu_custom_call.1} parent=1 // pred_check
      _
    $region47: #{tpu_custom_call.1} parent=1 // pred_check_branch
      %102 = sbr.rel (0) target = $region49
    $region48: #{tpu_custom_call.1} parent=1 // pred_region
      %104 = dma.done [#allocation10], 1024
    $region49: #{tpu_custom_call.1} parent=1 // pred_fallthru
      _
    %v106 = vld [vmem:[#allocation3] sm:$0xf]
    %v107 = vunpack.c.l.bf16 %v106
    %v108 = vld [vmem:[#allocation6] sm:$0xf]
    %v109 = vld [vmem:[#allocation6 + $0x4] sm:$0xf]
    %v110 = vld [vmem:[#allocation6 + $0x8] sm:$0xf]
    %v111 = vld [vmem:[#allocation6 + $0xc] sm:$0xf]
    %v112 = vld [vmem:[#allocation6 + $0x10] sm:$0xf]
    %v113 = vld [vmem:[#allocation6 + $0x14] sm:$0xf]
    %v114 = vld [vmem:[#allocation6 + $0x18] sm:$0xf]
    %v115 = vld [vmem:[#allocation6 + $0x1c] sm:$0xf]
    %v116 = vld [vmem:[#allocation6 + $0x20] sm:$0xf]
    %v117 = vld [vmem:[#allocation6 + $0x24] sm:$0xf]
    %v118 = vld [vmem:[#allocation6 + $0x28] sm:$0xf]
    %v119 = vld [vmem:[#allocation6 + $0x2c] sm:$0xf]
    %v120 = vld [vmem:[#allocation6 + $0x30] sm:$0xf]
    %v121 = vld [vmem:[#allocation6 + $0x34] sm:$0xf]
    %v122 = vld [vmem:[#allocation6 + $0x38] sm:$0xf]
    %v123 = vld [vmem:[#allocation6 + $0x3c] sm:$0xf]
    %v140 = vunpack.c.l.b16 %v108
    %v141 = vunpack.c.l.b16 %v109
    %v142 = vunpack.c.l.b16 %v110
    %v143 = vunpack.c.l.b16 %v111
    %v144 = vunpack.c.l.b16 %v112
    %v145 = vunpack.c.l.b16 %v113
    %v146 = vunpack.c.l.b16 %v114
    %v147 = vunpack.c.l.b16 %v115
    %v148 = vunpack.c.l.b16 %v116
    %v149 = vunpack.c.l.b16 %v117
    %v150 = vunpack.c.l.b16 %v118
    %v151 = vunpack.c.l.b16 %v119
    %v152 = vunpack.c.l.b16 %v120
    %v153 = vunpack.c.l.b16 %v121
    %v154 = vunpack.c.l.b16 %v122
    %v155 = vunpack.c.l.b16 %v123
    %v156 = vpack.c.b16 %v141, %v140
    %v157 = vpack.c.b16 %v143, %v142
    %v158 = vpack.c.b16 %v145, %v144
    %v159 = vpack.c.b16 %v147, %v146
    %v160 = vpack.c.b16 %v149, %v148
    %v161 = vpack.c.b16 %v151, %v150
    %v162 = vpack.c.b16 %v153, %v152
    %v163 = vpack.c.b16 %v155, %v154
    %172 = vmatpush.bf16.msra.mxu0 %v163
    %173 = vmatpush.bf16.msra.mxu0 %v162
    %174 = vmatpush.bf16.msra.mxu0 %v161
    %175 = vmatpush.bf16.msra.mxu0 %v160
    %176 = vmatpush.bf16.msra.mxu0 %v159
    %177 = vmatpush.bf16.msra.mxu0 %v158
    %178 = vmatpush.bf16.msra.mxu0 %v157
    %179 = vmatpush.bf16.msra.mxu0 %v156
    %180 = vmatmul.bf16.gmra.mxu0 0
    %v181 = vpop.f32.mrf.mxu0
    %v182 = vadd.f32 0.0, %v181
    %v183 = vpop.f32.mrf.mxu0
    %184 = vdwg.mxu0
    %v185 = vadd.f32 %v107, %v182
    %v186 = vmax.f32 %v185, 0.0
    %v187 = vpack.c.bf16 %v186, %v186
    %188 = vst [vmem:[#allocation2] sm:$0xf] %v187
    %s189 = scalar_lea.vmem [#allocation3], 4
    %v190 = vld [vmem:[%s189] sm:$0xf]
    %v191 = vunpack.c.l.bf16 %v190
    %v192 = vld [vmem:[#allocation6] sm:$0xf]
    %v193 = vld [vmem:[#allocation6 + $0x4] sm:$0xf]
    %v194 = vld [vmem:[#allocation6 + $0x8] sm:$0xf]
    %v195 = vld [vmem:[#allocation6 + $0xc] sm:$0xf]
    %v196 = vld [vmem:[#allocation6 + $0x10] sm:$0xf]
    %v197 = vld [vmem:[#allocation6 + $0x14] sm:$0xf]
    %v198 = vld [vmem:[#allocation6 + $0x18] sm:$0xf]
    %v199 = vld [vmem:[#allocation6 + $0x1c] sm:$0xf]
    %v200 = vld [vmem:[#allocation6 + $0x20] sm:$0xf]
    %v201 = vld [vmem:[#allocation6 + $0x24] sm:$0xf]
    %v202 = vld [vmem:[#allocation6 + $0x28] sm:$0xf]
    %v203 = vld [vmem:[#allocation6 + $0x2c] sm:$0xf]
    %v204 = vld [vmem:[#allocation6 + $0x30] sm:$0xf]
    %v205 = vld [vmem:[#allocation6 + $0x34] sm:$0xf]
    %v206 = vld [vmem:[#allocation6 + $0x38] sm:$0xf]
    %v207 = vld [vmem:[#allocation6 + $0x3c] sm:$0xf]
    %v224 = vunpack.c.l.b16 %v192
    %v225 = vunpack.c.l.b16 %v193
    %v226 = vunpack.c.l.b16 %v194
    %v227 = vunpack.c.l.b16 %v195
    %v228 = vunpack.c.l.b16 %v196
    %v229 = vunpack.c.l.b16 %v197
    %v230 = vunpack.c.l.b16 %v198
    %v231 = vunpack.c.l.b16 %v199
    %v232 = vunpack.c.l.b16 %v200
    %v233 = vunpack.c.l.b16 %v201
    %v234 = vunpack.c.l.b16 %v202
    %v235 = vunpack.c.l.b16 %v203
    %v236 = vunpack.c.l.b16 %v204
    %v237 = vunpack.c.l.b16 %v205
    %v238 = vunpack.c.l.b16 %v206
    %v239 = vunpack.c.l.b16 %v207
    %v240 = vpack.c.b16 %v225, %v224
    %v241 = vpack.c.b16 %v227, %v226
    %v242 = vpack.c.b16 %v229, %v228
    %v243 = vpack.c.b16 %v231, %v230
    %v244 = vpack.c.b16 %v233, %v232
    %v245 = vpack.c.b16 %v235, %v234
    %v246 = vpack.c.b16 %v237, %v236
    %v247 = vpack.c.b16 %v239, %v238
    %256 = vmatpush.bf16.msra.mxu0 %v247
    %257 = vmatpush.bf16.msra.mxu0 %v246
    %258 = vmatpush.bf16.msra.mxu0 %v245
    %259 = vmatpush.bf16.msra.mxu0 %v244
    %260 = vmatpush.bf16.msra.mxu0 %v243
    %261 = vmatpush.bf16.msra.mxu0 %v242
    %262 = vmatpush.bf16.msra.mxu0 %v241
    %263 = vmatpush.bf16.msra.mxu0 %v240
    %264 = vmatmul.bf16.gmra.mxu0 %v187
    %v265 = vpop.f32.mrf.mxu0
    %v266 = vadd.f32 0.0, %v265
    %v267 = vpop.f32.mrf.mxu0
    %268 = vdwg.mxu0
    %v269 = vadd.f32 %v191, %v266
    %v270 = vmax.f32 %v269, 0.0
    %v271 = vpack.c.bf16 %v270, %v270
    %s272 = scalar_lea.vmem [#allocation2], 4
    %273 = vst [vmem:[%s272] sm:$0xf] %v271
    %s274 = scalar_lea.vmem [#allocation3], 8
    %v275 = vld [vmem:[%s274] sm:$0xf]
    %v276 = vunpack.c.l.bf16 %v275
    %v277 = vld [vmem:[#allocation6] sm:$0xf]
    %v278 = vld [vmem:[#allocation6 + $0x4] sm:$0xf]
    %v279 = vld [vmem:[#allocation6 + $0x8] sm:$0xf]
    %v280 = vld [vmem:[#allocation6 + $0xc] sm:$0xf]
    %v281 = vld [vmem:[#allocation6 + $0x10] sm:$0xf]
    %v282 = vld [vmem:[#allocation6 + $0x14] sm:$0xf]
    %v283 = vld [vmem:[#allocation6 + $0x18] sm:$0xf]
    %v284 = vld [vmem:[#allocation6 + $0x1c] sm:$0xf]
    %v285 = vld [vmem:[#allocation6 + $0x20] sm:$0xf]
    %v286 = vld [vmem:[#allocation6 + $0x24] sm:$0xf]
    %v287 = vld [vmem:[#allocation6 + $0x28] sm:$0xf]
    %v288 = vld [vmem:[#allocation6 + $0x2c] sm:$0xf]
    %v289 = vld [vmem:[#allocation6 + $0x30] sm:$0xf]
    %v290 = vld [vmem:[#allocation6 + $0x34] sm:$0xf]
    %v291 = vld [vmem:[#allocation6 + $0x38] sm:$0xf]
    %v292 = vld [vmem:[#allocation6 + $0x3c] sm:$0xf]
    %v309 = vunpack.c.l.b16 %v277
    %v310 = vunpack.c.l.b16 %v278
    %v311 = vunpack.c.l.b16 %v279
    %v312 = vunpack.c.l.b16 %v280
    %v313 = vunpack.c.l.b16 %v281
    %v314 = vunpack.c.l.b16 %v282
    %v315 = vunpack.c.l.b16 %v283
    %v316 = vunpack.c.l.b16 %v284
    %v317 = vunpack.c.l.b16 %v285
    %v318 = vunpack.c.l.b16 %v286
    %v319 = vunpack.c.l.b16 %v287
    %v320 = vunpack.c.l.b16 %v288
    %v321 = vunpack.c.l.b16 %v289
    %v322 = vunpack.c.l.b16 %v290
    %v323 = vunpack.c.l.b16 %v291
    %v324 = vunpack.c.l.b16 %v292
    %v325 = vpack.c.b16 %v310, %v309
    %v326 = vpack.c.b16 %v312, %v311
    %v327 = vpack.c.b16 %v314, %v313
    %v328 = vpack.c.b16 %v316, %v315
    %v329 = vpack.c.b16 %v318, %v317
    %v330 = vpack.c.b16 %v320, %v319
    %v331 = vpack.c.b16 %v322, %v321
    %v332 = vpack.c.b16 %v324, %v323
    %341 = vmatpush.bf16.msra.mxu0 %v332
    %342 = vmatpush.bf16.msra.mxu0 %v331
    %343 = vmatpush.bf16.msra.mxu0 %v330
    %344 = vmatpush.bf16.msra.mxu0 %v329
    %345 = vmatpush.bf16.msra.mxu0 %v328
    %346 = vmatpush.bf16.msra.mxu0 %v327
    %347 = vmatpush.bf16.msra.mxu0 %v326
    %348 = vmatpush.bf16.msra.mxu0 %v325
    %349 = vmatmul.bf16.gmra.mxu0 %v271
    %v350 = vpop.f32.mrf.mxu0
    %v351 = vadd.f32 0.0, %v350
    %v352 = vpop.f32.mrf.mxu0
    %353 = vdwg.mxu0
    %v354 = vadd.f32 %v276, %v351
    %v355 = vmax.f32 %v354, 0.0
    %v356 = vpack.c.bf16 %v355, %v355
    %s357 = scalar_lea.vmem [#allocation2], 8
    %358 = vst [vmem:[%s357] sm:$0xf] %v356
    %s359 = scalar_lea.vmem [#allocation3], 12
    %v360 = vld [vmem:[%s359] sm:$0xf]
    %v361 = vunpack.c.l.bf16 %v360
    %v362 = vld [vmem:[#allocation6] sm:$0xf]
    %v363 = vld [vmem:[#allocation6 + $0x4] sm:$0xf]
    %v364 = vld [vmem:[#allocation6 + $0x8] sm:$0xf]
    %v365 = vld [vmem:[#allocation6 + $0xc] sm:$0xf]
    %v366 = vld [vmem:[#allocation6 + $0x10] sm:$0xf]
    %v367 = vld [vmem:[#allocation6 + $0x14] sm:$0xf]
    %v368 = vld [vmem:[#allocation6 + $0x18] sm:$0xf]
    %v369 = vld [vmem:[#allocation6 + $0x1c] sm:$0xf]
    %v370 = vld [vmem:[#allocation6 + $0x20] sm:$0xf]
    %v371 = vld [vmem:[#allocation6 + $0x24] sm:$0xf]
    %v372 = vld [vmem:[#allocation6 + $0x28] sm:$0xf]
    %v373 = vld [vmem:[#allocation6 + $0x2c] sm:$0xf]
    %v374 = vld [vmem:[#allocation6 + $0x30] sm:$0xf]
    %v375 = vld [vmem:[#allocation6 + $0x34] sm:$0xf]
    %v376 = vld [vmem:[#allocation6 + $0x38] sm:$0xf]
    %v377 = vld [vmem:[#allocation6 + $0x3c] sm:$0xf]
    %v394 = vunpack.c.l.b16 %v362
    %v395 = vunpack.c.l.b16 %v363
    %v396 = vunpack.c.l.b16 %v364
    %v397 = vunpack.c.l.b16 %v365
    %v398 = vunpack.c.l.b16 %v366
    %v399 = vunpack.c.l.b16 %v367
    %v400 = vunpack.c.l.b16 %v368
    %v401 = vunpack.c.l.b16 %v369
    %v402 = vunpack.c.l.b16 %v370
    %v403 = vunpack.c.l.b16 %v371
    %v404 = vunpack.c.l.b16 %v372
    %v405 = vunpack.c.l.b16 %v373
    %v406 = vunpack.c.l.b16 %v374
    %v407 = vunpack.c.l.b16 %v375
    %v408 = vunpack.c.l.b16 %v376
    %v409 = vunpack.c.l.b16 %v377
    %v410 = vpack.c.b16 %v395, %v394
    %v411 = vpack.c.b16 %v397, %v396
    %v412 = vpack.c.b16 %v399, %v398
    %v413 = vpack.c.b16 %v401, %v400
    %v414 = vpack.c.b16 %v403, %v402
    %v415 = vpack.c.b16 %v405, %v404
    %v416 = vpack.c.b16 %v407, %v406
    %v417 = vpack.c.b16 %v409, %v408
    %426 = vmatpush.bf16.msra.mxu0 %v417
    %427 = vmatpush.bf16.msra.mxu0 %v416
    %428 = vmatpush.bf16.msra.mxu0 %v415
    %429 = vmatpush.bf16.msra.mxu0 %v414
    %430 = vmatpush.bf16.msra.mxu0 %v413
    %431 = vmatpush.bf16.msra.mxu0 %v412
    %432 = vmatpush.bf16.msra.mxu0 %v411
    %433 = vmatpush.bf16.msra.mxu0 %v410
    %434 = vmatmul.bf16.gmra.mxu0 %v356
    %v435 = vpop.f32.mrf.mxu0
    %v436 = vadd.f32 0.0, %v435
    %v437 = vpop.f32.mrf.mxu0
    %438 = vdwg.mxu0
    %v439 = vadd.f32 %v361, %v436
    %v440 = vmax.f32 %v439, 0.0
    %v441 = vpack.c.bf16 %v440, %v440
    %s442 = scalar_lea.vmem [#allocation2], 12
    %443 = vst [vmem:[%s442] sm:$0xf] %v441
    %s444 = scalar_lea.vmem [#allocation3], 16
    %v445 = vld [vmem:[%s444] sm:$0xf]
    %v446 = vunpack.c.l.bf16 %v445
    %v447 = vld [vmem:[#allocation6] sm:$0xf]
    %v448 = vld [vmem:[#allocation6 + $0x4] sm:$0xf]
    %v449 = vld [vmem:[#allocation6 + $0x8] sm:$0xf]
    %v450 = vld [vmem:[#allocation6 + $0xc] sm:$0xf]
    %v451 = vld [vmem:[#allocation6 + $0x10] sm:$0xf]
    %v452 = vld [vmem:[#allocation6 + $0x14] sm:$0xf]
    %v453 = vld [vmem:[#allocation6 + $0x18] sm:$0xf]
    %v454 = vld [vmem:[#allocation6 + $0x1c] sm:$0xf]
    %v455 = vld [vmem:[#allocation6 + $0x20] sm:$0xf]
    %v456 = vld [vmem:[#allocation6 + $0x24] sm:$0xf]
    %v457 = vld [vmem:[#allocation6 + $0x28] sm:$0xf]
    %v458 = vld [vmem:[#allocation6 + $0x2c] sm:$0xf]
    %v459 = vld [vmem:[#allocation6 + $0x30] sm:$0xf]
    %v460 = vld [vmem:[#allocation6 + $0x34] sm:$0xf]
    %v461 = vld [vmem:[#allocation6 + $0x38] sm:$0xf]
    %v462 = vld [vmem:[#allocation6 + $0x3c] sm:$0xf]
    %v479 = vunpack.c.l.b16 %v447
    %v480 = vunpack.c.l.b16 %v448
    %v481 = vunpack.c.l.b16 %v449
    %v482 = vunpack.c.l.b16 %v450
    %v483 = vunpack.c.l.b16 %v451
    %v484 = vunpack.c.l.b16 %v452
    %v485 = vunpack.c.l.b16 %v453
    %v486 = vunpack.c.l.b16 %v454
    %v487 = vunpack.c.l.b16 %v455
    %v488 = vunpack.c.l.b16 %v456
    %v489 = vunpack.c.l.b16 %v457
    %v490 = vunpack.c.l.b16 %v458
    %v491 = vunpack.c.l.b16 %v459
    %v492 = vunpack.c.l.b16 %v460
    %v493 = vunpack.c.l.b16 %v461
    %v494 = vunpack.c.l.b16 %v462
    %v495 = vpack.c.b16 %v480, %v479
    %v496 = vpack.c.b16 %v482, %v481
    %v497 = vpack.c.b16 %v484, %v483
    %v498 = vpack.c.b16 %v486, %v485
    %v499 = vpack.c.b16 %v488, %v487
    %v500 = vpack.c.b16 %v490, %v489
    %v501 = vpack.c.b16 %v492, %v491
    %v502 = vpack.c.b16 %v494, %v493
    %511 = vmatpush.bf16.msra.mxu0 %v502
    %512 = vmatpush.bf16.msra.mxu0 %v501
    %513 = vmatpush.bf16.msra.mxu0 %v500
    %514 = vmatpush.bf16.msra.mxu0 %v499
    %515 = vmatpush.bf16.msra.mxu0 %v498
    %516 = vmatpush.bf16.msra.mxu0 %v497
    %517 = vmatpush.bf16.msra.mxu0 %v496
    %518 = vmatpush.bf16.msra.mxu0 %v495
    %519 = vmatmul.bf16.gmra.mxu0 %v441
    %v520 = vpop.f32.mrf.mxu0
    %v521 = vadd.f32 0.0, %v520
    %v522 = vpop.f32.mrf.mxu0
    %523 = vdwg.mxu0
    %v524 = vadd.f32 %v446, %v521
    %v525 = vmax.f32 %v524, 0.0
    %v526 = vpack.c.bf16 %v525, %v525
    %s527 = scalar_lea.vmem [#allocation2], 16
    %528 = vst [vmem:[%s527] sm:$0xf] %v526
    %s529 = scalar_lea.vmem [#allocation3], 20
    %v530 = vld [vmem:[%s529] sm:$0xf]
    %v531 = vunpack.c.l.bf16 %v530
    %v532 = vld [vmem:[#allocation6] sm:$0xf]
    %v533 = vld [vmem:[#allocation6 + $0x4] sm:$0xf]
    %v534 = vld [vmem:[#allocation6 + $0x8] sm:$0xf]
    %v535 = vld [vmem:[#allocation6 + $0xc] sm:$0xf]
    %v536 = vld [vmem:[#allocation6 + $0x10] sm:$0xf]
    %v537 = vld [vmem:[#allocation6 + $0x14] sm:$0xf]
    %v538 = vld [vmem:[#allocation6 + $0x18] sm:$0xf]
    %v539 = vld [vmem:[#allocation6 + $0x1c] sm:$0xf]
    %v540 = vld [vmem:[#allocation6 + $0x20] sm:$0xf]
    %v541 = vld [vmem:[#allocation6 + $0x24] sm:$0xf]
    %v542 = vld [vmem:[#allocation6 + $0x28] sm:$0xf]
    %v543 = vld [vmem:[#allocation6 + $0x2c] sm:$0xf]
    %v544 = vld [vmem:[#allocation6 + $0x30] sm:$0xf]
    %v545 = vld [vmem:[#allocation6 + $0x34] sm:$0xf]
    %v546 = vld [vmem:[#allocation6 + $0x38] sm:$0xf]
    %v547 = vld [vmem:[#allocation6 + $0x3c] sm:$0xf]
    %v564 = vunpack.c.l.b16 %v532
    %v565 = vunpack.c.l.b16 %v533
    %v566 = vunpack.c.l.b16 %v534
    %v567 = vunpack.c.l.b16 %v535
    %v568 = vunpack.c.l.b16 %v536
    %v569 = vunpack.c.l.b16 %v537
    %v570 = vunpack.c.l.b16 %v538
    %v571 = vunpack.c.l.b16 %v539
    %v572 = vunpack.c.l.b16 %v540
    %v573 = vunpack.c.l.b16 %v541
    %v574 = vunpack.c.l.b16 %v542
    %v575 = vunpack.c.l.b16 %v543
    %v576 = vunpack.c.l.b16 %v544
    %v577 = vunpack.c.l.b16 %v545
    %v578 = vunpack.c.l.b16 %v546
    %v579 = vunpack.c.l.b16 %v547
    %v580 = vpack.c.b16 %v565, %v564
    %v581 = vpack.c.b16 %v567, %v566
    %v582 = vpack.c.b16 %v569, %v568
    %v583 = vpack.c.b16 %v571, %v570
    %v584 = vpack.c.b16 %v573, %v572
    %v585 = vpack.c.b16 %v575, %v574
    %v586 = vpack.c.b16 %v577, %v576
    %v587 = vpack.c.b16 %v579, %v578
    %596 = vmatpush.bf16.msra.mxu0 %v587
    %597 = vmatpush.bf16.msra.mxu0 %v586
    %598 = vmatpush.bf16.msra.mxu0 %v585
    %599 = vmatpush.bf16.msra.mxu0 %v584
    %600 = vmatpush.bf16.msra.mxu0 %v583
    %601 = vmatpush.bf16.msra.mxu0 %v582
    %602 = vmatpush.bf16.msra.mxu0 %v581
    %603 = vmatpush.bf16.msra.mxu0 %v580
    %604 = vmatmul.bf16.gmra.mxu0 %v526
    %v605 = vpop.f32.mrf.mxu0
    %v606 = vadd.f32 0.0, %v605
    %v607 = vpop.f32.mrf.mxu0
    %608 = vdwg.mxu0
    %v609 = vadd.f32 %v531, %v606
    %v610 = vmax.f32 %v609, 0.0
    %v611 = vpack.c.bf16 %v610, %v610
    %s612 = scalar_lea.vmem [#allocation2], 20
    %613 = vst [vmem:[%s612] sm:$0xf] %v611
    %s614 = scalar_lea.vmem [#allocation3], 24
    %v615 = vld [vmem:[%s614] sm:$0xf]
    %v616 = vunpack.c.l.bf16 %v615
    %v617 = vld [vmem:[#allocation6] sm:$0xf]
    %v618 = vld [vmem:[#allocation6 + $0x4] sm:$0xf]
    %v619 = vld [vmem:[#allocation6 + $0x8] sm:$0xf]
    %v620 = vld [vmem:[#allocation6 + $0xc] sm:$0xf]
    %v621 = vld [vmem:[#allocation6 + $0x10] sm:$0xf]
    %v622 = vld [vmem:[#allocation6 + $0x14] sm:$0xf]
    %v623 = vld [vmem:[#allocation6 + $0x18] sm:$0xf]
    %v624 = vld [vmem:[#allocation6 + $0x1c] sm:$0xf]
    %v625 = vld [vmem:[#allocation6 + $0x20] sm:$0xf]
    %v626 = vld [vmem:[#allocation6 + $0x24] sm:$0xf]
    %v627 = vld [vmem:[#allocation6 + $0x28] sm:$0xf]
    %v628 = vld [vmem:[#allocation6 + $0x2c] sm:$0xf]
    %v629 = vld [vmem:[#allocation6 + $0x30] sm:$0xf]
    %v630 = vld [vmem:[#allocation6 + $0x34] sm:$0xf]
    %v631 = vld [vmem:[#allocation6 + $0x38] sm:$0xf]
    %v632 = vld [vmem:[#allocation6 + $0x3c] sm:$0xf]
    %v649 = vunpack.c.l.b16 %v617
    %v650 = vunpack.c.l.b16 %v618
    %v651 = vunpack.c.l.b16 %v619
    %v652 = vunpack.c.l.b16 %v620
    %v653 = vunpack.c.l.b16 %v621
    %v654 = vunpack.c.l.b16 %v622
    %v655 = vunpack.c.l.b16 %v623
    %v656 = vunpack.c.l.b16 %v624
    %v657 = vunpack.c.l.b16 %v625
    %v658 = vunpack.c.l.b16 %v626
    %v659 = vunpack.c.l.b16 %v627
    %v660 = vunpack.c.l.b16 %v628
    %v661 = vunpack.c.l.b16 %v629
    %v662 = vunpack.c.l.b16 %v630
    %v663 = vunpack.c.l.b16 %v631
    %v664 = vunpack.c.l.b16 %v632
    %v665 = vpack.c.b16 %v650, %v649
    %v666 = vpack.c.b16 %v652, %v651
    %v667 = vpack.c.b16 %v654, %v653
    %v668 = vpack.c.b16 %v656, %v655
    %v669 = vpack.c.b16 %v658, %v657
    %v670 = vpack.c.b16 %v660, %v659
    %v671 = vpack.c.b16 %v662, %v661
    %v672 = vpack.c.b16 %v664, %v663
    %681 = vmatpush.bf16.msra.mxu0 %v672
    %682 = vmatpush.bf16.msra.mxu0 %v671
    %683 = vmatpush.bf16.msra.mxu0 %v670
    %684 = vmatpush.bf16.msra.mxu0 %v669
    %685 = vmatpush.bf16.msra.mxu0 %v668
    %686 = vmatpush.bf16.msra.mxu0 %v667
    %687 = vmatpush.bf16.msra.mxu0 %v666
    %688 = vmatpush.bf16.msra.mxu0 %v665
    %689 = vmatmul.bf16.gmra.mxu0 %v611
    %v690 = vpop.f32.mrf.mxu0
    %v691 = vadd.f32 0.0, %v690
    %v692 = vpop.f32.mrf.mxu0
    %693 = vdwg.mxu0
    %v694 = vadd.f32 %v616, %v691
    %v695 = vmax.f32 %v694, 0.0
    %v696 = vpack.c.bf16 %v695, %v695
    %s697 = scalar_lea.vmem [#allocation2], 24
    %698 = vst [vmem:[%s697] sm:$0xf] %v696
    %s699 = scalar_lea.vmem [#allocation3], 28
    %v700 = vld [vmem:[%s699] sm:$0xf]
    %v701 = vunpack.c.l.bf16 %v700
    %v702 = vld [vmem:[#allocation6] sm:$0xf]
    %v703 = vld [vmem:[#allocation6 + $0x4] sm:$0xf]
    %v704 = vld [vmem:[#allocation6 + $0x8] sm:$0xf]
    %v705 = vld [vmem:[#allocation6 + $0xc] sm:$0xf]
    %v706 = vld [vmem:[#allocation6 + $0x10] sm:$0xf]
    %v707 = vld [vmem:[#allocation6 + $0x14] sm:$0xf]
    %v708 = vld [vmem:[#allocation6 + $0x18] sm:$0xf]
    %v709 = vld [vmem:[#allocation6 + $0x1c] sm:$0xf]
    %v710 = vld [vmem:[#allocation6 + $0x20] sm:$0xf]
    %v711 = vld [vmem:[#allocation6 + $0x24] sm:$0xf]
    %v712 = vld [vmem:[#allocation6 + $0x28] sm:$0xf]
    %v713 = vld [vmem:[#allocation6 + $0x2c] sm:$0xf]
    %v714 = vld [vmem:[#allocation6 + $0x30] sm:$0xf]
    %v715 = vld [vmem:[#allocation6 + $0x34] sm:$0xf]
    %v716 = vld [vmem:[#allocation6 + $0x38] sm:$0xf]
    %v717 = vld [vmem:[#allocation6 + $0x3c] sm:$0xf]
    %v734 = vunpack.c.l.b16 %v702
    %v735 = vunpack.c.l.b16 %v703
    %v736 = vunpack.c.l.b16 %v704
    %v737 = vunpack.c.l.b16 %v705
    %v738 = vunpack.c.l.b16 %v706
    %v739 = vunpack.c.l.b16 %v707
    %v740 = vunpack.c.l.b16 %v708
    %v741 = vunpack.c.l.b16 %v709
    %v742 = vunpack.c.l.b16 %v710
    %v743 = vunpack.c.l.b16 %v711
    %v744 = vunpack.c.l.b16 %v712
    %v745 = vunpack.c.l.b16 %v713
    %v746 = vunpack.c.l.b16 %v714
    %v747 = vunpack.c.l.b16 %v715
    %v748 = vunpack.c.l.b16 %v716
    %v749 = vunpack.c.l.b16 %v717
    %v750 = vpack.c.b16 %v735, %v734
    %v751 = vpack.c.b16 %v737, %v736
    %v752 = vpack.c.b16 %v739, %v738
    %v753 = vpack.c.b16 %v741, %v740
    %v754 = vpack.c.b16 %v743, %v742
    %v755 = vpack.c.b16 %v745, %v744
    %v756 = vpack.c.b16 %v747, %v746
    %v757 = vpack.c.b16 %v749, %v748
    %766 = vmatpush.bf16.msra.mxu0 %v757
    %767 = vmatpush.bf16.msra.mxu0 %v756
    %768 = vmatpush.bf16.msra.mxu0 %v755
    %769 = vmatpush.bf16.msra.mxu0 %v754
    %770 = vmatpush.bf16.msra.mxu0 %v753
    %771 = vmatpush.bf16.msra.mxu0 %v752
    %772 = vmatpush.bf16.msra.mxu0 %v751
    %773 = vmatpush.bf16.msra.mxu0 %v750
    %774 = vmatmul.bf16.gmra.mxu0 %v696
    %v775 = vpop.f32.mrf.mxu0
    %v776 = vadd.f32 0.0, %v775
    %v777 = vpop.f32.mrf.mxu0
    %778 = vdwg.mxu0
    %v779 = vadd.f32 %v701, %v776
    %v780 = vmax.f32 %v779, 0.0
    %v781 = vpack.c.bf16 %v780, %v780
    %s782 = scalar_lea.vmem [#allocation2], 28
    %783 = vst [vmem:[%s782] sm:$0xf] %v781
    %v784 = vld [vmem:[#allocation2] sm:$0xf]
    %v785 = vld [vmem:[#allocation2 + $0x4] sm:$0xf]
    %v786 = vld [vmem:[#allocation2 + $0x8] sm:$0xf]
    %v787 = vld [vmem:[#allocation2 + $0xc] sm:$0xf]
    %v788 = vld [vmem:[#allocation2 + $0x10] sm:$0xf]
    %v789 = vld [vmem:[#allocation2 + $0x14] sm:$0xf]
    %v790 = vld [vmem:[#allocation2 + $0x18] sm:$0xf]
    %v791 = vld [vmem:[#allocation2 + $0x1c] sm:$0xf]
    %v792 = vld [vmem:[#allocation8] sm:$0xf]
    %v793 = vld [vmem:[#allocation8 + $0x4] sm:$0xf]
    %v794 = vld [vmem:[#allocation8 + $0x8] sm:$0xf]
    %v795 = vld [vmem:[#allocation8 + $0xc] sm:$0xf]
    %v796 = vld [vmem:[#allocation8 + $0x10] sm:$0xf]
    %v797 = vld [vmem:[#allocation8 + $0x14] sm:$0xf]
    %v798 = vld [vmem:[#allocation8 + $0x18] sm:$0xf]
    %v799 = vld [vmem:[#allocation8 + $0x1c] sm:$0xf]
    %v800 = vld [vmem:[#allocation8 + $0x20] sm:$0xf]
    %v801 = vld [vmem:[#allocation8 + $0x24] sm:$0xf]
    %v802 = vld [vmem:[#allocation8 + $0x28] sm:$0xf]
    %v803 = vld [vmem:[#allocation8 + $0x2c] sm:$0xf]
    %v804 = vld [vmem:[#allocation8 + $0x30] sm:$0xf]
    %v805 = vld [vmem:[#allocation8 + $0x34] sm:$0xf]
    %v806 = vld [vmem:[#allocation8 + $0x38] sm:$0xf]
    %v807 = vld [vmem:[#allocation8 + $0x3c] sm:$0xf]
    %v808 = vld [vmem:[%s4] sm:$0x1]
    %v810 = vperm.slane %v808, 0
    %v820 = vunpack.c.l.b16 %v784
    %v821 = vunpack.c.l.b16 %v785
    %v822 = vunpack.c.l.b16 %v786
    %v823 = vunpack.c.l.b16 %v787
    %v824 = vunpack.c.l.b16 %v788
    %v825 = vunpack.c.l.b16 %v789
    %v826 = vunpack.c.l.b16 %v790
    %v827 = vunpack.c.l.b16 %v791
    %v828 = vpack.c.b16 %v821, %v820
    %v829 = vpack.c.b16 %v823, %v822
    %v830 = vpack.c.b16 %v825, %v824
    %v831 = vpack.c.b16 %v827, %v826
    %v852 = vunpack.c.l.b16 %v792
    %v853 = vunpack.c.l.b16 %v793
    %v854 = vunpack.c.l.b16 %v794
    %v855 = vunpack.c.l.b16 %v795
    %v856 = vunpack.c.l.b16 %v796
    %v857 = vunpack.c.l.b16 %v797
    %v858 = vunpack.c.l.b16 %v798
    %v859 = vunpack.c.l.b16 %v799
    %v860 = vunpack.c.l.b16 %v800
    %v861 = vunpack.c.l.b16 %v801
    %v862 = vunpack.c.l.b16 %v802
    %v863 = vunpack.c.l.b16 %v803
    %v864 = vunpack.c.l.b16 %v804
    %v865 = vunpack.c.l.b16 %v805
    %v866 = vunpack.c.l.b16 %v806
    %v867 = vunpack.c.l.b16 %v807
    %v868 = vpack.c.b16 %v853, %v852
    %v869 = vpack.c.b16 %v855, %v854
    %v870 = vpack.c.b16 %v857, %v856
    %v871 = vpack.c.b16 %v859, %v858
    %v872 = vpack.c.b16 %v861, %v860
    %v873 = vpack.c.b16 %v863, %v862
    %v874 = vpack.c.b16 %v865, %v864
    %v875 = vpack.c.b16 %v867, %v866
    %884 = vmatpush.bf16.msra.mxu0 %v875
    %885 = vmatpush.bf16.msra.mxu0 %v874
    %886 = vmatpush.bf16.msra.mxu0 %v873
    %887 = vmatpush.bf16.msra.mxu0 %v872
    %888 = vmatpush.bf16.msra.mxu0 %v871
    %889 = vmatpush.bf16.msra.mxu0 %v870
    %890 = vmatpush.bf16.msra.mxu0 %v869
    %891 = vmatpush.bf16.msra.mxu0 %v868
    %892 = vmatmul.bf16.gmra.mxu0 %v828
    %v893 = vpop.f32.mrf.mxu0
    %v894 = vadd.f32 %v810, %v893
    %v895 = vpop.f32.mrf.mxu0
    %v896 = vadd.f32 %v810, %v895
    %897 = vmatmul.bf16.gmra.mxu0 %v829
    %v898 = vpop.f32.mrf.mxu0
    %v899 = vadd.f32 %v810, %v898
    %v900 = vpop.f32.mrf.mxu0
    %v901 = vadd.f32 %v810, %v900
    %902 = vmatmul.bf16.gmra.mxu0 %v830
    %v903 = vpop.f32.mrf.mxu0
    %v904 = vadd.f32 %v810, %v903
    %v905 = vpop.f32.mrf.mxu0
    %v906 = vadd.f32 %v810, %v905
    %907 = vmatmul.bf16.gmra.mxu0 %v831
    %v908 = vpop.f32.mrf.mxu0
    %v909 = vadd.f32 %v810, %v908
    %v910 = vpop.f32.mrf.mxu0
    %v911 = vadd.f32 %v810, %v910
    %912 = vdwg.mxu0
    %v913 = vpack.c.bf16 %v894, %v894
    %v914 = vpack.c.bf16 %v896, %v896
    %v915 = vpack.c.bf16 %v899, %v899
    %v916 = vpack.c.bf16 %v901, %v901
    %v917 = vpack.c.bf16 %v904, %v904
    %v918 = vpack.c.bf16 %v906, %v906
    %v919 = vpack.c.bf16 %v909, %v909
    %v920 = vpack.c.bf16 %v911, %v911
    %921 = vst [vmem:[#allocation2] sm:$0xf] %v913
    %922 = vst [vmem:[#allocation2 + $0x4] sm:$0xf] %v914
    %923 = vst [vmem:[#allocation2 + $0x8] sm:$0xf] %v915
    %924 = vst [vmem:[#allocation2 + $0xc] sm:$0xf] %v916
    %925 = vst [vmem:[#allocation2 + $0x10] sm:$0xf] %v917
    %926 = vst [vmem:[#allocation2 + $0x14] sm:$0xf] %v918
    %927 = vst [vmem:[#allocation2 + $0x18] sm:$0xf] %v919
    %928 = vst [vmem:[#allocation2 + $0x1c] sm:$0xf] %v920
    %v929 = vld [vmem:[#allocation2] sm:$0xf]
    %v930 = vunpack.c.l.bf16 %v929
    %v931 = vld [vmem:[#allocation9] sm:$0xf]
    %v932 = vld [vmem:[#allocation9 + $0x4] sm:$0xf]
    %v933 = vld [vmem:[#allocation9 + $0x8] sm:$0xf]
    %v934 = vld [vmem:[#allocation9 + $0xc] sm:$0xf]
    %v935 = vld [vmem:[#allocation9 + $0x10] sm:$0xf]
    %v936 = vld [vmem:[#allocation9 + $0x14] sm:$0xf]
    %v937 = vld [vmem:[#allocation9 + $0x18] sm:$0xf]
    %v938 = vld [vmem:[#allocation9 + $0x1c] sm:$0xf]
    %v939 = vld [vmem:[#allocation9 + $0x20] sm:$0xf]
    %v940 = vld [vmem:[#allocation9 + $0x24] sm:$0xf]
    %v941 = vld [vmem:[#allocation9 + $0x28] sm:$0xf]
    %v942 = vld [vmem:[#allocation9 + $0x2c] sm:$0xf]
    %v943 = vld [vmem:[#allocation9 + $0x30] sm:$0xf]
    %v944 = vld [vmem:[#allocation9 + $0x34] sm:$0xf]
    %v945 = vld [vmem:[#allocation9 + $0x38] sm:$0xf]
    %v946 = vld [vmem:[#allocation9 + $0x3c] sm:$0xf]
    %v963 = vunpack.c.l.b16 %v931
    %v964 = vunpack.c.l.b16 %v932
    %v965 = vunpack.c.l.b16 %v933
    %v966 = vunpack.c.l.b16 %v934
    %v967 = vunpack.c.l.b16 %v935
    %v968 = vunpack.c.l.b16 %v936
    %v969 = vunpack.c.l.b16 %v937
    %v970 = vunpack.c.l.b16 %v938
    %v971 = vunpack.c.l.b16 %v939
    %v972 = vunpack.c.l.b16 %v940
    %v973 = vunpack.c.l.b16 %v941
    %v974 = vunpack.c.l.b16 %v942
    %v975 = vunpack.c.l.b16 %v943
    %v976 = vunpack.c.l.b16 %v944
    %v977 = vunpack.c.l.b16 %v945
    %v978 = vunpack.c.l.b16 %v946
    %v979 = vpack.c.b16 %v964, %v963
    %v980 = vpack.c.b16 %v966, %v965
    %v981 = vpack.c.b16 %v968, %v967
    %v982 = vpack.c.b16 %v970, %v969
    %v983 = vpack.c.b16 %v972, %v971
    %v984 = vpack.c.b16 %v974, %v973
    %v985 = vpack.c.b16 %v976, %v975
    %v986 = vpack.c.b16 %v978, %v977
    %995 = vmatpush.bf16.msra.mxu0 %v986
    %996 = vmatpush.bf16.msra.mxu0 %v985
    %997 = vmatpush.bf16.msra.mxu0 %v984
    %998 = vmatpush.bf16.msra.mxu0 %v983
    %999 = vmatpush.bf16.msra.mxu0 %v982
    %1000 = vmatpush.bf16.msra.mxu0 %v981
    %1001 = vmatpush.bf16.msra.mxu0 %v980
    %1002 = vmatpush.bf16.msra.mxu0 %v979
    %1003 = vmatmul.bf16.gmra.mxu0 0
    %v1004 = vpop.f32.mrf.mxu0
    %v1005 = vadd.f32 0.0, %v1004
    %v1006 = vpop.f32.mrf.mxu0
    %1007 = vdwg.mxu0
    %v1008 = vadd.f32 %v930, %v1005
    %v1009 = vmax.f32 %v1008, 0.0
    %v1010 = vld [vmem:[%s272] sm:$0xf]
    %v1011 = vunpack.c.l.bf16 %v1010
    %v1012 = vpack.c.bf16 %v1009, %v1009
    %1013 = vmatpush.bf16.msra.mxu0 %v986
    %1014 = vmatpush.bf16.msra.mxu0 %v985
    %1015 = vmatpush.bf16.msra.mxu0 %v984
    %1016 = vmatpush.bf16.msra.mxu0 %v983
    %1017 = vmatpush.bf16.msra.mxu0 %v982
    %1018 = vmatpush.bf16.msra.mxu0 %v981
    %1019 = vmatpush.bf16.msra.mxu0 %v980
    %1020 = vmatpush.bf16.msra.mxu0 %v979
    %1021 = vmatmul.bf16.gmra.mxu0 %v1012
    %v1022 = vpop.f32.mrf.mxu0
    %v1023 = vadd.f32 0.0, %v1022
    %v1024 = vpop.f32.mrf.mxu0
    %1025 = vdwg.mxu0
    %v1026 = vadd.f32 %v1011, %v1023
    %v1027 = vmax.f32 %v1026, 0.0
    %v1028 = vld [vmem:[%s357] sm:$0xf]
    %v1029 = vunpack.c.l.bf16 %v1028
    %v1030 = vpack.c.bf16 %v1027, %v1027
    %1031 = vmatpush.bf16.msra.mxu0 %v986
    %1032 = vmatpush.bf16.msra.mxu0 %v985
    %1033 = vmatpush.bf16.msra.mxu0 %v984
    %1034 = vmatpush.bf16.msra.mxu0 %v983
    %1035 = vmatpush.bf16.msra.mxu0 %v982
    %1036 = vmatpush.bf16.msra.mxu0 %v981
    %1037 = vmatpush.bf16.msra.mxu0 %v980
    %1038 = vmatpush.bf16.msra.mxu0 %v979
    %1039 = vmatmul.bf16.gmra.mxu0 %v1030
    %v1040 = vpop.f32.mrf.mxu0
    %v1041 = vadd.f32 0.0, %v1040
    %v1042 = vpop.f32.mrf.mxu0
    %1043 = vdwg.mxu0
    %v1044 = vadd.f32 %v1029, %v1041
    %v1045 = vmax.f32 %v1044, 0.0
    %v1046 = vld [vmem:[%s442] sm:$0xf]
    %v1047 = vunpack.c.l.bf16 %v1046
    %v1048 = vpack.c.bf16 %v1045, %v1045
    %1049 = vmatpush.bf16.msra.mxu0 %v986
    %1050 = vmatpush.bf16.msra.mxu0 %v985
    %1051 = vmatpush.bf16.msra.mxu0 %v984
    %1052 = vmatpush.bf16.msra.mxu0 %v983
    %1053 = vmatpush.bf16.msra.mxu0 %v982
    %1054 = vmatpush.bf16.msra.mxu0 %v981
    %1055 = vmatpush.bf16.msra.mxu0 %v980
    %1056 = vmatpush.bf16.msra.mxu0 %v979
    %1057 = vmatmul.bf16.gmra.mxu0 %v1048
    %v1058 = vpop.f32.mrf.mxu0
    %v1059 = vadd.f32 0.0, %v1058
    %v1060 = vpop.f32.mrf.mxu0
    %1061 = vdwg.mxu0
    %v1062 = vadd.f32 %v1047, %v1059
    %v1063 = vmax.f32 %v1062, 0.0
    %v1064 = vld [vmem:[%s527] sm:$0xf]
    %v1065 = vunpack.c.l.bf16 %v1064
    %v1066 = vpack.c.bf16 %v1063, %v1063
    %1067 = vmatpush.bf16.msra.mxu0 %v986
    %1068 = vmatpush.bf16.msra.mxu0 %v985
    %1069 = vmatpush.bf16.msra.mxu0 %v984
    %1070 = vmatpush.bf16.msra.mxu0 %v983
    %1071 = vmatpush.bf16.msra.mxu0 %v982
    %1072 = vmatpush.bf16.msra.mxu0 %v981
    %1073 = vmatpush.bf16.msra.mxu0 %v980
    %1074 = vmatpush.bf16.msra.mxu0 %v979
    %1075 = vmatmul.bf16.gmra.mxu0 %v1066
    %v1076 = vpop.f32.mrf.mxu0
    %v1077 = vadd.f32 0.0, %v1076
    %v1078 = vpop.f32.mrf.mxu0
    %1079 = vdwg.mxu0
    %v1080 = vadd.f32 %v1065, %v1077
    %v1081 = vmax.f32 %v1080, 0.0
    %v1082 = vld [vmem:[%s612] sm:$0xf]
    %v1083 = vunpack.c.l.bf16 %v1082
    %v1084 = vpack.c.bf16 %v1081, %v1081
    %1085 = vmatpush.bf16.msra.mxu0 %v986
    %1086 = vmatpush.bf16.msra.mxu0 %v985
    %1087 = vmatpush.bf16.msra.mxu0 %v984
    %1088 = vmatpush.bf16.msra.mxu0 %v983
    %1089 = vmatpush.bf16.msra.mxu0 %v982
    %1090 = vmatpush.bf16.msra.mxu0 %v981
    %1091 = vmatpush.bf16.msra.mxu0 %v980
    %1092 = vmatpush.bf16.msra.mxu0 %v979
    %1093 = vmatmul.bf16.gmra.mxu0 %v1084
    %v1094 = vpop.f32.mrf.mxu0
    %v1095 = vadd.f32 0.0, %v1094
    %v1096 = vpop.f32.mrf.mxu0
    %1097 = vdwg.mxu0
    %v1098 = vadd.f32 %v1083, %v1095
    %v1099 = vmax.f32 %v1098, 0.0
    %v1100 = vld [vmem:[%s697] sm:$0xf]
    %v1101 = vunpack.c.l.bf16 %v1100
    %v1102 = vpack.c.bf16 %v1099, %v1099
    %1103 = vmatpush.bf16.msra.mxu0 %v986
    %1104 = vmatpush.bf16.msra.mxu0 %v985
    %1105 = vmatpush.bf16.msra.mxu0 %v984
    %1106 = vmatpush.bf16.msra.mxu0 %v983
    %1107 = vmatpush.bf16.msra.mxu0 %v982
    %1108 = vmatpush.bf16.msra.mxu0 %v981
    %1109 = vmatpush.bf16.msra.mxu0 %v980
    %1110 = vmatpush.bf16.msra.mxu0 %v979
    %1111 = vmatmul.bf16.gmra.mxu0 %v1102
    %v1112 = vpop.f32.mrf.mxu0
    %v1113 = vadd.f32 0.0, %v1112
    %v1114 = vpop.f32.mrf.mxu0
    %1115 = vdwg.mxu0
    %v1116 = vadd.f32 %v1101, %v1113
    %v1117 = vmax.f32 %v1116, 0.0
    %v1118 = vld [vmem:[%s782] sm:$0xf]
    %v1119 = vunpack.c.l.bf16 %v1118
    %v1120 = vpack.c.bf16 %v1117, %v1117
    %1121 = vmatpush.bf16.msra.mxu0 %v986
    %1122 = vmatpush.bf16.msra.mxu0 %v985
    %1123 = vmatpush.bf16.msra.mxu0 %v984
    %1124 = vmatpush.bf16.msra.mxu0 %v983
    %1125 = vmatpush.bf16.msra.mxu0 %v982
    %1126 = vmatpush.bf16.msra.mxu0 %v981
    %1127 = vmatpush.bf16.msra.mxu0 %v980
    %1128 = vmatpush.bf16.msra.mxu0 %v979
    %1129 = vmatmul.bf16.gmra.mxu0 %v1120
    %v1130 = vpop.f32.mrf.mxu0
    %v1131 = vadd.f32 0.0, %v1130
    %v1132 = vpop.f32.mrf.mxu0
    %1133 = vdwg.mxu0
    %v1134 = vadd.f32 %v1119, %v1131
    %v1135 = vmax.f32 %v1134, 0.0
    %v1136 = vpack.c.bf16 %v1135, %v1135
    %v1137 = vld [vmem:[#allocation11] sm:$0xf]
    %v1138 = vld [vmem:[#allocation11 + $0x4] sm:$0xf]
    %v1139 = vld [vmem:[#allocation11 + $0x8] sm:$0xf]
    %v1140 = vld [vmem:[#allocation11 + $0xc] sm:$0xf]
    %v1141 = vld [vmem:[#allocation11 + $0x10] sm:$0xf]
    %v1142 = vld [vmem:[#allocation11 + $0x14] sm:$0xf]
    %v1143 = vld [vmem:[#allocation11 + $0x18] sm:$0xf]
    %v1144 = vld [vmem:[#allocation11 + $0x1c] sm:$0xf]
    %v1145 = vld [vmem:[#allocation11 + $0x20] sm:$0xf]
    %v1146 = vld [vmem:[#allocation11 + $0x24] sm:$0xf]
    %v1147 = vld [vmem:[#allocation11 + $0x28] sm:$0xf]
    %v1148 = vld [vmem:[#allocation11 + $0x2c] sm:$0xf]
    %v1149 = vld [vmem:[#allocation11 + $0x30] sm:$0xf]
    %v1150 = vld [vmem:[#allocation11 + $0x34] sm:$0xf]
    %v1151 = vld [vmem:[#allocation11 + $0x38] sm:$0xf]
    %v1152 = vld [vmem:[#allocation11 + $0x3c] sm:$0xf]
    %v1153 = vld [vmem:[%s6] sm:$0x1]
    %v1155 = vperm.slane %v1153, 0
    %v1173 = vunpack.c.l.b16 %v1137
    %v1174 = vunpack.c.l.b16 %v1138
    %v1175 = vunpack.c.l.b16 %v1139
    %v1176 = vunpack.c.l.b16 %v1140
    %v1177 = vunpack.c.l.b16 %v1141
    %v1178 = vunpack.c.l.b16 %v1142
    %v1179 = vunpack.c.l.b16 %v1143
    %v1180 = vunpack.c.l.b16 %v1144
    %v1181 = vunpack.c.l.b16 %v1145
    %v1182 = vunpack.c.l.b16 %v1146
    %v1183 = vunpack.c.l.b16 %v1147
    %v1184 = vunpack.c.l.b16 %v1148
    %v1185 = vunpack.c.l.b16 %v1149
    %v1186 = vunpack.c.l.b16 %v1150
    %v1187 = vunpack.c.l.b16 %v1151
    %v1188 = vunpack.c.l.b16 %v1152
    %v1189 = vpack.c.b16 %v1174, %v1173
    %v1190 = vpack.c.b16 %v1176, %v1175
    %v1191 = vpack.c.b16 %v1178, %v1177
    %v1192 = vpack.c.b16 %v1180, %v1179
    %v1193 = vpack.c.b16 %v1182, %v1181
    %v1194 = vpack.c.b16 %v1184, %v1183
    %v1195 = vpack.c.b16 %v1186, %v1185
    %v1196 = vpack.c.b16 %v1188, %v1187
    %1205 = vmatpush.bf16.msra.mxu0 %v1196
    %1206 = vmatpush.bf16.msra.mxu0 %v1195
    %1207 = vmatpush.bf16.msra.mxu0 %v1194
    %1208 = vmatpush.bf16.msra.mxu0 %v1193
    %1209 = vmatpush.bf16.msra.mxu0 %v1192
    %1210 = vmatpush.bf16.msra.mxu0 %v1191
    %1211 = vmatpush.bf16.msra.mxu0 %v1190
    %1212 = vmatpush.bf16.msra.mxu0 %v1189
    %1213 = vmatmul.bf16.gmra.mxu0 %v1136
    %v1214 = vpop.f32.mrf.mxu0
    %v1215 = vadd.f32 %v1155, %v1214
    %v1216 = vpop.f32.mrf.mxu0
    %1217 = vdwg.mxu0
    %1218 = vst [vmem:[#allocation12] sm:$0xff] %v1215
    // Predicated region
    $region50: #{tpu_custom_call.1} parent=1 // pred_check
      _
    $region51: #{tpu_custom_call.1} parent=1 // pred_check_branch
      %1220 = sbr.rel (0) target = $region53
    $region52: #{tpu_custom_call.1} parent=1 // pred_region
      %1222 = vsyncadd [#allocation5], 0
      %s1224 = sshll.u32 [#allocation12], 4
      %s1225 = int_to_ptr.vmem [resolvable:$true] %s1224
      %s1226 = sshll.u32 %s7, 4
      %s1227 = int_to_ptr.hbm [resolvable:$true] %s1226
      %1229 = dma.vmem_to_hbm [thread:$0]  %s1225, 128, %s1227, [#allocation5]
    $region53: #{tpu_custom_call.1} parent=1 // pred_fallthru
      _
    // Predicated region
    $region54: #{tpu_custom_call.1} parent=1 // pred_check
      _
    $region55: #{tpu_custom_call.1} parent=1 // pred_check_branch
      %1231 = sbr.rel (0) target = $region57
    $region56: #{tpu_custom_call.1} parent=1 // pred_region
      %1233 = dma.done [#allocation5], 128
    $region57: #{tpu_custom_call.1} parent=1 // pred_fallthru
      _
    %1234 = vsyncpa [#allocation4], 1
    %1235 = vsyncpa [#allocation7], 1
    %1236 = vsyncpa [#allocation10], 1
    %1237 = vsyncpa [#allocation5], 1

// kernel: tpu_custom_call.1
$region0: #{tpu_custom_call.1}
  #allocation0 [shape = 'u32[]', space=smem, size = 0x4, offset = 0x4, fixed_abs, tag = 'smem constant byte address 0x4 - core index']
  #allocation1 [shape = 'u32[72,128]{1,0:T(1,128)}', space=vmem, size = 0x9000, scoped, tag = 'internal scratch']
  #allocation2 [shape = 'bf16[8,8,128]{2,1,0:T(8,128)(2,1)}', space=vmem, size = 0x4000, scoped, tag = 'scratch operand']
  %s0 = inlined_call_operand.hbm [shape: bf16[8,8,128], index: 0, kind: input, shape index: {}]
  %s1 = inlined_call_operand.hbm [shape: bf16[128,128], index: 1, kind: input, shape index: {}]
  %s2 = inlined_call_operand.hbm [shape: bf16[128,128], index: 2, kind: input, shape index: {}]
  %s3 = inlined_call_operand.hbm [shape: bf16[128,128], index: 3, kind: input, shape index: {}]
  %s4 = inlined_call_operand.vmem [shape: f32[1,128], index: 4, kind: input, shape index: {}]
  %s5 = inlined_call_operand.hbm [shape: bf16[128,128], index: 5, kind: input, shape index: {}]
  %s6 = inlined_call_operand.vmem [shape: f32[1,128], index: 6, kind: input, shape index: {}]
  %s7 = inlined_call_operand.hbm [shape: f32[8,128], index: 7, kind: output, shape index: {}]
  %s8 = sld [smem:[#allocation0]]
  $region58: #{tpu_custom_call.1} parent=0
    _
  %s10 = ssub.s32 1, %s8
  %s11 = scalar_select 0, %s10, %s8
  $region1: #{tpu_custom_call.1} parent=0
    #allocation3 [shape = 'u8[16384]{0}', space=vmem, size = 0x4000, scoped, tag = 'input window, operand 0, single buffered']
    #allocation4 [shape = 's32[1]{0}', space=sflag, size = 0x4, scoped, tag = 'scoped memory for tpu_custom_call.1']
    #allocation5 [shape = 's32[1]{0}', space=sflag, size = 0x4, scoped, tag = 'scoped memory for tpu_custom_call.1']
    #allocation6 [shape = 'u8[32768]{0}', space=vmem, size = 0x8000, scoped, tag = 'input window, operand 1, single buffered']
    #allocation7 [shape = 's32[1]{0}', space=sflag, size = 0x4, scoped, tag = 'scoped memory for tpu_custom_call.1']
    #allocation8 [shape = 'u8[32768]{0}', space=vmem, size = 0x8000, scoped, tag = 'input window, operand 2, single buffered']
    #allocation9 [shape = 'u8[32768]{0}', space=vmem, size = 0x8000, scoped, tag = 'input window, operand 3, single buffered']
    #allocation10 [shape = 's32[1]{0}', space=sflag, size = 0x4, scoped, tag = 'scoped memory for tpu_custom_call.1']
    #allocation11 [shape = 'u8[32768]{0}', space=vmem, size = 0x8000, scoped, tag = 'input window, operand 5, single buffered']
    #allocation12 [shape = 'u8[4096]{0}', space=vmem, size = 0x1000, scoped, tag = 'output window, operand 0, single buffered']
    %12 = vsyncpa [#allocation4], 0
    %13 = vsyncpa [#allocation7], 0
    %14 = vsyncpa [#allocation10], 0
    %15 = vsyncpa [#allocation5], 0
    // Predicated region
    $region2: #{tpu_custom_call.1} parent=1 // pred_check
      _
    $region3: #{tpu_custom_call.1} parent=1 // pred_check_branch
      %17 = sbr.rel (0) target = $region5
    $region4: #{tpu_custom_call.1} parent=1 // pred_region
      %19 = vsyncadd [#allocation4], 0
      %s20 = sshll.u32 %s0, 4
      %s21 = int_to_ptr.hbm [resolvable:$true] %s20
      %s22 = sshll.u32 [#allocation3], 4
      %s23 = int_to_ptr.vmem [resolvable:$true] %s22
      %28 = dma.hbm_to_vmem [thread:$0]  %s21, 512, %s23, [#allocation4], 64, 64, 4
    $region5: #{tpu_custom_call.1} parent=1 // pred_fallthru
      _
    // Predicated region
    $region6: #{tpu_custom_call.1} parent=1 // pred_check
      _
    $region7: #{tpu_custom_call.1} parent=1 // pred_check_branch
      %30 = sbr.rel (0) target = $region9
    $region8: #{tpu_custom_call.1} parent=1 // pred_region
      %32 = vsyncadd [#allocation7], 0
      %s33 = sshll.u32 %s1, 4
      %s34 = int_to_ptr.hbm [resolvable:$true] %s33
      %s35 = sshll.u32 [#allocation6], 4
      %s36 = int_to_ptr.vmem [resolvable:$true] %s35
      %41 = dma.hbm_to_vmem [thread:$0]  %s34, 1024, %s36, [#allocation7], 64, 64, 4
    $region9: #{tpu_custom_call.1} parent=1 // pred_fallthru
      _
    // Predicated region
    $region10: #{tpu_custom_call.1} parent=1 // pred_check
      _
    $region11: #{tpu_custom_call.1} parent=1 // pred_check_branch
      %43 = sbr.rel (0) target = $region13
    $region12: #{tpu_custom_call.1} parent=1 // pred_region
      %45 = vsyncadd [#allocation7], 0
      %s46 = sshll.u32 %s2, 4
      %s47 = int_to_ptr.hbm [resolvable:$true] %s46
      %s48 = sshll.u32 [#allocation8], 4
      %s49 = int_to_ptr.vmem [resolvable:$true] %s48
      %54 = dma.hbm_to_vmem [thread:$0]  %s47, 1024, %s49, [#allocation7], 64, 64, 4
    $region13: #{tpu_custom_call.1} parent=1 // pred_fallthru
      _
    // Predicated region
    $region14: #{tpu_custom_call.1} parent=1 // pred_check
      _
    $region15: #{tpu_custom_call.1} parent=1 // pred_check_branch
      %56 = sbr.rel (0) target = $region17
    $region16: #{tpu_custom_call.1} parent=1 // pred_region
      %58 = vsyncadd [#allocation10], 0
      %s59 = sshll.u32 %s3, 4
      %s60 = int_to_ptr.hbm [resolvable:$true] %s59
      %s61 = sshll.u32 [#allocation9], 4
      %s62 = int_to_ptr.vmem [resolvable:$true] %s61
      %67 = dma.hbm_to_vmem [thread:$0]  %s60, 1024, %s62, [#allocation10], 64, 64, 4
    $region17: #{tpu_custom_call.1} parent=1 // pred_fallthru
      _
    // Predicated region
    $region18: #{tpu_custom_call.1} parent=1 // pred_check
      _
    $region19: #{tpu_custom_call.1} parent=1 // pred_check_branch
      %69 = sbr.rel (0) target = $region21
    $region20: #{tpu_custom_call.1} parent=1 // pred_region
      _
    $region21: #{tpu_custom_call.1} parent=1 // pred_fallthru
      _
    // Predicated region
    $region22: #{tpu_custom_call.1} parent=1 // pred_check
      _
    $region23: #{tpu_custom_call.1} parent=1 // pred_check_branch
      %71 = sbr.rel (0) target = $region25
    $region24: #{tpu_custom_call.1} parent=1 // pred_region
      %73 = vsyncadd [#allocation10], 0
      %s74 = sshll.u32 %s5, 4
      %s75 = int_to_ptr.hbm [resolvable:$true] %s74
      %s76 = sshll.u32 [#allocation11], 4
      %s77 = int_to_ptr.vmem [resolvable:$true] %s76
      %82 = dma.hbm_to_vmem [thread:$0]  %s75, 1024, %s77, [#allocation10], 64, 64, 4
    $region25: #{tpu_custom_call.1} parent=1 // pred_fallthru
      _
    // Predicated region
    $region26: #{tpu_custom_call.1} parent=1 // pred_check
      _
    $region27: #{tpu_custom_call.1} parent=1 // pred_check_branch
      %84 = sbr.rel (0) target = $region29
    $region28: #{tpu_custom_call.1} parent=1 // pred_region
      _
    $region29: #{tpu_custom_call.1} parent=1 // pred_fallthru
      _
    // Predicated region
    $region30: #{tpu_custom_call.1} parent=1 // pred_check
      _
    $region31: #{tpu_custom_call.1} parent=1 // pred_check_branch
      %86 = sbr.rel (0) target = $region33
    $region32: #{tpu_custom_call.1} parent=1 // pred_region
      %88 = dma.done [#allocation4], 512
    $region33: #{tpu_custom_call.1} parent=1 // pred_fallthru
      _
    // Predicated region
    $region34: #{tpu_custom_call.1} parent=1 // pred_check
      _
    $region35: #{tpu_custom_call.1} parent=1 // pred_check_branch
      %90 = sbr.rel (0) target = $region37
    $region36: #{tpu_custom_call.1} parent=1 // pred_region
      %92 = dma.done [#allocation7], 1024
    $region37: #{tpu_custom_call.1} parent=1 // pred_fallthru
      _
    // Predicated region
    $region38: #{tpu_custom_call.1} parent=1 // pred_check
      _
    $region39: #{tpu_custom_call.1} parent=1 // pred_check_branch
      %94 = sbr.rel (0) target = $region41
    $region40: #{tpu_custom_call.1} parent=1 // pred_region
      %96 = dma.done [#allocation7], 1024
    $region41: #{tpu_custom_call.1} parent=1 // pred_fallthru
      _
    // Predicated region
    $region42: #{tpu_custom_call.1} parent=1 // pred_check
      _
    $region43: #{tpu_custom_call.1} parent=1 // pred_check_branch
      %98 = sbr.rel (0) target = $region45
    $region44: #{tpu_custom_call.1} parent=1 // pred_region
      %100 = dma.done [#allocation10], 1024
    $region45: #{tpu_custom_call.1} parent=1 // pred_fallthru
      _
    // Predicated region
    $region46: #{tpu_custom_call.1} parent=1 // pred_check
      _
    $region47: #{tpu_custom_call.1} parent=1 // pred_check_branch
      %102 = sbr.rel (0) target = $region49
    $region48: #{tpu_custom_call.1} parent=1 // pred_region
      %104 = dma.done [#allocation10], 1024
    $region49: #{tpu_custom_call.1} parent=1 // pred_fallthru
      _
    %v106 = vld [vmem:[#allocation3] sm:$0xf]
    %v107 = vunpack.c.l.bf16 %v106
    %v108 = vld [vmem:[#allocation6] sm:$0xf]
    %v109 = vld [vmem:[#allocation6 + $0x4] sm:$0xf]
    %v110 = vld [vmem:[#allocation6 + $0x8] sm:$0xf]
    %v111 = vld [vmem:[#allocation6 + $0xc] sm:$0xf]
    %v112 = vld [vmem:[#allocation6 + $0x10] sm:$0xf]
    %v113 = vld [vmem:[#allocation6 + $0x14] sm:$0xf]
    %v114 = vld [vmem:[#allocation6 + $0x18] sm:$0xf]
    %v115 = vld [vmem:[#allocation6 + $0x1c] sm:$0xf]
    %v116 = vld [vmem:[#allocation6 + $0x20] sm:$0xf]
    %v117 = vld [vmem:[#allocation6 + $0x24] sm:$0xf]
    %v118 = vld [vmem:[#allocation6 + $0x28] sm:$0xf]
    %v119 = vld [vmem:[#allocation6 + $0x2c] sm:$0xf]
    %v120 = vld [vmem:[#allocation6 + $0x30] sm:$0xf]
    %v121 = vld [vmem:[#allocation6 + $0x34] sm:$0xf]
    %v122 = vld [vmem:[#allocation6 + $0x38] sm:$0xf]
    %v123 = vld [vmem:[#allocation6 + $0x3c] sm:$0xf]
    %v140 = vunpack.c.l.b16 %v108
    %v141 = vunpack.c.l.b16 %v109
    %v142 = vunpack.c.l.b16 %v110
    %v143 = vunpack.c.l.b16 %v111
    %v144 = vunpack.c.l.b16 %v112
    %v145 = vunpack.c.l.b16 %v113
    %v146 = vunpack.c.l.b16 %v114
    %v147 = vunpack.c.l.b16 %v115
    %v148 = vunpack.c.l.b16 %v116
    %v149 = vunpack.c.l.b16 %v117
    %v150 = vunpack.c.l.b16 %v118
    %v151 = vunpack.c.l.b16 %v119
    %v152 = vunpack.c.l.b16 %v120
    %v153 = vunpack.c.l.b16 %v121
    %v154 = vunpack.c.l.b16 %v122
    %v155 = vunpack.c.l.b16 %v123
    %v156 = vpack.c.b16 %v141, %v140
    %v157 = vpack.c.b16 %v143, %v142
    %v158 = vpack.c.b16 %v145, %v144
    %v159 = vpack.c.b16 %v147, %v146
    %v160 = vpack.c.b16 %v149, %v148
    %v161 = vpack.c.b16 %v151, %v150
    %v162 = vpack.c.b16 %v153, %v152
    %v163 = vpack.c.b16 %v155, %v154
    %172 = vmatpush.bf16.msra.mxu0 %v163
    %173 = vmatpush.bf16.msra.mxu0 %v162
    %174 = vmatpush.bf16.msra.mxu0 %v161
    %175 = vmatpush.bf16.msra.mxu0 %v160
    %176 = vmatpush.bf16.msra.mxu0 %v159
    %177 = vmatpush.bf16.msra.mxu0 %v158
    %178 = vmatpush.bf16.msra.mxu0 %v157
    %179 = vmatpush.bf16.msra.mxu0 %v156
    %180 = vmatmul.bf16.gmra.mxu0 0
    %v181 = vpop.f32.mrf.mxu0
    %v182 = vadd.f32 0.0, %v181
    %v183 = vpop.f32.mrf.mxu0
    %184 = vdwg.mxu0
    %v185 = vadd.f32 %v107, %v182
    %v186 = vmax.f32 %v185, 0.0
    %v187 = vpack.c.bf16 %v186, %v186
    %188 = vst [vmem:[#allocation2] sm:$0xf] %v187
    %s189 = scalar_lea.vmem [#allocation3], 4
    %v190 = vld [vmem:[%s189] sm:$0xf]
    %v191 = vunpack.c.l.bf16 %v190
    %v192 = vld [vmem:[#allocation6] sm:$0xf]
    %v193 = vld [vmem:[#allocation6 + $0x4] sm:$0xf]
    %v194 = vld [vmem:[#allocation6 + $0x8] sm:$0xf]
    %v195 = vld [vmem:[#allocation6 + $0xc] sm:$0xf]
    %v196 = vld [vmem:[#allocation6 + $0x10] sm:$0xf]
    %v197 = vld [vmem:[#allocation6 + $0x14] sm:$0xf]
    %v198 = vld [vmem:[#allocation6 + $0x18] sm:$0xf]
    %v199 = vld [vmem:[#allocation6 + $0x1c] sm:$0xf]
    %v200 = vld [vmem:[#allocation6 + $0x20] sm:$0xf]
    %v201 = vld [vmem:[#allocation6 + $0x24] sm:$0xf]
    %v202 = vld [vmem:[#allocation6 + $0x28] sm:$0xf]
    %v203 = vld [vmem:[#allocation6 + $0x2c] sm:$0xf]
    %v204 = vld [vmem:[#allocation6 + $0x30] sm:$0xf]
    %v205 = vld [vmem:[#allocation6 + $0x34] sm:$0xf]
    %v206 = vld [vmem:[#allocation6 + $0x38] sm:$0xf]
    %v207 = vld [vmem:[#allocation6 + $0x3c] sm:$0xf]
    %v224 = vunpack.c.l.b16 %v192
    %v225 = vunpack.c.l.b16 %v193
    %v226 = vunpack.c.l.b16 %v194
    %v227 = vunpack.c.l.b16 %v195
    %v228 = vunpack.c.l.b16 %v196
    %v229 = vunpack.c.l.b16 %v197
    %v230 = vunpack.c.l.b16 %v198
    %v231 = vunpack.c.l.b16 %v199
    %v232 = vunpack.c.l.b16 %v200
    %v233 = vunpack.c.l.b16 %v201
    %v234 = vunpack.c.l.b16 %v202
    %v235 = vunpack.c.l.b16 %v203
    %v236 = vunpack.c.l.b16 %v204
    %v237 = vunpack.c.l.b16 %v205
    %v238 = vunpack.c.l.b16 %v206
    %v239 = vunpack.c.l.b16 %v207
    %v240 = vpack.c.b16 %v225, %v224
    %v241 = vpack.c.b16 %v227, %v226
    %v242 = vpack.c.b16 %v229, %v228
    %v243 = vpack.c.b16 %v231, %v230
    %v244 = vpack.c.b16 %v233, %v232
    %v245 = vpack.c.b16 %v235, %v234
    %v246 = vpack.c.b16 %v237, %v236
    %v247 = vpack.c.b16 %v239, %v238
    %256 = vmatpush.bf16.msra.mxu0 %v247
    %257 = vmatpush.bf16.msra.mxu0 %v246
    %258 = vmatpush.bf16.msra.mxu0 %v245
    %259 = vmatpush.bf16.msra.mxu0 %v244
    %260 = vmatpush.bf16.msra.mxu0 %v243
    %261 = vmatpush.bf16.msra.mxu0 %v242
    %262 = vmatpush.bf16.msra.mxu0 %v241
    %263 = vmatpush.bf16.msra.mxu0 %v240
    %264 = vmatmul.bf16.gmra.mxu0 %v187
    %v265 = vpop.f32.mrf.mxu0
    %v266 = vadd.f32 0.0, %v265
    %v267 = vpop.f32.mrf.mxu0
    %268 = vdwg.mxu0
    %v269 = vadd.f32 %v191, %v266
    %v270 = vmax.f32 %v269, 0.0
    %v271 = vpack.c.bf16 %v270, %v270
    %s272 = scalar_lea.vmem [#allocation2], 4
    %273 = vst [vmem:[%s272] sm:$0xf] %v271
    %s274 = scalar_lea.vmem [#allocation3], 8
    %v275 = vld [vmem:[%s274] sm:$0xf]
    %v276 = vunpack.c.l.bf16 %v275
    %v277 = vld [vmem:[#allocation6] sm:$0xf]
    %v278 = vld [vmem:[#allocation6 + $0x4] sm:$0xf]
    %v279 = vld [vmem:[#allocation6 + $0x8] sm:$0xf]
    %v280 = vld [vmem:[#allocation6 + $0xc] sm:$0xf]
    %v281 = vld [vmem:[#allocation6 + $0x10] sm:$0xf]
    %v282 = vld [vmem:[#allocation6 + $0x14] sm:$0xf]
    %v283 = vld [vmem:[#allocation6 + $0x18] sm:$0xf]
    %v284 = vld [vmem:[#allocation6 + $0x1c] sm:$0xf]
    %v285 = vld [vmem:[#allocation6 + $0x20] sm:$0xf]
    %v286 = vld [vmem:[#allocation6 + $0x24] sm:$0xf]
    %v287 = vld [vmem:[#allocation6 + $0x28] sm:$0xf]
    %v288 = vld [vmem:[#allocation6 + $0x2c] sm:$0xf]
    %v289 = vld [vmem:[#allocation6 + $0x30] sm:$0xf]
    %v290 = vld [vmem:[#allocation6 + $0x34] sm:$0xf]
    %v291 = vld [vmem:[#allocation6 + $0x38] sm:$0xf]
    %v292 = vld [vmem:[#allocation6 + $0x3c] sm:$0xf]
    %v309 = vunpack.c.l.b16 %v277
    %v310 = vunpack.c.l.b16 %v278
    %v311 = vunpack.c.l.b16 %v279
    %v312 = vunpack.c.l.b16 %v280
    %v313 = vunpack.c.l.b16 %v281
    %v314 = vunpack.c.l.b16 %v282
    %v315 = vunpack.c.l.b16 %v283
    %v316 = vunpack.c.l.b16 %v284
    %v317 = vunpack.c.l.b16 %v285
    %v318 = vunpack.c.l.b16 %v286
    %v319 = vunpack.c.l.b16 %v287
    %v320 = vunpack.c.l.b16 %v288
    %v321 = vunpack.c.l.b16 %v289
    %v322 = vunpack.c.l.b16 %v290
    %v323 = vunpack.c.l.b16 %v291
    %v324 = vunpack.c.l.b16 %v292
    %v325 = vpack.c.b16 %v310, %v309
    %v326 = vpack.c.b16 %v312, %v311
    %v327 = vpack.c.b16 %v314, %v313
    %v328 = vpack.c.b16 %v316, %v315
    %v329 = vpack.c.b16 %v318, %v317
    %v330 = vpack.c.b16 %v320, %v319
    %v331 = vpack.c.b16 %v322, %v321
    %v332 = vpack.c.b16 %v324, %v323
    %341 = vmatpush.bf16.msra.mxu0 %v332
    %342 = vmatpush.bf16.msra.mxu0 %v331
    %343 = vmatpush.bf16.msra.mxu0 %v330
    %344 = vmatpush.bf16.msra.mxu0 %v329
    %345 = vmatpush.bf16.msra.mxu0 %v328
    %346 = vmatpush.bf16.msra.mxu0 %v327
    %347 = vmatpush.bf16.msra.mxu0 %v326
    %348 = vmatpush.bf16.msra.mxu0 %v325
    %349 = vmatmul.bf16.gmra.mxu0 %v271
    %v350 = vpop.f32.mrf.mxu0
    %v351 = vadd.f32 0.0, %v350
    %v352 = vpop.f32.mrf.mxu0
    %353 = vdwg.mxu0
    %v354 = vadd.f32 %v276, %v351
    %v355 = vmax.f32 %v354, 0.0
    %v356 = vpack.c.bf16 %v355, %v355
    %s357 = scalar_lea.vmem [#allocation2], 8
    %358 = vst [vmem:[%s357] sm:$0xf] %v356
    %s359 = scalar_lea.vmem [#allocation3], 12
    %v360 = vld [vmem:[%s359] sm:$0xf]
    %v361 = vunpack.c.l.bf16 %v360
    %v362 = vld [vmem:[#allocation6] sm:$0xf]
    %v363 = vld [vmem:[#allocation6 + $0x4] sm:$0xf]
    %v364 = vld [vmem:[#allocation6 + $0x8] sm:$0xf]
    %v365 = vld [vmem:[#allocation6 + $0xc] sm:$0xf]
    %v366 = vld [vmem:[#allocation6 + $0x10] sm:$0xf]
    %v367 = vld [vmem:[#allocation6 + $0x14] sm:$0xf]
    %v368 = vld [vmem:[#allocation6 + $0x18] sm:$0xf]
    %v369 = vld [vmem:[#allocation6 + $0x1c] sm:$0xf]
    %v370 = vld [vmem:[#allocation6 + $0x20] sm:$0xf]
    %v371 = vld [vmem:[#allocation6 + $0x24] sm:$0xf]
    %v372 = vld [vmem:[#allocation6 + $0x28] sm:$0xf]
    %v373 = vld [vmem:[#allocation6 + $0x2c] sm:$0xf]
    %v374 = vld [vmem:[#allocation6 + $0x30] sm:$0xf]
    %v375 = vld [vmem:[#allocation6 + $0x34] sm:$0xf]
    %v376 = vld [vmem:[#allocation6 + $0x38] sm:$0xf]
    %v377 = vld [vmem:[#allocation6 + $0x3c] sm:$0xf]
    %v394 = vunpack.c.l.b16 %v362
    %v395 = vunpack.c.l.b16 %v363
    %v396 = vunpack.c.l.b16 %v364
    %v397 = vunpack.c.l.b16 %v365
    %v398 = vunpack.c.l.b16 %v366
    %v399 = vunpack.c.l.b16 %v367
    %v400 = vunpack.c.l.b16 %v368
    %v401 = vunpack.c.l.b16 %v369
    %v402 = vunpack.c.l.b16 %v370
    %v403 = vunpack.c.l.b16 %v371
    %v404 = vunpack.c.l.b16 %v372
    %v405 = vunpack.c.l.b16 %v373
    %v406 = vunpack.c.l.b16 %v374
    %v407 = vunpack.c.l.b16 %v375
    %v408 = vunpack.c.l.b16 %v376
    %v409 = vunpack.c.l.b16 %v377
    %v410 = vpack.c.b16 %v395, %v394
    %v411 = vpack.c.b16 %v397, %v396
    %v412 = vpack.c.b16 %v399, %v398
    %v413 = vpack.c.b16 %v401, %v400
    %v414 = vpack.c.b16 %v403, %v402
    %v415 = vpack.c.b16 %v405, %v404
    %v416 = vpack.c.b16 %v407, %v406
    %v417 = vpack.c.b16 %v409, %v408
    %426 = vmatpush.bf16.msra.mxu0 %v417
    %427 = vmatpush.bf16.msra.mxu0 %v416
    %428 = vmatpush.bf16.msra.mxu0 %v415
    %429 = vmatpush.bf16.msra.mxu0 %v414
    %430 = vmatpush.bf16.msra.mxu0 %v413
    %431 = vmatpush.bf16.msra.mxu0 %v412
    %432 = vmatpush.bf16.msra.mxu0 %v411
    %433 = vmatpush.bf16.msra.mxu0 %v410
    %434 = vmatmul.bf16.gmra.mxu0 %v356
    %v435 = vpop.f32.mrf.mxu0
    %v436 = vadd.f32 0.0, %v435
    %v437 = vpop.f32.mrf.mxu0
    %438 = vdwg.mxu0
    %v439 = vadd.f32 %v361, %v436
    %v440 = vmax.f32 %v439, 0.0
    %v441 = vpack.c.bf16 %v440, %v440
    %s442 = scalar_lea.vmem [#allocation2], 12
    %443 = vst [vmem:[%s442] sm:$0xf] %v441
    %s444 = scalar_lea.vmem [#allocation3], 16
    %v445 = vld [vmem:[%s444] sm:$0xf]
    %v446 = vunpack.c.l.bf16 %v445
    %v447 = vld [vmem:[#allocation6] sm:$0xf]
    %v448 = vld [vmem:[#allocation6 + $0x4] sm:$0xf]
    %v449 = vld [vmem:[#allocation6 + $0x8] sm:$0xf]
    %v450 = vld [vmem:[#allocation6 + $0xc] sm:$0xf]
    %v451 = vld [vmem:[#allocation6 + $0x10] sm:$0xf]
    %v452 = vld [vmem:[#allocation6 + $0x14] sm:$0xf]
    %v453 = vld [vmem:[#allocation6 + $0x18] sm:$0xf]
    %v454 = vld [vmem:[#allocation6 + $0x1c] sm:$0xf]
    %v455 = vld [vmem:[#allocation6 + $0x20] sm:$0xf]
    %v456 = vld [vmem:[#allocation6 + $0x24] sm:$0xf]
    %v457 = vld [vmem:[#allocation6 + $0x28] sm:$0xf]
    %v458 = vld [vmem:[#allocation6 + $0x2c] sm:$0xf]
    %v459 = vld [vmem:[#allocation6 + $0x30] sm:$0xf]
    %v460 = vld [vmem:[#allocation6 + $0x34] sm:$0xf]
    %v461 = vld [vmem:[#allocation6 + $0x38] sm:$0xf]
    %v462 = vld [vmem:[#allocation6 + $0x3c] sm:$0xf]
    %v479 = vunpack.c.l.b16 %v447
    %v480 = vunpack.c.l.b16 %v448
    %v481 = vunpack.c.l.b16 %v449
    %v482 = vunpack.c.l.b16 %v450
    %v483 = vunpack.c.l.b16 %v451
    %v484 = vunpack.c.l.b16 %v452
    %v485 = vunpack.c.l.b16 %v453
    %v486 = vunpack.c.l.b16 %v454
    %v487 = vunpack.c.l.b16 %v455
    %v488 = vunpack.c.l.b16 %v456
    %v489 = vunpack.c.l.b16 %v457
    %v490 = vunpack.c.l.b16 %v458
    %v491 = vunpack.c.l.b16 %v459
    %v492 = vunpack.c.l.b16 %v460
    %v493 = vunpack.c.l.b16 %v461
    %v494 = vunpack.c.l.b16 %v462
    %v495 = vpack.c.b16 %v480, %v479
    %v496 = vpack.c.b16 %v482, %v481
    %v497 = vpack.c.b16 %v484, %v483
    %v498 = vpack.c.b16 %v486, %v485
    %v499 = vpack.c.b16 %v488, %v487
    %v500 = vpack.c.b16 %v490, %v489
    %v501 = vpack.c.b16 %v492, %v491
    %v502 = vpack.c.b16 %v494, %v493
    %511 = vmatpush.bf16.msra.mxu0 %v502
    %512 = vmatpush.bf16.msra.mxu0 %v501
    %513 = vmatpush.bf16.msra.mxu0 %v500
    %514 = vmatpush.bf16.msra.mxu0 %v499
    %515 = vmatpush.bf16.msra.mxu0 %v498
    %516 = vmatpush.bf16.msra.mxu0 %v497
    %517 = vmatpush.bf16.msra.mxu0 %v496
    %518 = vmatpush.bf16.msra.mxu0 %v495
    %519 = vmatmul.bf16.gmra.mxu0 %v441
    %v520 = vpop.f32.mrf.mxu0
    %v521 = vadd.f32 0.0, %v520
    %v522 = vpop.f32.mrf.mxu0
    %523 = vdwg.mxu0
    %v524 = vadd.f32 %v446, %v521
    %v525 = vmax.f32 %v524, 0.0
    %v526 = vpack.c.bf16 %v525, %v525
    %s527 = scalar_lea.vmem [#allocation2], 16
    %528 = vst [vmem:[%s527] sm:$0xf] %v526
    %s529 = scalar_lea.vmem [#allocation3], 20
    %v530 = vld [vmem:[%s529] sm:$0xf]
    %v531 = vunpack.c.l.bf16 %v530
    %v532 = vld [vmem:[#allocation6] sm:$0xf]
    %v533 = vld [vmem:[#allocation6 + $0x4] sm:$0xf]
    %v534 = vld [vmem:[#allocation6 + $0x8] sm:$0xf]
    %v535 = vld [vmem:[#allocation6 + $0xc] sm:$0xf]
    %v536 = vld [vmem:[#allocation6 + $0x10] sm:$0xf]
    %v537 = vld [vmem:[#allocation6 + $0x14] sm:$0xf]
    %v538 = vld [vmem:[#allocation6 + $0x18] sm:$0xf]
    %v539 = vld [vmem:[#allocation6 + $0x1c] sm:$0xf]
    %v540 = vld [vmem:[#allocation6 + $0x20] sm:$0xf]
    %v541 = vld [vmem:[#allocation6 + $0x24] sm:$0xf]
    %v542 = vld [vmem:[#allocation6 + $0x28] sm:$0xf]
    %v543 = vld [vmem:[#allocation6 + $0x2c] sm:$0xf]
    %v544 = vld [vmem:[#allocation6 + $0x30] sm:$0xf]
    %v545 = vld [vmem:[#allocation6 + $0x34] sm:$0xf]
    %v546 = vld [vmem:[#allocation6 + $0x38] sm:$0xf]
    %v547 = vld [vmem:[#allocation6 + $0x3c] sm:$0xf]
    %v564 = vunpack.c.l.b16 %v532
    %v565 = vunpack.c.l.b16 %v533
    %v566 = vunpack.c.l.b16 %v534
    %v567 = vunpack.c.l.b16 %v535
    %v568 = vunpack.c.l.b16 %v536
    %v569 = vunpack.c.l.b16 %v537
    %v570 = vunpack.c.l.b16 %v538
    %v571 = vunpack.c.l.b16 %v539
    %v572 = vunpack.c.l.b16 %v540
    %v573 = vunpack.c.l.b16 %v541
    %v574 = vunpack.c.l.b16 %v542
    %v575 = vunpack.c.l.b16 %v543
    %v576 = vunpack.c.l.b16 %v544
    %v577 = vunpack.c.l.b16 %v545
    %v578 = vunpack.c.l.b16 %v546
    %v579 = vunpack.c.l.b16 %v547
    %v580 = vpack.c.b16 %v565, %v564
    %v581 = vpack.c.b16 %v567, %v566
    %v582 = vpack.c.b16 %v569, %v568
    %v583 = vpack.c.b16 %v571, %v570
    %v584 = vpack.c.b16 %v573, %v572
    %v585 = vpack.c.b16 %v575, %v574
    %v586 = vpack.c.b16 %v577, %v576
    %v587 = vpack.c.b16 %v579, %v578
    %596 = vmatpush.bf16.msra.mxu0 %v587
    %597 = vmatpush.bf16.msra.mxu0 %v586
    %598 = vmatpush.bf16.msra.mxu0 %v585
    %599 = vmatpush.bf16.msra.mxu0 %v584
    %600 = vmatpush.bf16.msra.mxu0 %v583
    %601 = vmatpush.bf16.msra.mxu0 %v582
    %602 = vmatpush.bf16.msra.mxu0 %v581
    %603 = vmatpush.bf16.msra.mxu0 %v580
    %604 = vmatmul.bf16.gmra.mxu0 %v526
    %v605 = vpop.f32.mrf.mxu0
    %v606 = vadd.f32 0.0, %v605
    %v607 = vpop.f32.mrf.mxu0
    %608 = vdwg.mxu0
    %v609 = vadd.f32 %v531, %v606
    %v610 = vmax.f32 %v609, 0.0
    %v611 = vpack.c.bf16 %v610, %v610
    %s612 = scalar_lea.vmem [#allocation2], 20
    %613 = vst [vmem:[%s612] sm:$0xf] %v611
    %s614 = scalar_lea.vmem [#allocation3], 24
    %v615 = vld [vmem:[%s614] sm:$0xf]
    %v616 = vunpack.c.l.bf16 %v615
    %v617 = vld [vmem:[#allocation6] sm:$0xf]
    %v618 = vld [vmem:[#allocation6 + $0x4] sm:$0xf]
    %v619 = vld [vmem:[#allocation6 + $0x8] sm:$0xf]
    %v620 = vld [vmem:[#allocation6 + $0xc] sm:$0xf]
    %v621 = vld [vmem:[#allocation6 + $0x10] sm:$0xf]
    %v622 = vld [vmem:[#allocation6 + $0x14] sm:$0xf]
    %v623 = vld [vmem:[#allocation6 + $0x18] sm:$0xf]
    %v624 = vld [vmem:[#allocation6 + $0x1c] sm:$0xf]
    %v625 = vld [vmem:[#allocation6 + $0x20] sm:$0xf]
    %v626 = vld [vmem:[#allocation6 + $0x24] sm:$0xf]
    %v627 = vld [vmem:[#allocation6 + $0x28] sm:$0xf]
    %v628 = vld [vmem:[#allocation6 + $0x2c] sm:$0xf]
    %v629 = vld [vmem:[#allocation6 + $0x30] sm:$0xf]
    %v630 = vld [vmem:[#allocation6 + $0x34] sm:$0xf]
    %v631 = vld [vmem:[#allocation6 + $0x38] sm:$0xf]
    %v632 = vld [vmem:[#allocation6 + $0x3c] sm:$0xf]
    %v649 = vunpack.c.l.b16 %v617
    %v650 = vunpack.c.l.b16 %v618
    %v651 = vunpack.c.l.b16 %v619
    %v652 = vunpack.c.l.b16 %v620
    %v653 = vunpack.c.l.b16 %v621
    %v654 = vunpack.c.l.b16 %v622
    %v655 = vunpack.c.l.b16 %v623
    %v656 = vunpack.c.l.b16 %v624
    %v657 = vunpack.c.l.b16 %v625
    %v658 = vunpack.c.l.b16 %v626
    %v659 = vunpack.c.l.b16 %v627
    %v660 = vunpack.c.l.b16 %v628
    %v661 = vunpack.c.l.b16 %v629
    %v662 = vunpack.c.l.b16 %v630
    %v663 = vunpack.c.l.b16 %v631
    %v664 = vunpack.c.l.b16 %v632
    %v665 = vpack.c.b16 %v650, %v649
    %v666 = vpack.c.b16 %v652, %v651
    %v667 = vpack.c.b16 %v654, %v653
    %v668 = vpack.c.b16 %v656, %v655
    %v669 = vpack.c.b16 %v658, %v657
    %v670 = vpack.c.b16 %v660, %v659
    %v671 = vpack.c.b16 %v662, %v661
    %v672 = vpack.c.b16 %v664, %v663
    %681 = vmatpush.bf16.msra.mxu0 %v672
    %682 = vmatpush.bf16.msra.mxu0 %v671
    %683 = vmatpush.bf16.msra.mxu0 %v670
    %684 = vmatpush.bf16.msra.mxu0 %v669
    %685 = vmatpush.bf16.msra.mxu0 %v668
    %686 = vmatpush.bf16.msra.mxu0 %v667
    %687 = vmatpush.bf16.msra.mxu0 %v666
    %688 = vmatpush.bf16.msra.mxu0 %v665
    %689 = vmatmul.bf16.gmra.mxu0 %v611
    %v690 = vpop.f32.mrf.mxu0
    %v691 = vadd.f32 0.0, %v690
    %v692 = vpop.f32.mrf.mxu0
    %693 = vdwg.mxu0
    %v694 = vadd.f32 %v616, %v691
    %v695 = vmax.f32 %v694, 0.0
    %v696 = vpack.c.bf16 %v695, %v695
    %s697 = scalar_lea.vmem [#allocation2], 24
    %698 = vst [vmem:[%s697] sm:$0xf] %v696
    %s699 = scalar_lea.vmem [#allocation3], 28
    %v700 = vld [vmem:[%s699] sm:$0xf]
    %v701 = vunpack.c.l.bf16 %v700
    %v702 = vld [vmem:[#allocation6] sm:$0xf]
    %v703 = vld [vmem:[#allocation6 + $0x4] sm:$0xf]
    %v704 = vld [vmem:[#allocation6 + $0x8] sm:$0xf]
    %v705 = vld [vmem:[#allocation6 + $0xc] sm:$0xf]
    %v706 = vld [vmem:[#allocation6 + $0x10] sm:$0xf]
    %v707 = vld [vmem:[#allocation6 + $0x14] sm:$0xf]
    %v708 = vld [vmem:[#allocation6 + $0x18] sm:$0xf]
    %v709 = vld [vmem:[#allocation6 + $0x1c] sm:$0xf]
    %v710 = vld [vmem:[#allocation6 + $0x20] sm:$0xf]
    %v711 = vld [vmem:[#allocation6 + $0x24] sm:$0xf]
    %v712 = vld [vmem:[#allocation6 + $0x28] sm:$0xf]
    %v713 = vld [vmem:[#allocation6 + $0x2c] sm:$0xf]
    %v714 = vld [vmem:[#allocation6 + $0x30] sm:$0xf]
    %v715 = vld [vmem:[#allocation6 + $0x34] sm:$0xf]
    %v716 = vld [vmem:[#allocation6 + $0x38] sm:$0xf]
    %v717 = vld [vmem:[#allocation6 + $0x3c] sm:$0xf]
    %v734 = vunpack.c.l.b16 %v702
    %v735 = vunpack.c.l.b16 %v703
    %v736 = vunpack.c.l.b16 %v704
    %v737 = vunpack.c.l.b16 %v705
    %v738 = vunpack.c.l.b16 %v706
    %v739 = vunpack.c.l.b16 %v707
    %v740 = vunpack.c.l.b16 %v708
    %v741 = vunpack.c.l.b16 %v709
    %v742 = vunpack.c.l.b16 %v710
    %v743 = vunpack.c.l.b16 %v711
    %v744 = vunpack.c.l.b16 %v712
    %v745 = vunpack.c.l.b16 %v713
    %v746 = vunpack.c.l.b16 %v714
    %v747 = vunpack.c.l.b16 %v715
    %v748 = vunpack.c.l.b16 %v716
    %v749 = vunpack.c.l.b16 %v717
    %v750 = vpack.c.b16 %v735, %v734
    %v751 = vpack.c.b16 %v737, %v736
    %v752 = vpack.c.b16 %v739, %v738
    %v753 = vpack.c.b16 %v741, %v740
    %v754 = vpack.c.b16 %v743, %v742
    %v755 = vpack.c.b16 %v745, %v744
    %v756 = vpack.c.b16 %v747, %v746
    %v757 = vpack.c.b16 %v749, %v748
    %766 = vmatpush.bf16.msra.mxu0 %v757
    %767 = vmatpush.bf16.msra.mxu0 %v756
    %768 = vmatpush.bf16.msra.mxu0 %v755
    %769 = vmatpush.bf16.msra.mxu0 %v754
    %770 = vmatpush.bf16.msra.mxu0 %v753
    %771 = vmatpush.bf16.msra.mxu0 %v752
    %772 = vmatpush.bf16.msra.mxu0 %v751
    %773 = vmatpush.bf16.msra.mxu0 %v750
    %774 = vmatmul.bf16.gmra.mxu0 %v696
    %v775 = vpop.f32.mrf.mxu0
    %v776 = vadd.f32 0.0, %v775
    %v777 = vpop.f32.mrf.mxu0
    %778 = vdwg.mxu0
    %v779 = vadd.f32 %v701, %v776
    %v780 = vmax.f32 %v779, 0.0
    %v781 = vpack.c.bf16 %v780, %v780
    %s782 = scalar_lea.vmem [#allocation2], 28
    %783 = vst [vmem:[%s782] sm:$0xf] %v781
    %v784 = vld [vmem:[#allocation2] sm:$0xf]
    %v785 = vld [vmem:[#allocation2 + $0x4] sm:$0xf]
    %v786 = vld [vmem:[#allocation2 + $0x8] sm:$0xf]
    %v787 = vld [vmem:[#allocation2 + $0xc] sm:$0xf]
    %v788 = vld [vmem:[#allocation2 + $0x10] sm:$0xf]
    %v789 = vld [vmem:[#allocation2 + $0x14] sm:$0xf]
    %v790 = vld [vmem:[#allocation2 + $0x18] sm:$0xf]
    %v791 = vld [vmem:[#allocation2 + $0x1c] sm:$0xf]
    %v792 = vld [vmem:[#allocation8] sm:$0xf]
    %v793 = vld [vmem:[#allocation8 + $0x4] sm:$0xf]
    %v794 = vld [vmem:[#allocation8 + $0x8] sm:$0xf]
    %v795 = vld [vmem:[#allocation8 + $0xc] sm:$0xf]
    %v796 = vld [vmem:[#allocation8 + $0x10] sm:$0xf]
    %v797 = vld [vmem:[#allocation8 + $0x14] sm:$0xf]
    %v798 = vld [vmem:[#allocation8 + $0x18] sm:$0xf]
    %v799 = vld [vmem:[#allocation8 + $0x1c] sm:$0xf]
    %v800 = vld [vmem:[#allocation8 + $0x20] sm:$0xf]
    %v801 = vld [vmem:[#allocation8 + $0x24] sm:$0xf]
    %v802 = vld [vmem:[#allocation8 + $0x28] sm:$0xf]
    %v803 = vld [vmem:[#allocation8 + $0x2c] sm:$0xf]
    %v804 = vld [vmem:[#allocation8 + $0x30] sm:$0xf]
    %v805 = vld [vmem:[#allocation8 + $0x34] sm:$0xf]
    %v806 = vld [vmem:[#allocation8 + $0x38] sm:$0xf]
    %v807 = vld [vmem:[#allocation8 + $0x3c] sm:$0xf]
    %v808 = vld [vmem:[%s4] sm:$0x1]
    %v810 = vperm.slane %v808, 0
    %v820 = vunpack.c.l.b16 %v784
    %v821 = vunpack.c.l.b16 %v785
    %v822 = vunpack.c.l.b16 %v786
    %v823 = vunpack.c.l.b16 %v787
    %v824 = vunpack.c.l.b16 %v788
    %v825 = vunpack.c.l.b16 %v789
    %v826 = vunpack.c.l.b16 %v790
    %v827 = vunpack.c.l.b16 %v791
    %v828 = vpack.c.b16 %v821, %v820
    %v829 = vpack.c.b16 %v823, %v822
    %v830 = vpack.c.b16 %v825, %v824
    %v831 = vpack.c.b16 %v827, %v826
    %v852 = vunpack.c.l.b16 %v792
    %v853 = vunpack.c.l.b16 %v793
    %v854 = vunpack.c.l.b16 %v794
    %v855 = vunpack.c.l.b16 %v795
    %v856 = vunpack.c.l.b16 %v796
    %v857 = vunpack.c.l.b16 %v797
    %v858 = vunpack.c.l.b16 %v798
    %v859 = vunpack.c.l.b16 %v799
    %v860 = vunpack.c.l.b16 %v800
    %v861 = vunpack.c.l.b16 %v801
    %v862 = vunpack.c.l.b16 %v802
    %v863 = vunpack.c.l.b16 %v803
    %v864 = vunpack.c.l.b16 %v804
    %v865 = vunpack.c.l.b16 %v805
    %v866 = vunpack.c.l.b16 %v806
    %v867 = vunpack.c.l.b16 %v807
    %v868 = vpack.c.b16 %v853, %v852
    %v869 = vpack.c.b16 %v855, %v854
    %v870 = vpack.c.b16 %v857, %v856
    %v871 = vpack.c.b16 %v859, %v858
    %v872 = vpack.c.b16 %v861, %v860
    %v873 = vpack.c.b16 %v863, %v862
    %v874 = vpack.c.b16 %v865, %v864
    %v875 = vpack.c.b16 %v867, %v866
    %884 = vmatpush.bf16.msra.mxu0 %v875
    %885 = vmatpush.bf16.msra.mxu0 %v874
    %886 = vmatpush.bf16.msra.mxu0 %v873
    %887 = vmatpush.bf16.msra.mxu0 %v872
    %888 = vmatpush.bf16.msra.mxu0 %v871
    %889 = vmatpush.bf16.msra.mxu0 %v870
    %890 = vmatpush.bf16.msra.mxu0 %v869
    %891 = vmatpush.bf16.msra.mxu0 %v868
    %892 = vmatmul.bf16.gmra.mxu0 %v828
    %v893 = vpop.f32.mrf.mxu0
    %v894 = vadd.f32 %v810, %v893
    %v895 = vpop.f32.mrf.mxu0
    %v896 = vadd.f32 %v810, %v895
    %897 = vmatmul.bf16.gmra.mxu0 %v829
    %v898 = vpop.f32.mrf.mxu0
    %v899 = vadd.f32 %v810, %v898
    %v900 = vpop.f32.mrf.mxu0
    %v901 = vadd.f32 %v810, %v900
    %902 = vmatmul.bf16.gmra.mxu0 %v830
    %v903 = vpop.f32.mrf.mxu0
    %v904 = vadd.f32 %v810, %v903
    %v905 = vpop.f32.mrf.mxu0
    %v906 = vadd.f32 %v810, %v905
    %907 = vmatmul.bf16.gmra.mxu0 %v831
    %v908 = vpop.f32.mrf.mxu0
    %v909 = vadd.f32 %v810, %v908
    %v910 = vpop.f32.mrf.mxu0
    %v911 = vadd.f32 %v810, %v910
    %912 = vdwg.mxu0
    %v913 = vpack.c.bf16 %v894, %v894
    %v914 = vpack.c.bf16 %v896, %v896
    %v915 = vpack.c.bf16 %v899, %v899
    %v916 = vpack.c.bf16 %v901, %v901
    %v917 = vpack.c.bf16 %v904, %v904
    %v918 = vpack.c.bf16 %v906, %v906
    %v919 = vpack.c.bf16 %v909, %v909
    %v920 = vpack.c.bf16 %v911, %v911
    %921 = vst [vmem:[#allocation2] sm:$0xf] %v913
    %922 = vst [vmem:[#allocation2 + $0x4] sm:$0xf] %v914
    %923 = vst [vmem:[#allocation2 + $0x8] sm:$0xf] %v915
    %924 = vst [vmem:[#allocation2 + $0xc] sm:$0xf] %v916
    %925 = vst [vmem:[#allocation2 + $0x10] sm:$0xf] %v917
    %926 = vst [vmem:[#allocation2 + $0x14] sm:$0xf] %v918
    %927 = vst [vmem:[#allocation2 + $0x18] sm:$0xf] %v919
    %928 = vst [vmem:[#allocation2 + $0x1c] sm:$0xf] %v920
    %v929 = vld [vmem:[#allocation2] sm:$0xf]
    %v930 = vunpack.c.l.bf16 %v929
    %v931 = vld [vmem:[#allocation9] sm:$0xf]
    %v932 = vld [vmem:[#allocation9 + $0x4] sm:$0xf]
    %v933 = vld [vmem:[#allocation9 + $0x8] sm:$0xf]
    %v934 = vld [vmem:[#allocation9 + $0xc] sm:$0xf]
    %v935 = vld [vmem:[#allocation9 + $0x10] sm:$0xf]
    %v936 = vld [vmem:[#allocation9 + $0x14] sm:$0xf]
    %v937 = vld [vmem:[#allocation9 + $0x18] sm:$0xf]
    %v938 = vld [vmem:[#allocation9 + $0x1c] sm:$0xf]
    %v939 = vld [vmem:[#allocation9 + $0x20] sm:$0xf]
    %v940 = vld [vmem:[#allocation9 + $0x24] sm:$0xf]
    %v941 = vld [vmem:[#allocation9 + $0x28] sm:$0xf]
    %v942 = vld [vmem:[#allocation9 + $0x2c] sm:$0xf]
    %v943 = vld [vmem:[#allocation9 + $0x30] sm:$0xf]
    %v944 = vld [vmem:[#allocation9 + $0x34] sm:$0xf]
    %v945 = vld [vmem:[#allocation9 + $0x38] sm:$0xf]
    %v946 = vld [vmem:[#allocation9 + $0x3c] sm:$0xf]
    %v963 = vunpack.c.l.b16 %v931
    %v964 = vunpack.c.l.b16 %v932
    %v965 = vunpack.c.l.b16 %v933
    %v966 = vunpack.c.l.b16 %v934
    %v967 = vunpack.c.l.b16 %v935
    %v968 = vunpack.c.l.b16 %v936
    %v969 = vunpack.c.l.b16 %v937
    %v970 = vunpack.c.l.b16 %v938
    %v971 = vunpack.c.l.b16 %v939
    %v972 = vunpack.c.l.b16 %v940
    %v973 = vunpack.c.l.b16 %v941
    %v974 = vunpack.c.l.b16 %v942
    %v975 = vunpack.c.l.b16 %v943
    %v976 = vunpack.c.l.b16 %v944
    %v977 = vunpack.c.l.b16 %v945
    %v978 = vunpack.c.l.b16 %v946
    %v979 = vpack.c.b16 %v964, %v963
    %v980 = vpack.c.b16 %v966, %v965
    %v981 = vpack.c.b16 %v968, %v967
    %v982 = vpack.c.b16 %v970, %v969
    %v983 = vpack.c.b16 %v972, %v971
    %v984 = vpack.c.b16 %v974, %v973
    %v985 = vpack.c.b16 %v976, %v975
    %v986 = vpack.c.b16 %v978, %v977
    %995 = vmatpush.bf16.msra.mxu0 %v986
    %996 = vmatpush.bf16.msra.mxu0 %v985
    %997 = vmatpush.bf16.msra.mxu0 %v984
    %998 = vmatpush.bf16.msra.mxu0 %v983
    %999 = vmatpush.bf16.msra.mxu0 %v982
    %1000 = vmatpush.bf16.msra.mxu0 %v981
    %1001 = vmatpush.bf16.msra.mxu0 %v980
    %1002 = vmatpush.bf16.msra.mxu0 %v979
    %1003 = vmatmul.bf16.gmra.mxu0 0
    %v1004 = vpop.f32.mrf.mxu0
    %v1005 = vadd.f32 0.0, %v1004
    %v1006 = vpop.f32.mrf.mxu0
    %1007 = vdwg.mxu0
    %v1008 = vadd.f32 %v930, %v1005
    %v1009 = vmax.f32 %v1008, 0.0
    %v1010 = vld [vmem:[%s272] sm:$0xf]
    %v1011 = vunpack.c.l.bf16 %v1010
    %v1012 = vpack.c.bf16 %v1009, %v1009
    %1013 = vmatpush.bf16.msra.mxu0 %v986
    %1014 = vmatpush.bf16.msra.mxu0 %v985
    %1015 = vmatpush.bf16.msra.mxu0 %v984
    %1016 = vmatpush.bf16.msra.mxu0 %v983
    %1017 = vmatpush.bf16.msra.mxu0 %v982
    %1018 = vmatpush.bf16.msra.mxu0 %v981
    %1019 = vmatpush.bf16.msra.mxu0 %v980
    %1020 = vmatpush.bf16.msra.mxu0 %v979
    %1021 = vmatmul.bf16.gmra.mxu0 %v1012
    %v1022 = vpop.f32.mrf.mxu0
    %v1023 = vadd.f32 0.0, %v1022
    %v1024 = vpop.f32.mrf.mxu0
    %1025 = vdwg.mxu0
    %v1026 = vadd.f32 %v1011, %v1023
    %v1027 = vmax.f32 %v1026, 0.0
    %v1028 = vld [vmem:[%s357] sm:$0xf]
    %v1029 = vunpack.c.l.bf16 %v1028
    %v1030 = vpack.c.bf16 %v1027, %v1027
    %1031 = vmatpush.bf16.msra.mxu0 %v986
    %1032 = vmatpush.bf16.msra.mxu0 %v985
    %1033 = vmatpush.bf16.msra.mxu0 %v984
    %1034 = vmatpush.bf16.msra.mxu0 %v983
    %1035 = vmatpush.bf16.msra.mxu0 %v982
    %1036 = vmatpush.bf16.msra.mxu0 %v981
    %1037 = vmatpush.bf16.msra.mxu0 %v980
    %1038 = vmatpush.bf16.msra.mxu0 %v979
    %1039 = vmatmul.bf16.gmra.mxu0 %v1030
    %v1040 = vpop.f32.mrf.mxu0
    %v1041 = vadd.f32 0.0, %v1040
    %v1042 = vpop.f32.mrf.mxu0
    %1043 = vdwg.mxu0
    %v1044 = vadd.f32 %v1029, %v1041
    %v1045 = vmax.f32 %v1044, 0.0
    %v1046 = vld [vmem:[%s442] sm:$0xf]
    %v1047 = vunpack.c.l.bf16 %v1046
    %v1048 = vpack.c.bf16 %v1045, %v1045
    %1049 = vmatpush.bf16.msra.mxu0 %v986
    %1050 = vmatpush.bf16.msra.mxu0 %v985
    %1051 = vmatpush.bf16.msra.mxu0 %v984
    %1052 = vmatpush.bf16.msra.mxu0 %v983
    %1053 = vmatpush.bf16.msra.mxu0 %v982
    %1054 = vmatpush.bf16.msra.mxu0 %v981
    %1055 = vmatpush.bf16.msra.mxu0 %v980
    %1056 = vmatpush.bf16.msra.mxu0 %v979
    %1057 = vmatmul.bf16.gmra.mxu0 %v1048
    %v1058 = vpop.f32.mrf.mxu0
    %v1059 = vadd.f32 0.0, %v1058
    %v1060 = vpop.f32.mrf.mxu0
    %1061 = vdwg.mxu0
    %v1062 = vadd.f32 %v1047, %v1059
    %v1063 = vmax.f32 %v1062, 0.0
    %v1064 = vld [vmem:[%s527] sm:$0xf]
    %v1065 = vunpack.c.l.bf16 %v1064
    %v1066 = vpack.c.bf16 %v1063, %v1063
    %1067 = vmatpush.bf16.msra.mxu0 %v986
    %1068 = vmatpush.bf16.msra.mxu0 %v985
    %1069 = vmatpush.bf16.msra.mxu0 %v984
    %1070 = vmatpush.bf16.msra.mxu0 %v983
    %1071 = vmatpush.bf16.msra.mxu0 %v982
    %1072 = vmatpush.bf16.msra.mxu0 %v981
    %1073 = vmatpush.bf16.msra.mxu0 %v980
    %1074 = vmatpush.bf16.msra.mxu0 %v979
    %1075 = vmatmul.bf16.gmra.mxu0 %v1066
    %v1076 = vpop.f32.mrf.mxu0
    %v1077 = vadd.f32 0.0, %v1076
    %v1078 = vpop.f32.mrf.mxu0
    %1079 = vdwg.mxu0
    %v1080 = vadd.f32 %v1065, %v1077
    %v1081 = vmax.f32 %v1080, 0.0
    %v1082 = vld [vmem:[%s612] sm:$0xf]
    %v1083 = vunpack.c.l.bf16 %v1082
    %v1084 = vpack.c.bf16 %v1081, %v1081
    %1085 = vmatpush.bf16.msra.mxu0 %v986
    %1086 = vmatpush.bf16.msra.mxu0 %v985
    %1087 = vmatpush.bf16.msra.mxu0 %v984
    %1088 = vmatpush.bf16.msra.mxu0 %v983
    %1089 = vmatpush.bf16.msra.mxu0 %v982
    %1090 = vmatpush.bf16.msra.mxu0 %v981
    %1091 = vmatpush.bf16.msra.mxu0 %v980
    %1092 = vmatpush.bf16.msra.mxu0 %v979
    %1093 = vmatmul.bf16.gmra.mxu0 %v1084
    %v1094 = vpop.f32.mrf.mxu0
    %v1095 = vadd.f32 0.0, %v1094
    %v1096 = vpop.f32.mrf.mxu0
    %1097 = vdwg.mxu0
    %v1098 = vadd.f32 %v1083, %v1095
    %v1099 = vmax.f32 %v1098, 0.0
    %v1100 = vld [vmem:[%s697] sm:$0xf]
    %v1101 = vunpack.c.l.bf16 %v1100
    %v1102 = vpack.c.bf16 %v1099, %v1099
    %1103 = vmatpush.bf16.msra.mxu0 %v986
    %1104 = vmatpush.bf16.msra.mxu0 %v985
    %1105 = vmatpush.bf16.msra.mxu0 %v984
    %1106 = vmatpush.bf16.msra.mxu0 %v983
    %1107 = vmatpush.bf16.msra.mxu0 %v982
    %1108 = vmatpush.bf16.msra.mxu0 %v981
    %1109 = vmatpush.bf16.msra.mxu0 %v980
    %1110 = vmatpush.bf16.msra.mxu0 %v979
    %1111 = vmatmul.bf16.gmra.mxu0 %v1102
    %v1112 = vpop.f32.mrf.mxu0
    %v1113 = vadd.f32 0.0, %v1112
    %v1114 = vpop.f32.mrf.mxu0
    %1115 = vdwg.mxu0
    %v1116 = vadd.f32 %v1101, %v1113
    %v1117 = vmax.f32 %v1116, 0.0
    %v1118 = vld [vmem:[%s782] sm:$0xf]
    %v1119 = vunpack.c.l.bf16 %v1118
    %v1120 = vpack.c.bf16 %v1117, %v1117
    %1121 = vmatpush.bf16.msra.mxu0 %v986
    %1122 = vmatpush.bf16.msra.mxu0 %v985
    %1123 = vmatpush.bf16.msra.mxu0 %v984
    %1124 = vmatpush.bf16.msra.mxu0 %v983
    %1125 = vmatpush.bf16.msra.mxu0 %v982
    %1126 = vmatpush.bf16.msra.mxu0 %v981
    %1127 = vmatpush.bf16.msra.mxu0 %v980
    %1128 = vmatpush.bf16.msra.mxu0 %v979
    %1129 = vmatmul.bf16.gmra.mxu0 %v1120
    %v1130 = vpop.f32.mrf.mxu0
    %v1131 = vadd.f32 0.0, %v1130
    %v1132 = vpop.f32.mrf.mxu0
    %1133 = vdwg.mxu0
    %v1134 = vadd.f32 %v1119, %v1131
    %v1135 = vmax.f32 %v1134, 0.0
    %v1136 = vpack.c.bf16 %v1135, %v1135
    %v1137 = vld [vmem:[#allocation11] sm:$0xf]
    %v1138 = vld [vmem:[#allocation11 + $0x4] sm:$0xf]
    %v1139 = vld [vmem:[#allocation11 + $0x8] sm:$0xf]
    %v1140 = vld [vmem:[#allocation11 + $0xc] sm:$0xf]
    %v1141 = vld [vmem:[#allocation11 + $0x10] sm:$0xf]
    %v1142 = vld [vmem:[#allocation11 + $0x14] sm:$0xf]
    %v1143 = vld [vmem:[#allocation11 + $0x18] sm:$0xf]
    %v1144 = vld [vmem:[#allocation11 + $0x1c] sm:$0xf]
    %v1145 = vld [vmem:[#allocation11 + $0x20] sm:$0xf]
    %v1146 = vld [vmem:[#allocation11 + $0x24] sm:$0xf]
    %v1147 = vld [vmem:[#allocation11 + $0x28] sm:$0xf]
    %v1148 = vld [vmem:[#allocation11 + $0x2c] sm:$0xf]
    %v1149 = vld [vmem:[#allocation11 + $0x30] sm:$0xf]
    %v1150 = vld [vmem:[#allocation11 + $0x34] sm:$0xf]
    %v1151 = vld [vmem:[#allocation11 + $0x38] sm:$0xf]
    %v1152 = vld [vmem:[#allocation11 + $0x3c] sm:$0xf]
    %v1153 = vld [vmem:[%s6] sm:$0x1]
    %v1155 = vperm.slane %v1153, 0
    %v1173 = vunpack.c.l.b16 %v1137
    %v1174 = vunpack.c.l.b16 %v1138
    %v1175 = vunpack.c.l.b16 %v1139
    %v1176 = vunpack.c.l.b16 %v1140
    %v1177 = vunpack.c.l.b16 %v1141
    %v1178 = vunpack.c.l.b16 %v1142
    %v1179 = vunpack.c.l.b16 %v1143
    %v1180 = vunpack.c.l.b16 %v1144
    %v1181 = vunpack.c.l.b16 %v1145
    %v1182 = vunpack.c.l.b16 %v1146
    %v1183 = vunpack.c.l.b16 %v1147
    %v1184 = vunpack.c.l.b16 %v1148
    %v1185 = vunpack.c.l.b16 %v1149
    %v1186 = vunpack.c.l.b16 %v1150
    %v1187 = vunpack.c.l.b16 %v1151
    %v1188 = vunpack.c.l.b16 %v1152
    %v1189 = vpack.c.b16 %v1174, %v1173
    %v1190 = vpack.c.b16 %v1176, %v1175
    %v1191 = vpack.c.b16 %v1178, %v1177
    %v1192 = vpack.c.b16 %v1180, %v1179
    %v1193 = vpack.c.b16 %v1182, %v1181
    %v1194 = vpack.c.b16 %v1184, %v1183
    %v1195 = vpack.c.b16 %v1186, %v1185
    %v1196 = vpack.c.b16 %v1188, %v1187
    %1205 = vmatpush.bf16.msra.mxu0 %v1196
    %1206 = vmatpush.bf16.msra.mxu0 %v1195
    %1207 = vmatpush.bf16.msra.mxu0 %v1194
    %1208 = vmatpush.bf16.msra.mxu0 %v1193
    %1209 = vmatpush.bf16.msra.mxu0 %v1192
    %1210 = vmatpush.bf16.msra.mxu0 %v1191
    %1211 = vmatpush.bf16.msra.mxu0 %v1190
    %1212 = vmatpush.bf16.msra.mxu0 %v1189
    %1213 = vmatmul.bf16.gmra.mxu0 %v1136
    %v1214 = vpop.f32.mrf.mxu0
    %v1215 = vadd.f32 %v1155, %v1214
    %v1216 = vpop.f32.mrf.mxu0
    %1217 = vdwg.mxu0
    %1218 = vst [vmem:[#allocation12] sm:$0xff] %v1215
    // Predicated region
    $region50: #{tpu_custom_call.1} parent=1 // pred_check
      _
    $region51: #{tpu_custom_call.1} parent=1 // pred_check_branch
      %1220 = sbr.rel (0) target = $region53
    $region52: #{tpu_custom_call.1} parent=1 // pred_region
      %1222 = vsyncadd [#allocation5], 0
      %s1224 = sshll.u32 [#allocation12], 4
      %s1225 = int_to_ptr.vmem [resolvable:$true] %s1224
      %s1226 = sshll.u32 %s7, 4
      %s1227 = int_to_ptr.hbm [resolvable:$true] %s1226
      %1229 = dma.vmem_to_hbm [thread:$0]  %s1225, 128, %s1227, [#allocation5]
    $region53: #{tpu_custom_call.1} parent=1 // pred_fallthru
      _
    // Predicated region
    $region54: #{tpu_custom_call.1} parent=1 // pred_check
      _
    $region55: #{tpu_custom_call.1} parent=1 // pred_check_branch
      %1231 = sbr.rel (0) target = $region57
    $region56: #{tpu_custom_call.1} parent=1 // pred_region
      %1233 = dma.done [#allocation5], 128
    $region57: #{tpu_custom_call.1} parent=1 // pred_fallthru
      _
    %1234 = vsyncpa [#allocation4], 1
    %1235 = vsyncpa [#allocation7], 1
    %1236 = vsyncpa [#allocation10], 1
    %1237 = vsyncpa [#allocation5], 1

</llo_original>
